<compile_context>
chip_gen: v7x
topology: tpu7x:2x2x1
jax: 0.10.0
libtpu: 0.0.40
codegen_flags: <defaults>
</compile_context>

<pallas_src>
import jax
import jax.numpy as jnp
from jax.experimental import pallas as pl
from jax.experimental.pallas import tpu as pltpu

IN_DIM = 28 * 28          # 784
H1, H2, H3 = 1024, 512, 256
OUT = 1
OUT_PAD = 128             # lane-dense output (only column 0 is meaningful)


def _device_kind():
    try:
        return jax.devices()[0].device_kind.lower()
    except Exception:
        return ""


_KIND = _device_kind()
_IS_V5E = ("v5e" in _KIND) or ("v5 lite" in _KIND) or ("v5lite" in _KIND)
_IS_V6 = "v6" in _KIND
_IS_V7X = ("v7" in _KIND) or ("7x" in _KIND)

# Hidden-layer activation dtype: bf16 on v6e/v7x (packed bf16 VALU), f32 on v5e.
ACT_DTYPE = jnp.float32 if _IS_V5E else jnp.bfloat16


def _leaky_relu(x, slope=0.2):
    return jnp.where(x > 0, x, slope * x)


def _make_kernel(tile, n_sub, act_dtype):
    sub = tile // n_sub

    def kernel(x_ref, w1_ref, b1_ref, w2_ref, b2_ref,
               w3_ref, b3_ref, w4_ref, b4_ref, o_ref):
        # Statically unrolled over n_sub independent row sub-chains so the LLO
        # scheduler can overlap one chain's MXU matmuls with the other chain's
        # activation / cast work.
        for s in range(n_sub):
            r0 = s * sub
            x = x_ref[pl.ds(r0, sub), :].astype(jnp.bfloat16)   # in-VMEM cast

            h = jnp.dot(x, w1_ref[...], preferred_element_type=jnp.float32)
            h = _leaky_relu(h.astype(act_dtype) + b1_ref[...])

            h = jnp.dot(h.astype(jnp.bfloat16), w2_ref[...],
                        preferred_element_type=jnp.float32)
            h = _leaky_relu(h.astype(act_dtype) + b2_ref[...])

            h = jnp.dot(h.astype(jnp.bfloat16), w3_ref[...],
                        preferred_element_type=jnp.float32)
            h = _leaky_relu(h.astype(act_dtype) + b3_ref[...])

            logit = jnp.dot(h.astype(jnp.bfloat16), w4_ref[...],
                            preferred_element_type=jnp.float32) + b4_ref[...]
            o_ref[pl.ds(r0, sub), :] = jax.nn.sigmoid(logit)    # f32 sigmoid

    return kernel


def prepare_params(params):
    """Cast torch-layout (in, out) f32 params into kernel layout/dtypes."""
    w1, b1, w2, b2, w3, b3, w4, b4 = params
    w4 = jnp.pad(w4, ((0, 0), (0, OUT_PAD - OUT)))     # zero output columns
    b4 = jnp.pad(b4, ((0, 0), (0, OUT_PAD - OUT)))
    bf = lambda w: w.astype(jnp.bfloat16)
    act = lambda b: b.astype(ACT_DTYPE)
    return (bf(w1), act(b1), bf(w2), act(b2), bf(w3), act(b3),
            bf(w4), b4.astype(jnp.float32))


def _round_up(v, m):
    return ((v + m - 1) // m) * m


def _pick_tile(n):
    n = max(int(n), 1)
    if _IS_V5E:
        default = 128           # 128-wide MXUs, smaller f32 spill footprint
    elif _IS_V6:
        default = 512           # amortize the ~0.35 us/step grid overhead
    else:
        default = 256           # v7x / unknown
    if _IS_V7X:
        # 2 TensorCores per chip: make sure the parallel batch grid has >= 2
        # steps whenever there is enough work to split.
        tile = min(default, _round_up(-(-n // 2), 16))
    else:
        tile = min(default, _round_up(n, 16))
    return max(tile, 16)


@jax.jit
def discriminator_forward(x, prepared_params):
    """x: (N, 1, 28, 28) / (N, 28, 28) / (N, 784).  Returns (N, 1) float32."""
    w1, b1, w2, b2, w3, b3, w4, b4 = prepared_params
    x_flat = x.reshape(-1, IN_DIM).astype(jnp.float32)   # == x.view(-1, 784)
    n = x_flat.shape[0]

    tile = _pick_tile(n)
    n_sub = 2 if tile >= 256 else 1
    n_pad = pl.cdiv(n, tile) * tile
    x_in = x_flat if n_pad == n else jnp.pad(x_flat, ((0, n_pad - n), (0, 0)))

    resident = lambda i: (0, 0)   # constant index map -> block stays in VMEM

    out = pl.pallas_call(
        _make_kernel(tile, n_sub, ACT_DTYPE),
        out_shape=jax.ShapeDtypeStruct((n_pad, OUT_PAD), jnp.float32),
        grid_spec=pltpu.PrefetchScalarGridSpec(
            num_scalar_prefetch=0,
            grid=(n_pad // tile,),
            in_specs=[
                pl.BlockSpec((tile, IN_DIM), lambda i: (i, 0)),  # raw f32 x
                pl.BlockSpec((IN_DIM, H1), resident),
                pl.BlockSpec((1, H1), resident),
                pl.BlockSpec((H1, H2), resident),
                pl.BlockSpec((1, H2), resident),
                pl.BlockSpec((H2, H3), resident),
                pl.BlockSpec((1, H3), resident),
                pl.BlockSpec((H3, OUT_PAD), resident),
                pl.BlockSpec((1, OUT_PAD), resident),
            ],
            out_specs=pl.BlockSpec((tile, OUT_PAD), lambda i: (i, 0)),
        ),
        compiler_params=pltpu.CompilerParams(
            dimension_semantics=("parallel",),   # batch axis shards across TCs
            vmem_limit_bytes=(24 if _IS_V7X else 32) * 1024 * 1024,
        ),
    )(x_in, w1, b1, w2, b2, w3, b3, w4, b4)

    return out[:n, :OUT]


def init_params(key):
    """Deterministic init mimicking torch.nn.Linear defaults:
    U(-1/sqrt(fan_in), 1/sqrt(fan_in)) for weight and bias; weights (in, out)."""
    dims = [(IN_DIM, H1), (H1, H2), (H2, H3), (H3, OUT)]
    params = []
    for fan_in, fan_out in dims:
        key, kw, kb = jax.random.split(key, 3)
        bound = 1.0 / (fan_in ** 0.5)
        w = jax.random.uniform(kw, (fan_in, fan_out), jnp.float32, -bound, bound)
        b = jax.random.uniform(kb, (1, fan_out), jnp.float32, -bound, bound)
        params += [w, b]
    return tuple(params)


def reference_forward(x, params, act_dtype=ACT_DTYPE):
    """Pure-JAX reference mirroring the kernel's mixed-precision numerics."""
    w1, b1, w2, b2, w3, b3, w4, b4 = params

    def hidden(h, w, b):
        acc = jnp.dot(h.astype(jnp.bfloat16), w.astype(jnp.bfloat16),
                      preferred_element_type=jnp.float32)
        return _leaky_relu(acc.astype(act_dtype) + b.astype(act_dtype))

    h = x.reshape(-1, IN_DIM).astype(jnp.float32)
    h = hidden(h, w1, b1)
    h = hidden(h, w2, b2)
    h = hidden(h, w3, b3)
    logit = jnp.dot(h.astype(jnp.bfloat16), w4.astype(jnp.bfloat16),
                    preferred_element_type=jnp.float32) + b4.astype(jnp.float32)
    return jax.nn.sigmoid(logit)


if __name__ == "__main__":
    key = jax.random.PRNGKey(0)
    k_params, k_x = jax.random.split(key)

    params = init_params(k_params)
    prepared = prepare_params(params)

    # Small MNIST-like batch: (N, C, H, W) = (2, 1, 28, 28)
    x = jax.random.normal(k_x, (2, 1, 28, 28), dtype=jnp.float32)

    out = discriminator_forward(x, prepared)
    out = jax.block_until_ready(out)

    ref = reference_forward(x, params)
    assert out.shape == (2, 1), out.shape
    max_err = float(jnp.max(jnp.abs(out - ref)))
    assert max_err < 5e-3, max_err

    print("KERNEL_OK")
</pallas_src>

<mosaic_0001>
module attributes {stable_mosaic.version = 11 : i64} {
  func.func @kernel(%arg0: i32, %arg1: memref<16x784xf32, #tpu.memory_space<vmem>>, %arg2: memref<784x1024xbf16, #tpu.memory_space<vmem>>, %arg3: memref<1x1024xbf16, #tpu.memory_space<vmem>>, %arg4: memref<1024x512xbf16, #tpu.memory_space<vmem>>, %arg5: memref<1x512xbf16, #tpu.memory_space<vmem>>, %arg6: memref<512x256xbf16, #tpu.memory_space<vmem>>, %arg7: memref<1x256xbf16, #tpu.memory_space<vmem>>, %arg8: memref<256x128xbf16, #tpu.memory_space<vmem>>, %arg9: memref<1x128xf32, #tpu.memory_space<vmem>>, %arg10: memref<16x128xf32, #tpu.memory_space<vmem>>) attributes {dimension_semantics = [#tpu.dimension_semantics<parallel>], iteration_bounds = array<i64: 1>, scalar_prefetch = 0 : i64, scratch_operands = 0 : i64, tpu.core_type = #tpu.core_type<tc>, window_params = [{transform_indices = @transform_0, window_bounds = array<i64: 16, 784>}, {pipeline_mode = #tpu.pipeline_mode<synchronous>, transform_indices = @transform_1, window_bounds = array<i64: 784, 1024>}, {pipeline_mode = #tpu.pipeline_mode<synchronous>, transform_indices = @transform_2, window_bounds = array<i64: 1, 1024>}, {pipeline_mode = #tpu.pipeline_mode<synchronous>, transform_indices = @transform_3, window_bounds = array<i64: 1024, 512>}, {pipeline_mode = #tpu.pipeline_mode<synchronous>, transform_indices = @transform_4, window_bounds = array<i64: 1, 512>}, {pipeline_mode = #tpu.pipeline_mode<synchronous>, transform_indices = @transform_5, window_bounds = array<i64: 512, 256>}, {pipeline_mode = #tpu.pipeline_mode<synchronous>, transform_indices = @transform_6, window_bounds = array<i64: 1, 256>}, {pipeline_mode = #tpu.pipeline_mode<synchronous>, transform_indices = @transform_7, window_bounds = array<i64: 256, 128>}, {pipeline_mode = #tpu.pipeline_mode<synchronous>, transform_indices = @transform_8, window_bounds = array<i64: 1, 128>}, {transform_indices = @transform_9, window_bounds = array<i64: 16, 128>}]} {
    %c0 = arith.constant 0 : index
    %c0_0 = arith.constant 0 : index
    %0 = vector.load %arg1[%c0, %c0_0] : memref<16x784xf32, #tpu.memory_space<vmem>>, vector<16x784xf32>
    %1 = arith.truncf %0 : vector<16x784xf32> to vector<16x784xbf16>
    %c0_1 = arith.constant 0 : index
    %c0_2 = arith.constant 0 : index
    %2 = vector.load %arg2[%c0_1, %c0_2] : memref<784x1024xbf16, #tpu.memory_space<vmem>>, vector<784x1024xbf16>
    %cst = arith.constant dense<0.000000e+00> : vector<16x1024xf32>
    %3 = tpu.matmul %1, %2, %cst {dimension_numbers = #tpu.dot_dimension_numbers<[1], [0], [0], [1], [0, 0, 1, 1], [], []>} : vector<16x784xbf16>, vector<784x1024xbf16>, vector<16x1024xf32> -> vector<16x1024xf32>
    %4 = arith.truncf %3 : vector<16x1024xf32> to vector<16x1024xbf16>
    %c0_3 = arith.constant 0 : index
    %c0_4 = arith.constant 0 : index
    %5 = vector.load %arg3[%c0_3, %c0_4] : memref<1x1024xbf16, #tpu.memory_space<vmem>>, vector<1x1024xbf16>
    %6 = vector.broadcast %5 : vector<1x1024xbf16> to vector<16x1024xbf16>
    %7 = arith.addf %4, %6 : vector<16x1024xbf16>
    %cst_5 = arith.constant 0.000000e+00 : bf16
    %8 = vector.broadcast %cst_5 : bf16 to vector<16x1024xbf16>
    %9 = arith.cmpf ogt, %7, %8 : vector<16x1024xbf16>
    %cst_6 = arith.constant 2.001950e-01 : bf16
    %10 = vector.broadcast %cst_6 : bf16 to vector<16x1024xbf16>
    %11 = arith.mulf %10, %7 : vector<16x1024xbf16>
    %12 = arith.select %9, %7, %11 : vector<16x1024xi1>, vector<16x1024xbf16>
    %c0_7 = arith.constant 0 : index
    %c0_8 = arith.constant 0 : index
    %13 = vector.load %arg4[%c0_7, %c0_8] : memref<1024x512xbf16, #tpu.memory_space<vmem>>, vector<1024x512xbf16>
    %cst_9 = arith.constant dense<0.000000e+00> : vector<16x512xf32>
    %14 = tpu.matmul %12, %13, %cst_9 {dimension_numbers = #tpu.dot_dimension_numbers<[1], [0], [0], [1], [0, 0, 1, 1], [], []>} : vector<16x1024xbf16>, vector<1024x512xbf16>, vector<16x512xf32> -> vector<16x512xf32>
    %15 = arith.truncf %14 : vector<16x512xf32> to vector<16x512xbf16>
    %c0_10 = arith.constant 0 : index
    %c0_11 = arith.constant 0 : index
    %16 = vector.load %arg5[%c0_10, %c0_11] : memref<1x512xbf16, #tpu.memory_space<vmem>>, vector<1x512xbf16>
    %17 = vector.broadcast %16 : vector<1x512xbf16> to vector<16x512xbf16>
    %18 = arith.addf %15, %17 : vector<16x512xbf16>
    %cst_12 = arith.constant 0.000000e+00 : bf16
    %19 = vector.broadcast %cst_12 : bf16 to vector<16x512xbf16>
    %20 = arith.cmpf ogt, %18, %19 : vector<16x512xbf16>
    %cst_13 = arith.constant 2.001950e-01 : bf16
    %21 = vector.broadcast %cst_13 : bf16 to vector<16x512xbf16>
    %22 = arith.mulf %21, %18 : vector<16x512xbf16>
    %23 = arith.select %20, %18, %22 : vector<16x512xi1>, vector<16x512xbf16>
    %c0_14 = arith.constant 0 : index
    %c0_15 = arith.constant 0 : index
    %24 = vector.load %arg6[%c0_14, %c0_15] : memref<512x256xbf16, #tpu.memory_space<vmem>>, vector<512x256xbf16>
    %cst_16 = arith.constant dense<0.000000e+00> : vector<16x256xf32>
    %25 = tpu.matmul %23, %24, %cst_16 {dimension_numbers = #tpu.dot_dimension_numbers<[1], [0], [0], [1], [0, 0, 1, 1], [], []>} : vector<16x512xbf16>, vector<512x256xbf16>, vector<16x256xf32> -> vector<16x256xf32>
    %26 = arith.truncf %25 : vector<16x256xf32> to vector<16x256xbf16>
    %c0_17 = arith.constant 0 : index
    %c0_18 = arith.constant 0 : index
    %27 = vector.load %arg7[%c0_17, %c0_18] : memref<1x256xbf16, #tpu.memory_space<vmem>>, vector<1x256xbf16>
    %28 = vector.broadcast %27 : vector<1x256xbf16> to vector<16x256xbf16>
    %29 = arith.addf %26, %28 : vector<16x256xbf16>
    %cst_19 = arith.constant 0.000000e+00 : bf16
    %30 = vector.broadcast %cst_19 : bf16 to vector<16x256xbf16>
    %31 = arith.cmpf ogt, %29, %30 : vector<16x256xbf16>
    %cst_20 = arith.constant 2.001950e-01 : bf16
    %32 = vector.broadcast %cst_20 : bf16 to vector<16x256xbf16>
    %33 = arith.mulf %32, %29 : vector<16x256xbf16>
    %34 = arith.select %31, %29, %33 : vector<16x256xi1>, vector<16x256xbf16>
    %c0_21 = arith.constant 0 : index
    %c0_22 = arith.constant 0 : index
    %35 = vector.load %arg8[%c0_21, %c0_22] : memref<256x128xbf16, #tpu.memory_space<vmem>>, vector<256x128xbf16>
    %cst_23 = arith.constant dense<0.000000e+00> : vector<16x128xf32>
    %36 = tpu.matmul %34, %35, %cst_23 {dimension_numbers = #tpu.dot_dimension_numbers<[1], [0], [0], [1], [0, 0, 1, 1], [], []>} : vector<16x256xbf16>, vector<256x128xbf16>, vector<16x128xf32> -> vector<16x128xf32>
    %c0_24 = arith.constant 0 : index
    %c0_25 = arith.constant 0 : index
    %37 = vector.load %arg9[%c0_24, %c0_25] : memref<1x128xf32, #tpu.memory_space<vmem>>, vector<1x128xf32>
    %38 = vector.broadcast %37 : vector<1x128xf32> to vector<16x128xf32>
    %39 = arith.addf %36, %38 : vector<16x128xf32>
    %40 = arith.negf %39 : vector<16x128xf32>
    %41 = math.exp %40 : vector<16x128xf32>
    %cst_26 = arith.constant 1.000000e+00 : f32
    %42 = vector.broadcast %cst_26 : f32 to vector<16x128xf32>
    %43 = arith.addf %42, %41 : vector<16x128xf32>
    %44 = arith.divf %42, %43 : vector<16x128xf32>
    %c0_27 = arith.constant 0 : index
    %c0_28 = arith.constant 0 : index
    %45 = vector.load %arg10[%c0_27, %c0_28] : memref<16x128xf32, #tpu.memory_space<vmem>>, vector<16x128xf32>
    tpu.vector_store %arg10[%c0_27, %c0_28], %44 {strides = array<i32>} : memref<16x128xf32, #tpu.memory_space<vmem>>, vector<16x128xf32>,
    return
  }
  func.func @transform_0(%arg0: i32) -> (i32, i32) {
    %c0_i32 = arith.constant 0 : i32
    %c0_i32_0 = arith.constant 0 : i32
    return %arg0, %c0_i32 : i32, i32
  }
  func.func @transform_1(%arg0: i32) -> (i32, i32) {
    %c0_i32 = arith.constant 0 : i32
    %c0_i32_0 = arith.constant 0 : i32
    %c0_i32_1 = arith.constant 0 : i32
    return %c0_i32, %c0_i32_0 : i32, i32
  }
  func.func @transform_2(%arg0: i32) -> (i32, i32) {
    %c0_i32 = arith.constant 0 : i32
    %c0_i32_0 = arith.constant 0 : i32
    %c0_i32_1 = arith.constant 0 : i32
    return %c0_i32, %c0_i32_0 : i32, i32
  }
  func.func @transform_3(%arg0: i32) -> (i32, i32) {
    %c0_i32 = arith.constant 0 : i32
    %c0_i32_0 = arith.constant 0 : i32
    %c0_i32_1 = arith.constant 0 : i32
    return %c0_i32, %c0_i32_0 : i32, i32
  }
  func.func @transform_4(%arg0: i32) -> (i32, i32) {
    %c0_i32 = arith.constant 0 : i32
    %c0_i32_0 = arith.constant 0 : i32
    %c0_i32_1 = arith.constant 0 : i32
    return %c0_i32, %c0_i32_0 : i32, i32
  }
  func.func @transform_5(%arg0: i32) -> (i32, i32) {
    %c0_i32 = arith.constant 0 : i32
    %c0_i32_0 = arith.constant 0 : i32
    %c0_i32_1 = arith.constant 0 : i32
    return %c0_i32, %c0_i32_0 : i32, i32
  }
  func.func @transform_6(%arg0: i32) -> (i32, i32) {
    %c0_i32 = arith.constant 0 : i32
    %c0_i32_0 = arith.constant 0 : i32
    %c0_i32_1 = arith.constant 0 : i32
    return %c0_i32, %c0_i32_0 : i32, i32
  }
  func.func @transform_7(%arg0: i32) -> (i32, i32) {
    %c0_i32 = arith.constant 0 : i32
    %c0_i32_0 = arith.constant 0 : i32
    %c0_i32_1 = arith.constant 0 : i32
    return %c0_i32, %c0_i32_0 : i32, i32
  }
  func.func @transform_8(%arg0: i32) -> (i32, i32) {
    %c0_i32 = arith.constant 0 : i32
    %c0_i32_0 = arith.constant 0 : i32
    %c0_i32_1 = arith.constant 0 : i32
    return %c0_i32, %c0_i32_0 : i32, i32
  }
  func.func @transform_9(%arg0: i32) -> (i32, i32) {
    %c0_i32 = arith.constant 0 : i32
    %c0_i32_0 = arith.constant 0 : i32
    return %arg0, %c0_i32 : i32, i32
  }
}

</mosaic_0001>

<llo_original>
// kernel: discriminator_forward.1
$region0: #{discriminator_forward.1}
  #allocation0 [shape = 'u32[]', space=smem, size = 0x4, offset = 0x4, fixed_abs, tag = 'smem constant byte address 0x4 - core index']
  #allocation1 [shape = 'u32[144,128]{1,0:T(1,128)}', space=vmem, size = 0x12000, scoped, tag = 'internal scratch']
  %s0 = inlined_call_operand.vmem [shape: f32[16,784], index: 0, kind: input, shape index: {}]
  %s1 = inlined_call_operand.hbm [shape: bf16[784,1024], index: 1, kind: input, shape index: {}]
  %s2 = inlined_call_operand.hbm [shape: bf16[1,1024], index: 2, kind: input, shape index: {}]
  %s3 = inlined_call_operand.hbm [shape: bf16[1024,512], index: 3, kind: input, shape index: {}]
  %s4 = inlined_call_operand.hbm [shape: bf16[1,512], index: 4, kind: input, shape index: {}]
  %s5 = inlined_call_operand.hbm [shape: bf16[512,256], index: 5, kind: input, shape index: {}]
  %s6 = inlined_call_operand.hbm [shape: bf16[1,256], index: 6, kind: input, shape index: {}]
  %s7 = inlined_call_operand.hbm [shape: bf16[256,128], index: 7, kind: input, shape index: {}]
  %s8 = inlined_call_operand.hbm [shape: f32[1,128], index: 8, kind: input, shape index: {}]
  %s9 = inlined_call_operand.vmem [shape: f32[16,128], index: 9, kind: output, shape index: {}]
  %s10 = sld [smem:[#allocation0]]
  $region78: #{discriminator_forward.1} parent=0
    _
  %s12 = ssub.s32 1, %s10
  %s13 = scalar_select 0, %s12, %s10
  $region1: #{discriminator_forward.1} parent=0
    #allocation2 [shape = 'u8[1605632]{0}', space=vmem, size = 0x188000, scoped, tag = 'input window, operand 1, single buffered']
    #allocation3 [shape = 's32[1]{0}', space=sflag, size = 0x4, scoped, tag = 'scoped memory for discriminator_forward.1']
    #allocation4 [shape = 'u8[4096]{0}', space=vmem, size = 0x1000, scoped, tag = 'input window, operand 2, single buffered']
    #allocation5 [shape = 's32[1]{0}', space=sflag, size = 0x4, scoped, tag = 'scoped memory for discriminator_forward.1']
    #allocation6 [shape = 'u8[1048576]{0}', space=vmem, size = 0x100000, scoped, tag = 'input window, operand 3, single buffered']
    #allocation7 [shape = 'u8[2048]{0}', space=vmem, size = 0x800, scoped, tag = 'input window, operand 4, single buffered']
    #allocation8 [shape = 's32[1]{0}', space=sflag, size = 0x4, scoped, tag = 'scoped memory for discriminator_forward.1']
    #allocation9 [shape = 'u8[262144]{0}', space=vmem, size = 0x40000, scoped, tag = 'input window, operand 5, single buffered']
    #allocation10 [shape = 'u8[1024]{0}', space=vmem, size = 0x400, scoped, tag = 'input window, operand 6, single buffered']
    #allocation11 [shape = 's32[1]{0}', space=sflag, size = 0x4, scoped, tag = 'scoped memory for discriminator_forward.1']
    #allocation12 [shape = 'u8[65536]{0}', space=vmem, size = 0x10000, scoped, tag = 'input window, operand 7, single buffered']
    #allocation13 [shape = 'u8[512]{0}', space=vmem, size = 0x400, scoped, tag = 'input window, operand 8, single buffered']
    #allocation14 [shape = 's32[1]{0}', space=sflag, size = 0x4, scoped, tag = 'scoped memory for discriminator_forward.1']
    %14 = vsyncpa [#allocation3], 0
    %15 = vsyncpa [#allocation5], 0
    %16 = vsyncpa [#allocation8], 0
    %17 = vsyncpa [#allocation11], 0
    %18 = vsyncpa [#allocation14], 0
    // Predicated region
    $region2: #{discriminator_forward.1} parent=1 // pred_check
      _
    $region3: #{discriminator_forward.1} parent=1 // pred_check_branch
      %20 = sbr.rel (0) target = $region5
    $region4: #{discriminator_forward.1} parent=1 // pred_region
      _
    $region5: #{discriminator_forward.1} parent=1 // pred_fallthru
      _
    // Predicated region
    $region6: #{discriminator_forward.1} parent=1 // pred_check
      _
    $region7: #{discriminator_forward.1} parent=1 // pred_check_branch
      %22 = sbr.rel (0) target = $region9
    $region8: #{discriminator_forward.1} parent=1 // pred_region
      %s24 = ssub.s32 50176, 50176
      %25 = vsyncadd [#allocation3], %s24
      %s26 = sshll.u32 [#allocation2], 4
      %s27 = int_to_ptr.vmem [resolvable:$true] %s26
      %32 = dma.hbm_to_vmem [thread:$0]  %s1, 50176, %s27, [#allocation3], 512, 512, 32
    $region9: #{discriminator_forward.1} parent=1 // pred_fallthru
      _
    // Predicated region
    $region10: #{discriminator_forward.1} parent=1 // pred_check
      _
    $region11: #{discriminator_forward.1} parent=1 // pred_check_branch
      %34 = sbr.rel (0) target = $region13
    $region12: #{discriminator_forward.1} parent=1 // pred_region
      %s36 = ssub.s32 128, 128
      %37 = vsyncadd [#allocation5], %s36
      %s39 = sshll.u32 [#allocation4], 4
      %s40 = int_to_ptr.vmem [resolvable:$true] %s39
      %42 = dma.hbm_to_vmem [thread:$0]  %s2, 128, %s40, [#allocation5]
    $region13: #{discriminator_forward.1} parent=1 // pred_fallthru
      _
    // Predicated region
    $region14: #{discriminator_forward.1} parent=1 // pred_check
      _
    $region15: #{discriminator_forward.1} parent=1 // pred_check_branch
      %44 = sbr.rel (0) target = $region17
    $region16: #{discriminator_forward.1} parent=1 // pred_region
      %s46 = ssub.s32 32768, 32768
      %47 = vsyncadd [#allocation5], %s46
      %s48 = sshll.u32 [#allocation6], 4
      %s49 = int_to_ptr.vmem [resolvable:$true] %s48
      %54 = dma.hbm_to_vmem [thread:$0]  %s3, 32768, %s49, [#allocation5], 256, 256, 16
    $region17: #{discriminator_forward.1} parent=1 // pred_fallthru
      _
    // Predicated region
    $region18: #{discriminator_forward.1} parent=1 // pred_check
      _
    $region19: #{discriminator_forward.1} parent=1 // pred_check_branch
      %56 = sbr.rel (0) target = $region21
    $region20: #{discriminator_forward.1} parent=1 // pred_region
      %s58 = ssub.s32 64, 64
      %59 = vsyncadd [#allocation8], %s58
      %s61 = sshll.u32 [#allocation7], 4
      %s62 = int_to_ptr.vmem [resolvable:$true] %s61
      %64 = dma.hbm_to_vmem [thread:$0]  %s4, 64, %s62, [#allocation8]
    $region21: #{discriminator_forward.1} parent=1 // pred_fallthru
      _
    // Predicated region
    $region22: #{discriminator_forward.1} parent=1 // pred_check
      _
    $region23: #{discriminator_forward.1} parent=1 // pred_check_branch
      %66 = sbr.rel (0) target = $region25
    $region24: #{discriminator_forward.1} parent=1 // pred_region
      %s68 = ssub.s32 8192, 8192
      %69 = vsyncadd [#allocation8], %s68
      %s70 = sshll.u32 [#allocation9], 4
      %s71 = int_to_ptr.vmem [resolvable:$true] %s70
      %76 = dma.hbm_to_vmem [thread:$0]  %s5, 8192, %s71, [#allocation8], 128, 128, 8
    $region25: #{discriminator_forward.1} parent=1 // pred_fallthru
      _
    // Predicated region
    $region26: #{discriminator_forward.1} parent=1 // pred_check
      _
    $region27: #{discriminator_forward.1} parent=1 // pred_check_branch
      %78 = sbr.rel (0) target = $region29
    $region28: #{discriminator_forward.1} parent=1 // pred_region
      %s80 = ssub.s32 32, 32
      %81 = vsyncadd [#allocation11], %s80
      %s83 = sshll.u32 [#allocation10], 4
      %s84 = int_to_ptr.vmem [resolvable:$true] %s83
      %86 = dma.hbm_to_vmem [thread:$0]  %s6, 32, %s84, [#allocation11]
    $region29: #{discriminator_forward.1} parent=1 // pred_fallthru
      _
    // Predicated region
    $region30: #{discriminator_forward.1} parent=1 // pred_check
      _
    $region31: #{discriminator_forward.1} parent=1 // pred_check_branch
      %88 = sbr.rel (0) target = $region33
    $region32: #{discriminator_forward.1} parent=1 // pred_region
      %s90 = ssub.s32 2048, 2048
      %91 = vsyncadd [#allocation11], %s90
      %s92 = sshll.u32 [#allocation12], 4
      %s93 = int_to_ptr.vmem [resolvable:$true] %s92
      %98 = dma.hbm_to_vmem [thread:$0]  %s7, 2048, %s93, [#allocation11], 64, 64, 4
    $region33: #{discriminator_forward.1} parent=1 // pred_fallthru
      _
    // Predicated region
    $region34: #{discriminator_forward.1} parent=1 // pred_check
      _
    $region35: #{discriminator_forward.1} parent=1 // pred_check_branch
      %100 = sbr.rel (0) target = $region37
    $region36: #{discriminator_forward.1} parent=1 // pred_region
      %s102 = ssub.s32 16, 16
      %103 = vsyncadd [#allocation14], %s102
      %s105 = sshll.u32 [#allocation13], 4
      %s106 = int_to_ptr.vmem [resolvable:$true] %s105
      %108 = dma.hbm_to_vmem [thread:$0]  %s8, 16, %s106, [#allocation14]
    $region37: #{discriminator_forward.1} parent=1 // pred_fallthru
      _
    // Predicated region
    $region38: #{discriminator_forward.1} parent=1 // pred_check
      _
    $region39: #{discriminator_forward.1} parent=1 // pred_check_branch
      %110 = sbr.rel (0) target = $region41
    $region40: #{discriminator_forward.1} parent=1 // pred_region
      %111 = dma.done [#allocation3], 50176
    $region41: #{discriminator_forward.1} parent=1 // pred_fallthru
      _
    // Predicated region
    $region42: #{discriminator_forward.1} parent=1 // pred_check
      _
    $region43: #{discriminator_forward.1} parent=1 // pred_check_branch
      %113 = sbr.rel (0) target = $region45
    $region44: #{discriminator_forward.1} parent=1 // pred_region
      %114 = dma.done [#allocation5], 128
    $region45: #{discriminator_forward.1} parent=1 // pred_fallthru
      _
    // Predicated region
    $region46: #{discriminator_forward.1} parent=1 // pred_check
      _
    $region47: #{discriminator_forward.1} parent=1 // pred_check_branch
      %116 = sbr.rel (0) target = $region49
    $region48: #{discriminator_forward.1} parent=1 // pred_region
      %117 = dma.done [#allocation5], 32768
    $region49: #{discriminator_forward.1} parent=1 // pred_fallthru
      _
    // Predicated region
    $region50: #{discriminator_forward.1} parent=1 // pred_check
      _
    $region51: #{discriminator_forward.1} parent=1 // pred_check_branch
      %119 = sbr.rel (0) target = $region53
    $region52: #{discriminator_forward.1} parent=1 // pred_region
      %120 = dma.done [#allocation8], 64
    $region53: #{discriminator_forward.1} parent=1 // pred_fallthru
      _
    // Predicated region
    $region54: #{discriminator_forward.1} parent=1 // pred_check
      _
    $region55: #{discriminator_forward.1} parent=1 // pred_check_branch
      %122 = sbr.rel (0) target = $region57
    $region56: #{discriminator_forward.1} parent=1 // pred_region
      %123 = dma.done [#allocation8], 8192
    $region57: #{discriminator_forward.1} parent=1 // pred_fallthru
      _
    // Predicated region
    $region58: #{discriminator_forward.1} parent=1 // pred_check
      _
    $region59: #{discriminator_forward.1} parent=1 // pred_check_branch
      %125 = sbr.rel (0) target = $region61
    $region60: #{discriminator_forward.1} parent=1 // pred_region
      %126 = dma.done [#allocation11], 32
    $region61: #{discriminator_forward.1} parent=1 // pred_fallthru
      _
    // Predicated region
    $region62: #{discriminator_forward.1} parent=1 // pred_check
      _
    $region63: #{discriminator_forward.1} parent=1 // pred_check_branch
      %128 = sbr.rel (0) target = $region65
    $region64: #{discriminator_forward.1} parent=1 // pred_region
      %129 = dma.done [#allocation11], 2048
    $region65: #{discriminator_forward.1} parent=1 // pred_fallthru
      _
    // Predicated region
    $region66: #{discriminator_forward.1} parent=1 // pred_check
      _
    $region67: #{discriminator_forward.1} parent=1 // pred_check_branch
      %131 = sbr.rel (0) target = $region69
    $region68: #{discriminator_forward.1} parent=1 // pred_region
      %132 = dma.done [#allocation14], 16
    $region69: #{discriminator_forward.1} parent=1 // pred_fallthru
      _
    %v135 = vld [vmem:[%s0] sm:$0xff]
    %v136 = vld [vmem:[%s0 + $0x8] sm:$0xff]
    %v137 = vld [vmem:[%s0 + $0x10] sm:$0xff]
    %v138 = vld [vmem:[%s0 + $0x18] sm:$0xff]
    %v139 = vld [vmem:[%s0 + $0x20] sm:$0xff]
    %v140 = vld [vmem:[%s0 + $0x28] sm:$0xff]
    %v141 = vld [vmem:[%s0 + $0x30] sm:$0xff]
    %v142 = vld [vmem:[%s0 + $0x38] sm:$0xff]
    %v143 = vld [vmem:[%s0 + $0x40] sm:$0xff]
    %v144 = vld [vmem:[%s0 + $0x48] sm:$0xff]
    %v145 = vld [vmem:[%s0 + $0x50] sm:$0xff]
    %v146 = vld [vmem:[%s0 + $0x58] sm:$0xff]
    %v147 = vld [vmem:[%s0 + $0x60] sm:$0xff]
    %v148 = vld [vmem:[%s0 + $0x68] sm:$0xff]
    %v149 = vpack.c.bf16 %v142, %v135
    %v150 = vpack.c.bf16 %v143, %v136
    %v151 = vpack.c.bf16 %v144, %v137
    %v152 = vpack.c.bf16 %v145, %v138
    %v153 = vpack.c.bf16 %v146, %v139
    %v154 = vpack.c.bf16 %v147, %v140
    %v155 = vpack.c.bf16 %v148, %v141
    %v156 = vld [vmem:[#allocation2] sm:$0xff]
    %v157 = vld [vmem:[#allocation2 + $0x8] sm:$0xff]
    %v158 = vld [vmem:[#allocation2 + $0x10] sm:$0xff]
    %v159 = vld [vmem:[#allocation2 + $0x18] sm:$0xff]
    %v160 = vld [vmem:[#allocation2 + $0x20] sm:$0xff]
    %v161 = vld [vmem:[#allocation2 + $0x28] sm:$0xff]
    %v162 = vld [vmem:[#allocation2 + $0x30] sm:$0xff]
    %v163 = vld [vmem:[#allocation2 + $0x38] sm:$0xff]
    %v164 = vld [vmem:[#allocation2 + $0x40] sm:$0xff]
    %v165 = vld [vmem:[#allocation2 + $0x48] sm:$0xff]
    %v166 = vld [vmem:[#allocation2 + $0x50] sm:$0xff]
    %v167 = vld [vmem:[#allocation2 + $0x58] sm:$0xff]
    %v168 = vld [vmem:[#allocation2 + $0x60] sm:$0xff]
    %v169 = vld [vmem:[#allocation2 + $0x68] sm:$0xff]
    %v170 = vld [vmem:[#allocation2 + $0x70] sm:$0xff]
    %v171 = vld [vmem:[#allocation2 + $0x78] sm:$0xff]
    %v172 = vld [vmem:[#allocation2 + $0x80] sm:$0xff]
    %v173 = vld [vmem:[#allocation2 + $0x88] sm:$0xff]
    %v174 = vld [vmem:[#allocation2 + $0x90] sm:$0xff]
    %v175 = vld [vmem:[#allocation2 + $0x98] sm:$0xff]
    %v176 = vld [vmem:[#allocation2 + $0xa0] sm:$0xff]
    %v177 = vld [vmem:[#allocation2 + $0xa8] sm:$0xff]
    %v178 = vld [vmem:[#allocation2 + $0xb0] sm:$0xff]
    %v179 = vld [vmem:[#allocation2 + $0xb8] sm:$0xff]
    %v180 = vld [vmem:[#allocation2 + $0xc0] sm:$0xff]
    %v181 = vld [vmem:[#allocation2 + $0xc8] sm:$0xff]
    %v182 = vld [vmem:[#allocation2 + $0xd0] sm:$0xff]
    %v183 = vld [vmem:[#allocation2 + $0xd8] sm:$0xff]
    %v184 = vld [vmem:[#allocation2 + $0xe0] sm:$0xff]
    %v185 = vld [vmem:[#allocation2 + $0xe8] sm:$0xff]
    %v186 = vld [vmem:[#allocation2 + $0xf0] sm:$0xff]
    %v187 = vld [vmem:[#allocation2 + $0xf8] sm:$0xff]
    %v188 = vld [vmem:[#allocation2 + $0x100] sm:$0xff]
    %v189 = vld [vmem:[#allocation2 + $0x108] sm:$0xff]
    %v190 = vld [vmem:[#allocation2 + $0x110] sm:$0xff]
    %v191 = vld [vmem:[#allocation2 + $0x118] sm:$0xff]
    %v192 = vld [vmem:[#allocation2 + $0x120] sm:$0xff]
    %v193 = vld [vmem:[#allocation2 + $0x128] sm:$0xff]
    %v194 = vld [vmem:[#allocation2 + $0x130] sm:$0xff]
    %v195 = vld [vmem:[#allocation2 + $0x138] sm:$0xff]
    %v196 = vld [vmem:[#allocation2 + $0x140] sm:$0xff]
    %v197 = vld [vmem:[#allocation2 + $0x148] sm:$0xff]
    %v198 = vld [vmem:[#allocation2 + $0x150] sm:$0xff]
    %v199 = vld [vmem:[#allocation2 + $0x158] sm:$0xff]
    %v200 = vld [vmem:[#allocation2 + $0x160] sm:$0xff]
    %v201 = vld [vmem:[#allocation2 + $0x168] sm:$0xff]
    %v202 = vld [vmem:[#allocation2 + $0x170] sm:$0xff]
    %v203 = vld [vmem:[#allocation2 + $0x178] sm:$0xff]
    %v204 = vld [vmem:[#allocation2 + $0x180] sm:$0xff]
    %v205 = vld [vmem:[#allocation2 + $0x188] sm:$0xff]
    %v206 = vld [vmem:[#allocation2 + $0x190] sm:$0xff]
    %v207 = vld [vmem:[#allocation2 + $0x198] sm:$0xff]
    %v208 = vld [vmem:[#allocation2 + $0x1a0] sm:$0xff]
    %v209 = vld [vmem:[#allocation2 + $0x1a8] sm:$0xff]
    %v210 = vld [vmem:[#allocation2 + $0x1b0] sm:$0xff]
    %v211 = vld [vmem:[#allocation2 + $0x1b8] sm:$0xff]
    %v212 = vld [vmem:[#allocation2 + $0x1c0] sm:$0xff]
    %v213 = vld [vmem:[#allocation2 + $0x1c8] sm:$0xff]
    %v214 = vld [vmem:[#allocation2 + $0x1d0] sm:$0xff]
    %v215 = vld [vmem:[#allocation2 + $0x1d8] sm:$0xff]
    %v216 = vld [vmem:[#allocation2 + $0x1e0] sm:$0xff]
    %v217 = vld [vmem:[#allocation2 + $0x1e8] sm:$0xff]
    %v218 = vld [vmem:[#allocation2 + $0x1f0] sm:$0xff]
    %v219 = vld [vmem:[#allocation2 + $0x1f8] sm:$0xff]
    %v220 = vld [vmem:[#allocation2 + $0x200] sm:$0xff]
    %v221 = vld [vmem:[#allocation2 + $0x208] sm:$0xff]
    %v222 = vld [vmem:[#allocation2 + $0x210] sm:$0xff]
    %v223 = vld [vmem:[#allocation2 + $0x218] sm:$0xff]
    %v224 = vld [vmem:[#allocation2 + $0x220] sm:$0xff]
    %v225 = vld [vmem:[#allocation2 + $0x228] sm:$0xff]
    %v226 = vld [vmem:[#allocation2 + $0x230] sm:$0xff]
    %v227 = vld [vmem:[#allocation2 + $0x238] sm:$0xff]
    %v228 = vld [vmem:[#allocation2 + $0x240] sm:$0xff]
    %v229 = vld [vmem:[#allocation2 + $0x248] sm:$0xff]
    %v230 = vld [vmem:[#allocation2 + $0x250] sm:$0xff]
    %v231 = vld [vmem:[#allocation2 + $0x258] sm:$0xff]
    %v232 = vld [vmem:[#allocation2 + $0x260] sm:$0xff]
    %v233 = vld [vmem:[#allocation2 + $0x268] sm:$0xff]
    %v234 = vld [vmem:[#allocation2 + $0x270] sm:$0xff]
    %v235 = vld [vmem:[#allocation2 + $0x278] sm:$0xff]
    %v236 = vld [vmem:[#allocation2 + $0x280] sm:$0xff]
    %v237 = vld [vmem:[#allocation2 + $0x288] sm:$0xff]
    %v238 = vld [vmem:[#allocation2 + $0x290] sm:$0xff]
    %v239 = vld [vmem:[#allocation2 + $0x298] sm:$0xff]
    %v240 = vld [vmem:[#allocation2 + $0x2a0] sm:$0xff]
    %v241 = vld [vmem:[#allocation2 + $0x2a8] sm:$0xff]
    %v242 = vld [vmem:[#allocation2 + $0x2b0] sm:$0xff]
    %v243 = vld [vmem:[#allocation2 + $0x2b8] sm:$0xff]
    %v244 = vld [vmem:[#allocation2 + $0x2c0] sm:$0xff]
    %v245 = vld [vmem:[#allocation2 + $0x2c8] sm:$0xff]
    %v246 = vld [vmem:[#allocation2 + $0x2d0] sm:$0xff]
    %v247 = vld [vmem:[#allocation2 + $0x2d8] sm:$0xff]
    %v248 = vld [vmem:[#allocation2 + $0x2e0] sm:$0xff]
    %v249 = vld [vmem:[#allocation2 + $0x2e8] sm:$0xff]
    %v250 = vld [vmem:[#allocation2 + $0x2f0] sm:$0xff]
    %v251 = vld [vmem:[#allocation2 + $0x2f8] sm:$0xff]
    %v252 = vld [vmem:[#allocation2 + $0x300] sm:$0xff]
    %v253 = vld [vmem:[#allocation2 + $0x308] sm:$0xff]
    %v254 = vld [vmem:[#allocation2 + $0x310] sm:$0xff]
    %v255 = vld [vmem:[#allocation2 + $0x318] sm:$0xff]
    %v256 = vld [vmem:[#allocation2 + $0x320] sm:$0xff]
    %v257 = vld [vmem:[#allocation2 + $0x328] sm:$0xff]
    %v258 = vld [vmem:[#allocation2 + $0x330] sm:$0xff]
    %v259 = vld [vmem:[#allocation2 + $0x338] sm:$0xff]
    %v260 = vld [vmem:[#allocation2 + $0x340] sm:$0xff]
    %v261 = vld [vmem:[#allocation2 + $0x348] sm:$0xff]
    %v262 = vld [vmem:[#allocation2 + $0x350] sm:$0xff]
    %v263 = vld [vmem:[#allocation2 + $0x358] sm:$0xff]
    %v264 = vld [vmem:[#allocation2 + $0x360] sm:$0xff]
    %v265 = vld [vmem:[#allocation2 + $0x368] sm:$0xff]
    %v266 = vld [vmem:[#allocation2 + $0x370] sm:$0xff]
    %v267 = vld [vmem:[#allocation2 + $0x378] sm:$0xff]
    %v268 = vld [vmem:[#allocation2 + $0x380] sm:$0xff]
    %v269 = vld [vmem:[#allocation2 + $0x388] sm:$0xff]
    %v270 = vld [vmem:[#allocation2 + $0x390] sm:$0xff]
    %v271 = vld [vmem:[#allocation2 + $0x398] sm:$0xff]
    %v272 = vld [vmem:[#allocation2 + $0x3a0] sm:$0xff]
    %v273 = vld [vmem:[#allocation2 + $0x3a8] sm:$0xff]
    %v274 = vld [vmem:[#allocation2 + $0x3b0] sm:$0xff]
    %v275 = vld [vmem:[#allocation2 + $0x3b8] sm:$0xff]
    %v276 = vld [vmem:[#allocation2 + $0x3c0] sm:$0xff]
    %v277 = vld [vmem:[#allocation2 + $0x3c8] sm:$0xff]
    %v278 = vld [vmem:[#allocation2 + $0x3d0] sm:$0xff]
    %v279 = vld [vmem:[#allocation2 + $0x3d8] sm:$0xff]
    %v280 = vld [vmem:[#allocation2 + $0x3e0] sm:$0xff]
    %v281 = vld [vmem:[#allocation2 + $0x3e8] sm:$0xff]
    %v282 = vld [vmem:[#allocation2 + $0x3f0] sm:$0xff]
    %v283 = vld [vmem:[#allocation2 + $0x3f8] sm:$0xff]
    %v284 = vld [vmem:[#allocation2 + $0x400] sm:$0xff]
    %v285 = vld [vmem:[#allocation2 + $0x408] sm:$0xff]
    %v286 = vld [vmem:[#allocation2 + $0x410] sm:$0xff]
    %v287 = vld [vmem:[#allocation2 + $0x418] sm:$0xff]
    %v288 = vld [vmem:[#allocation2 + $0x420] sm:$0xff]
    %v289 = vld [vmem:[#allocation2 + $0x428] sm:$0xff]
    %v290 = vld [vmem:[#allocation2 + $0x430] sm:$0xff]
    %v291 = vld [vmem:[#allocation2 + $0x438] sm:$0xff]
    %v292 = vld [vmem:[#allocation2 + $0x440] sm:$0xff]
    %v293 = vld [vmem:[#allocation2 + $0x448] sm:$0xff]
    %v294 = vld [vmem:[#allocation2 + $0x450] sm:$0xff]
    %v295 = vld [vmem:[#allocation2 + $0x458] sm:$0xff]
    %v296 = vld [vmem:[#allocation2 + $0x460] sm:$0xff]
    %v297 = vld [vmem:[#allocation2 + $0x468] sm:$0xff]
    %v298 = vld [vmem:[#allocation2 + $0x470] sm:$0xff]
    %v299 = vld [vmem:[#allocation2 + $0x478] sm:$0xff]
    %v300 = vld [vmem:[#allocation2 + $0x480] sm:$0xff]
    %v301 = vld [vmem:[#allocation2 + $0x488] sm:$0xff]
    %v302 = vld [vmem:[#allocation2 + $0x490] sm:$0xff]
    %v303 = vld [vmem:[#allocation2 + $0x498] sm:$0xff]
    %v304 = vld [vmem:[#allocation2 + $0x4a0] sm:$0xff]
    %v305 = vld [vmem:[#allocation2 + $0x4a8] sm:$0xff]
    %v306 = vld [vmem:[#allocation2 + $0x4b0] sm:$0xff]
    %v307 = vld [vmem:[#allocation2 + $0x4b8] sm:$0xff]
    %v308 = vld [vmem:[#allocation2 + $0x4c0] sm:$0xff]
    %v309 = vld [vmem:[#allocation2 + $0x4c8] sm:$0xff]
    %v310 = vld [vmem:[#allocation2 + $0x4d0] sm:$0xff]
    %v311 = vld [vmem:[#allocation2 + $0x4d8] sm:$0xff]
    %v312 = vld [vmem:[#allocation2 + $0x4e0] sm:$0xff]
    %v313 = vld [vmem:[#allocation2 + $0x4e8] sm:$0xff]
    %v314 = vld [vmem:[#allocation2 + $0x4f0] sm:$0xff]
    %v315 = vld [vmem:[#allocation2 + $0x4f8] sm:$0xff]
    %v316 = vld [vmem:[#allocation2 + $0x500] sm:$0xff]
    %v317 = vld [vmem:[#allocation2 + $0x508] sm:$0xff]
    %v318 = vld [vmem:[#allocation2 + $0x510] sm:$0xff]
    %v319 = vld [vmem:[#allocation2 + $0x518] sm:$0xff]
    %v320 = vld [vmem:[#allocation2 + $0x520] sm:$0xff]
    %v321 = vld [vmem:[#allocation2 + $0x528] sm:$0xff]
    %v322 = vld [vmem:[#allocation2 + $0x530] sm:$0xff]
    %v323 = vld [vmem:[#allocation2 + $0x538] sm:$0xff]
    %v324 = vld [vmem:[#allocation2 + $0x540] sm:$0xff]
    %v325 = vld [vmem:[#allocation2 + $0x548] sm:$0xff]
    %v326 = vld [vmem:[#allocation2 + $0x550] sm:$0xff]
    %v327 = vld [vmem:[#allocation2 + $0x558] sm:$0xff]
    %v328 = vld [vmem:[#allocation2 + $0x560] sm:$0xff]
    %v329 = vld [vmem:[#allocation2 + $0x568] sm:$0xff]
    %v330 = vld [vmem:[#allocation2 + $0x570] sm:$0xff]
    %v331 = vld [vmem:[#allocation2 + $0x578] sm:$0xff]
    %v332 = vld [vmem:[#allocation2 + $0x580] sm:$0xff]
    %v333 = vld [vmem:[#allocation2 + $0x588] sm:$0xff]
    %v334 = vld [vmem:[#allocation2 + $0x590] sm:$0xff]
    %v335 = vld [vmem:[#allocation2 + $0x598] sm:$0xff]
    %v336 = vld [vmem:[#allocation2 + $0x5a0] sm:$0xff]
    %v337 = vld [vmem:[#allocation2 + $0x5a8] sm:$0xff]
    %v338 = vld [vmem:[#allocation2 + $0x5b0] sm:$0xff]
    %v339 = vld [vmem:[#allocation2 + $0x5b8] sm:$0xff]
    %v340 = vld [vmem:[#allocation2 + $0x5c0] sm:$0xff]
    %v341 = vld [vmem:[#allocation2 + $0x5c8] sm:$0xff]
    %v342 = vld [vmem:[#allocation2 + $0x5d0] sm:$0xff]
    %v343 = vld [vmem:[#allocation2 + $0x5d8] sm:$0xff]
    %v344 = vld [vmem:[#allocation2 + $0x5e0] sm:$0xff]
    %v345 = vld [vmem:[#allocation2 + $0x5e8] sm:$0xff]
    %v346 = vld [vmem:[#allocation2 + $0x5f0] sm:$0xff]
    %v347 = vld [vmem:[#allocation2 + $0x5f8] sm:$0xff]
    %v348 = vld [vmem:[#allocation2 + $0x600] sm:$0xff]
    %v349 = vld [vmem:[#allocation2 + $0x608] sm:$0xff]
    %v350 = vld [vmem:[#allocation2 + $0x610] sm:$0xff]
    %v351 = vld [vmem:[#allocation2 + $0x618] sm:$0xff]
    %v352 = vld [vmem:[#allocation2 + $0x620] sm:$0xff]
    %v353 = vld [vmem:[#allocation2 + $0x628] sm:$0xff]
    %v354 = vld [vmem:[#allocation2 + $0x630] sm:$0xff]
    %v355 = vld [vmem:[#allocation2 + $0x638] sm:$0xff]
    %v356 = vld [vmem:[#allocation2 + $0x640] sm:$0xff]
    %v357 = vld [vmem:[#allocation2 + $0x648] sm:$0xff]
    %v358 = vld [vmem:[#allocation2 + $0x650] sm:$0xff]
    %v359 = vld [vmem:[#allocation2 + $0x658] sm:$0xff]
    %v360 = vld [vmem:[#allocation2 + $0x660] sm:$0xff]
    %v361 = vld [vmem:[#allocation2 + $0x668] sm:$0xff]
    %v362 = vld [vmem:[#allocation2 + $0x670] sm:$0xff]
    %v363 = vld [vmem:[#allocation2 + $0x678] sm:$0xff]
    %v364 = vld [vmem:[#allocation2 + $0x680] sm:$0xff]
    %v365 = vld [vmem:[#allocation2 + $0x688] sm:$0xff]
    %v366 = vld [vmem:[#allocation2 + $0x690] sm:$0xff]
    %v367 = vld [vmem:[#allocation2 + $0x698] sm:$0xff]
    %v368 = vld [vmem:[#allocation2 + $0x6a0] sm:$0xff]
    %v369 = vld [vmem:[#allocation2 + $0x6a8] sm:$0xff]
    %v370 = vld [vmem:[#allocation2 + $0x6b0] sm:$0xff]
    %v371 = vld [vmem:[#allocation2 + $0x6b8] sm:$0xff]
    %v372 = vld [vmem:[#allocation2 + $0x6c0] sm:$0xff]
    %v373 = vld [vmem:[#allocation2 + $0x6c8] sm:$0xff]
    %v374 = vld [vmem:[#allocation2 + $0x6d0] sm:$0xff]
    %v375 = vld [vmem:[#allocation2 + $0x6d8] sm:$0xff]
    %v376 = vld [vmem:[#allocation2 + $0x6e0] sm:$0xff]
    %v377 = vld [vmem:[#allocation2 + $0x6e8] sm:$0xff]
    %v378 = vld [vmem:[#allocation2 + $0x6f0] sm:$0xff]
    %v379 = vld [vmem:[#allocation2 + $0x6f8] sm:$0xff]
    %v380 = vld [vmem:[#allocation2 + $0x700] sm:$0xff]
    %v381 = vld [vmem:[#allocation2 + $0x708] sm:$0xff]
    %v382 = vld [vmem:[#allocation2 + $0x710] sm:$0xff]
    %v383 = vld [vmem:[#allocation2 + $0x718] sm:$0xff]
    %v384 = vld [vmem:[#allocation2 + $0x720] sm:$0xff]
    %v385 = vld [vmem:[#allocation2 + $0x728] sm:$0xff]
    %v386 = vld [vmem:[#allocation2 + $0x730] sm:$0xff]
    %v387 = vld [vmem:[#allocation2 + $0x738] sm:$0xff]
    %v388 = vld [vmem:[#allocation2 + $0x740] sm:$0xff]
    %v389 = vld [vmem:[#allocation2 + $0x748] sm:$0xff]
    %v390 = vld [vmem:[#allocation2 + $0x750] sm:$0xff]
    %v391 = vld [vmem:[#allocation2 + $0x758] sm:$0xff]
    %v392 = vld [vmem:[#allocation2 + $0x760] sm:$0xff]
    %v393 = vld [vmem:[#allocation2 + $0x768] sm:$0xff]
    %v394 = vld [vmem:[#allocation2 + $0x770] sm:$0xff]
    %v395 = vld [vmem:[#allocation2 + $0x778] sm:$0xff]
    %v396 = vld [vmem:[#allocation2 + $0x780] sm:$0xff]
    %v397 = vld [vmem:[#allocation2 + $0x788] sm:$0xff]
    %v398 = vld [vmem:[#allocation2 + $0x790] sm:$0xff]
    %v399 = vld [vmem:[#allocation2 + $0x798] sm:$0xff]
    %v400 = vld [vmem:[#allocation2 + $0x7a0] sm:$0xff]
    %v401 = vld [vmem:[#allocation2 + $0x7a8] sm:$0xff]
    %v402 = vld [vmem:[#allocation2 + $0x7b0] sm:$0xff]
    %v403 = vld [vmem:[#allocation2 + $0x7b8] sm:$0xff]
    %v404 = vld [vmem:[#allocation2 + $0x7c0] sm:$0xff]
    %v405 = vld [vmem:[#allocation2 + $0x7c8] sm:$0xff]
    %v406 = vld [vmem:[#allocation2 + $0x7d0] sm:$0xff]
    %v407 = vld [vmem:[#allocation2 + $0x7d8] sm:$0xff]
    %v408 = vld [vmem:[#allocation2 + $0x7e0] sm:$0xff]
    %v409 = vld [vmem:[#allocation2 + $0x7e8] sm:$0xff]
    %v410 = vld [vmem:[#allocation2 + $0x7f0] sm:$0xff]
    %v411 = vld [vmem:[#allocation2 + $0x7f8] sm:$0xff]
    %v412 = vld [vmem:[#allocation2 + $0x800] sm:$0xff]
    %v413 = vld [vmem:[#allocation2 + $0x808] sm:$0xff]
    %v414 = vld [vmem:[#allocation2 + $0x810] sm:$0xff]
    %v415 = vld [vmem:[#allocation2 + $0x818] sm:$0xff]
    %v416 = vld [vmem:[#allocation2 + $0x820] sm:$0xff]
    %v417 = vld [vmem:[#allocation2 + $0x828] sm:$0xff]
    %v418 = vld [vmem:[#allocation2 + $0x830] sm:$0xff]
    %v419 = vld [vmem:[#allocation2 + $0x838] sm:$0xff]
    %v420 = vld [vmem:[#allocation2 + $0x840] sm:$0xff]
    %v421 = vld [vmem:[#allocation2 + $0x848] sm:$0xff]
    %v422 = vld [vmem:[#allocation2 + $0x850] sm:$0xff]
    %v423 = vld [vmem:[#allocation2 + $0x858] sm:$0xff]
    %v424 = vld [vmem:[#allocation2 + $0x860] sm:$0xff]
    %v425 = vld [vmem:[#allocation2 + $0x868] sm:$0xff]
    %v426 = vld [vmem:[#allocation2 + $0x870] sm:$0xff]
    %v427 = vld [vmem:[#allocation2 + $0x878] sm:$0xff]
    %v428 = vld [vmem:[#allocation2 + $0x880] sm:$0xff]
    %v429 = vld [vmem:[#allocation2 + $0x888] sm:$0xff]
    %v430 = vld [vmem:[#allocation2 + $0x890] sm:$0xff]
    %v431 = vld [vmem:[#allocation2 + $0x898] sm:$0xff]
    %v432 = vld [vmem:[#allocation2 + $0x8a0] sm:$0xff]
    %v433 = vld [vmem:[#allocation2 + $0x8a8] sm:$0xff]
    %v434 = vld [vmem:[#allocation2 + $0x8b0] sm:$0xff]
    %v435 = vld [vmem:[#allocation2 + $0x8b8] sm:$0xff]
    %v436 = vld [vmem:[#allocation2 + $0x8c0] sm:$0xff]
    %v437 = vld [vmem:[#allocation2 + $0x8c8] sm:$0xff]
    %v438 = vld [vmem:[#allocation2 + $0x8d0] sm:$0xff]
    %v439 = vld [vmem:[#allocation2 + $0x8d8] sm:$0xff]
    %v440 = vld [vmem:[#allocation2 + $0x8e0] sm:$0xff]
    %v441 = vld [vmem:[#allocation2 + $0x8e8] sm:$0xff]
    %v442 = vld [vmem:[#allocation2 + $0x8f0] sm:$0xff]
    %v443 = vld [vmem:[#allocation2 + $0x8f8] sm:$0xff]
    %v444 = vld [vmem:[#allocation2 + $0x900] sm:$0xff]
    %v445 = vld [vmem:[#allocation2 + $0x908] sm:$0xff]
    %v446 = vld [vmem:[#allocation2 + $0x910] sm:$0xff]
    %v447 = vld [vmem:[#allocation2 + $0x918] sm:$0xff]
    %v448 = vld [vmem:[#allocation2 + $0x920] sm:$0xff]
    %v449 = vld [vmem:[#allocation2 + $0x928] sm:$0xff]
    %v450 = vld [vmem:[#allocation2 + $0x930] sm:$0xff]
    %v451 = vld [vmem:[#allocation2 + $0x938] sm:$0xff]
    %v452 = vld [vmem:[#allocation2 + $0x940] sm:$0xff]
    %v453 = vld [vmem:[#allocation2 + $0x948] sm:$0xff]
    %v454 = vld [vmem:[#allocation2 + $0x950] sm:$0xff]
    %v455 = vld [vmem:[#allocation2 + $0x958] sm:$0xff]
    %v456 = vld [vmem:[#allocation2 + $0x960] sm:$0xff]
    %v457 = vld [vmem:[#allocation2 + $0x968] sm:$0xff]
    %v458 = vld [vmem:[#allocation2 + $0x970] sm:$0xff]
    %v459 = vld [vmem:[#allocation2 + $0x978] sm:$0xff]
    %v460 = vld [vmem:[#allocation2 + $0x980] sm:$0xff]
    %v461 = vld [vmem:[#allocation2 + $0x988] sm:$0xff]
    %v462 = vld [vmem:[#allocation2 + $0x990] sm:$0xff]
    %v463 = vld [vmem:[#allocation2 + $0x998] sm:$0xff]
    %v464 = vld [vmem:[#allocation2 + $0x9a0] sm:$0xff]
    %v465 = vld [vmem:[#allocation2 + $0x9a8] sm:$0xff]
    %v466 = vld [vmem:[#allocation2 + $0x9b0] sm:$0xff]
    %v467 = vld [vmem:[#allocation2 + $0x9b8] sm:$0xff]
    %v468 = vld [vmem:[#allocation2 + $0x9c0] sm:$0xff]
    %v469 = vld [vmem:[#allocation2 + $0x9c8] sm:$0xff]
    %v470 = vld [vmem:[#allocation2 + $0x9d0] sm:$0xff]
    %v471 = vld [vmem:[#allocation2 + $0x9d8] sm:$0xff]
    %v472 = vld [vmem:[#allocation2 + $0x9e0] sm:$0xff]
    %v473 = vld [vmem:[#allocation2 + $0x9e8] sm:$0xff]
    %v474 = vld [vmem:[#allocation2 + $0x9f0] sm:$0xff]
    %v475 = vld [vmem:[#allocation2 + $0x9f8] sm:$0xff]
    %v476 = vld [vmem:[#allocation2 + $0xa00] sm:$0xff]
    %v477 = vld [vmem:[#allocation2 + $0xa08] sm:$0xff]
    %v478 = vld [vmem:[#allocation2 + $0xa10] sm:$0xff]
    %v479 = vld [vmem:[#allocation2 + $0xa18] sm:$0xff]
    %v480 = vld [vmem:[#allocation2 + $0xa20] sm:$0xff]
    %v481 = vld [vmem:[#allocation2 + $0xa28] sm:$0xff]
    %v482 = vld [vmem:[#allocation2 + $0xa30] sm:$0xff]
    %v483 = vld [vmem:[#allocation2 + $0xa38] sm:$0xff]
    %v484 = vld [vmem:[#allocation2 + $0xa40] sm:$0xff]
    %v485 = vld [vmem:[#allocation2 + $0xa48] sm:$0xff]
    %v486 = vld [vmem:[#allocation2 + $0xa50] sm:$0xff]
    %v487 = vld [vmem:[#allocation2 + $0xa58] sm:$0xff]
    %v488 = vld [vmem:[#allocation2 + $0xa60] sm:$0xff]
    %v489 = vld [vmem:[#allocation2 + $0xa68] sm:$0xff]
    %v490 = vld [vmem:[#allocation2 + $0xa70] sm:$0xff]
    %v491 = vld [vmem:[#allocation2 + $0xa78] sm:$0xff]
    %v492 = vld [vmem:[#allocation2 + $0xa80] sm:$0xff]
    %v493 = vld [vmem:[#allocation2 + $0xa88] sm:$0xff]
    %v494 = vld [vmem:[#allocation2 + $0xa90] sm:$0xff]
    %v495 = vld [vmem:[#allocation2 + $0xa98] sm:$0xff]
    %v496 = vld [vmem:[#allocation2 + $0xaa0] sm:$0xff]
    %v497 = vld [vmem:[#allocation2 + $0xaa8] sm:$0xff]
    %v498 = vld [vmem:[#allocation2 + $0xab0] sm:$0xff]
    %v499 = vld [vmem:[#allocation2 + $0xab8] sm:$0xff]
    %v500 = vld [vmem:[#allocation2 + $0xac0] sm:$0xff]
    %v501 = vld [vmem:[#allocation2 + $0xac8] sm:$0xff]
    %v502 = vld [vmem:[#allocation2 + $0xad0] sm:$0xff]
    %v503 = vld [vmem:[#allocation2 + $0xad8] sm:$0xff]
    %v504 = vld [vmem:[#allocation2 + $0xae0] sm:$0xff]
    %v505 = vld [vmem:[#allocation2 + $0xae8] sm:$0xff]
    %v506 = vld [vmem:[#allocation2 + $0xaf0] sm:$0xff]
    %v507 = vld [vmem:[#allocation2 + $0xaf8] sm:$0xff]
    %v508 = vld [vmem:[#allocation2 + $0xb00] sm:$0xff]
    %v509 = vld [vmem:[#allocation2 + $0xb08] sm:$0xff]
    %v510 = vld [vmem:[#allocation2 + $0xb10] sm:$0xff]
    %v511 = vld [vmem:[#allocation2 + $0xb18] sm:$0xff]
    %v512 = vld [vmem:[#allocation2 + $0xb20] sm:$0xff]
    %v513 = vld [vmem:[#allocation2 + $0xb28] sm:$0xff]
    %v514 = vld [vmem:[#allocation2 + $0xb30] sm:$0xff]
    %v515 = vld [vmem:[#allocation2 + $0xb38] sm:$0xff]
    %v516 = vld [vmem:[#allocation2 + $0xb40] sm:$0xff]
    %v517 = vld [vmem:[#allocation2 + $0xb48] sm:$0xff]
    %v518 = vld [vmem:[#allocation2 + $0xb50] sm:$0xff]
    %v519 = vld [vmem:[#allocation2 + $0xb58] sm:$0xff]
    %v520 = vld [vmem:[#allocation2 + $0xb60] sm:$0xff]
    %v521 = vld [vmem:[#allocation2 + $0xb68] sm:$0xff]
    %v522 = vld [vmem:[#allocation2 + $0xb70] sm:$0xff]
    %v523 = vld [vmem:[#allocation2 + $0xb78] sm:$0xff]
    %v524 = vld [vmem:[#allocation2 + $0xb80] sm:$0xff]
    %v525 = vld [vmem:[#allocation2 + $0xb88] sm:$0xff]
    %v526 = vld [vmem:[#allocation2 + $0xb90] sm:$0xff]
    %v527 = vld [vmem:[#allocation2 + $0xb98] sm:$0xff]
    %v528 = vld [vmem:[#allocation2 + $0xba0] sm:$0xff]
    %v529 = vld [vmem:[#allocation2 + $0xba8] sm:$0xff]
    %v530 = vld [vmem:[#allocation2 + $0xbb0] sm:$0xff]
    %v531 = vld [vmem:[#allocation2 + $0xbb8] sm:$0xff]
    %v532 = vld [vmem:[#allocation2 + $0xbc0] sm:$0xff]
    %v533 = vld [vmem:[#allocation2 + $0xbc8] sm:$0xff]
    %v534 = vld [vmem:[#allocation2 + $0xbd0] sm:$0xff]
    %v535 = vld [vmem:[#allocation2 + $0xbd8] sm:$0xff]
    %v536 = vld [vmem:[#allocation2 + $0xbe0] sm:$0xff]
    %v537 = vld [vmem:[#allocation2 + $0xbe8] sm:$0xff]
    %v538 = vld [vmem:[#allocation2 + $0xbf0] sm:$0xff]
    %v539 = vld [vmem:[#allocation2 + $0xbf8] sm:$0xff]
    %v540 = vld [vmem:[#allocation2 + $0xc00] sm:$0xff]
    %v541 = vld [vmem:[#allocation2 + $0xc08] sm:$0xff]
    %v542 = vld [vmem:[#allocation2 + $0xc10] sm:$0xff]
    %v543 = vld [vmem:[#allocation2 + $0xc18] sm:$0xff]
    %v544 = vld [vmem:[#allocation2 + $0xc20] sm:$0xff]
    %v545 = vld [vmem:[#allocation2 + $0xc28] sm:$0xff]
    %v546 = vld [vmem:[#allocation2 + $0xc30] sm:$0xff]
    %v547 = vld [vmem:[#allocation2 + $0xc38] sm:$0xff]
    %v940 = vunpack.c.l.b16 %v156
    %v941 = vunpack.c.h.b16 %v156
    %v942 = vunpack.c.l.b16 %v157
    %v943 = vunpack.c.h.b16 %v157
    %v944 = vunpack.c.l.b16 %v158
    %v945 = vunpack.c.h.b16 %v158
    %v946 = vunpack.c.l.b16 %v159
    %v947 = vunpack.c.h.b16 %v159
    %v948 = vunpack.c.l.b16 %v160
    %v949 = vunpack.c.h.b16 %v160
    %v950 = vunpack.c.l.b16 %v161
    %v951 = vunpack.c.h.b16 %v161
    %v952 = vunpack.c.l.b16 %v162
    %v953 = vunpack.c.h.b16 %v162
    %v954 = vunpack.c.l.b16 %v163
    %v955 = vunpack.c.h.b16 %v163
    %v956 = vunpack.c.l.b16 %v164
    %v957 = vunpack.c.h.b16 %v164
    %v958 = vunpack.c.l.b16 %v165
    %v959 = vunpack.c.h.b16 %v165
    %v960 = vunpack.c.l.b16 %v166
    %v961 = vunpack.c.h.b16 %v166
    %v962 = vunpack.c.l.b16 %v167
    %v963 = vunpack.c.h.b16 %v167
    %v964 = vunpack.c.l.b16 %v168
    %v965 = vunpack.c.h.b16 %v168
    %v966 = vunpack.c.l.b16 %v169
    %v967 = vunpack.c.h.b16 %v169
    %v968 = vunpack.c.l.b16 %v170
    %v969 = vunpack.c.h.b16 %v170
    %v970 = vunpack.c.l.b16 %v171
    %v971 = vunpack.c.h.b16 %v171
    %v972 = vunpack.c.l.b16 %v172
    %v973 = vunpack.c.h.b16 %v172
    %v974 = vunpack.c.l.b16 %v173
    %v975 = vunpack.c.h.b16 %v173
    %v976 = vunpack.c.l.b16 %v174
    %v977 = vunpack.c.h.b16 %v174
    %v978 = vunpack.c.l.b16 %v175
    %v979 = vunpack.c.h.b16 %v175
    %v980 = vunpack.c.l.b16 %v176
    %v981 = vunpack.c.h.b16 %v176
    %v982 = vunpack.c.l.b16 %v177
    %v983 = vunpack.c.h.b16 %v177
    %v984 = vunpack.c.l.b16 %v178
    %v985 = vunpack.c.h.b16 %v178
    %v986 = vunpack.c.l.b16 %v179
    %v987 = vunpack.c.h.b16 %v179
    %v988 = vunpack.c.l.b16 %v180
    %v989 = vunpack.c.h.b16 %v180
    %v990 = vunpack.c.l.b16 %v181
    %v991 = vunpack.c.h.b16 %v181
    %v992 = vunpack.c.l.b16 %v182
    %v993 = vunpack.c.h.b16 %v182
    %v994 = vunpack.c.l.b16 %v183
    %v995 = vunpack.c.h.b16 %v183
    %v996 = vunpack.c.l.b16 %v184
    %v997 = vunpack.c.h.b16 %v184
    %v998 = vunpack.c.l.b16 %v185
    %v999 = vunpack.c.h.b16 %v185
    %v1000 = vunpack.c.l.b16 %v186
    %v1001 = vunpack.c.h.b16 %v186
    %v1002 = vunpack.c.l.b16 %v187
    %v1003 = vunpack.c.h.b16 %v187
    %v1004 = vunpack.c.l.b16 %v188
    %v1005 = vunpack.c.h.b16 %v188
    %v1006 = vunpack.c.l.b16 %v189
    %v1007 = vunpack.c.h.b16 %v189
    %v1008 = vunpack.c.l.b16 %v190
    %v1009 = vunpack.c.h.b16 %v190
    %v1010 = vunpack.c.l.b16 %v191
    %v1011 = vunpack.c.h.b16 %v191
    %v1012 = vunpack.c.l.b16 %v192
    %v1013 = vunpack.c.h.b16 %v192
    %v1014 = vunpack.c.l.b16 %v193
    %v1015 = vunpack.c.h.b16 %v193
    %v1016 = vunpack.c.l.b16 %v194
    %v1017 = vunpack.c.h.b16 %v194
    %v1018 = vunpack.c.l.b16 %v195
    %v1019 = vunpack.c.h.b16 %v195
    %v1020 = vunpack.c.l.b16 %v196
    %v1021 = vunpack.c.h.b16 %v196
    %v1022 = vunpack.c.l.b16 %v197
    %v1023 = vunpack.c.h.b16 %v197
    %v1024 = vunpack.c.l.b16 %v198
    %v1025 = vunpack.c.h.b16 %v198
    %v1026 = vunpack.c.l.b16 %v199
    %v1027 = vunpack.c.h.b16 %v199
    %v1028 = vunpack.c.l.b16 %v200
    %v1029 = vunpack.c.h.b16 %v200
    %v1030 = vunpack.c.l.b16 %v201
    %v1031 = vunpack.c.h.b16 %v201
    %v1032 = vunpack.c.l.b16 %v202
    %v1033 = vunpack.c.h.b16 %v202
    %v1034 = vunpack.c.l.b16 %v203
    %v1035 = vunpack.c.h.b16 %v203
    %v1036 = vunpack.c.l.b16 %v204
    %v1037 = vunpack.c.h.b16 %v204
    %v1038 = vunpack.c.l.b16 %v205
    %v1039 = vunpack.c.h.b16 %v205
    %v1040 = vunpack.c.l.b16 %v206
    %v1041 = vunpack.c.h.b16 %v206
    %v1042 = vunpack.c.l.b16 %v207
    %v1043 = vunpack.c.h.b16 %v207
    %v1044 = vunpack.c.l.b16 %v208
    %v1045 = vunpack.c.h.b16 %v208
    %v1046 = vunpack.c.l.b16 %v209
    %v1047 = vunpack.c.h.b16 %v209
    %v1048 = vunpack.c.l.b16 %v210
    %v1049 = vunpack.c.h.b16 %v210
    %v1050 = vunpack.c.l.b16 %v211
    %v1051 = vunpack.c.h.b16 %v211
    %v1052 = vunpack.c.l.b16 %v212
    %v1053 = vunpack.c.h.b16 %v212
    %v1054 = vunpack.c.l.b16 %v213
    %v1055 = vunpack.c.h.b16 %v213
    %v1056 = vunpack.c.l.b16 %v214
    %v1057 = vunpack.c.h.b16 %v214
    %v1058 = vunpack.c.l.b16 %v215
    %v1059 = vunpack.c.h.b16 %v215
    %v1060 = vunpack.c.l.b16 %v216
    %v1061 = vunpack.c.h.b16 %v216
    %v1062 = vunpack.c.l.b16 %v217
    %v1063 = vunpack.c.h.b16 %v217
    %v1064 = vunpack.c.l.b16 %v218
    %v1065 = vunpack.c.h.b16 %v218
    %v1066 = vunpack.c.l.b16 %v219
    %v1067 = vunpack.c.h.b16 %v219
    %v1068 = vunpack.c.l.b16 %v220
    %v1069 = vunpack.c.h.b16 %v220
    %v1070 = vunpack.c.l.b16 %v221
    %v1071 = vunpack.c.h.b16 %v221
    %v1072 = vunpack.c.l.b16 %v222
    %v1073 = vunpack.c.h.b16 %v222
    %v1074 = vunpack.c.l.b16 %v223
    %v1075 = vunpack.c.h.b16 %v223
    %v1076 = vunpack.c.l.b16 %v224
    %v1077 = vunpack.c.h.b16 %v224
    %v1078 = vunpack.c.l.b16 %v225
    %v1079 = vunpack.c.h.b16 %v225
    %v1080 = vunpack.c.l.b16 %v226
    %v1081 = vunpack.c.h.b16 %v226
    %v1082 = vunpack.c.l.b16 %v227
    %v1083 = vunpack.c.h.b16 %v227
    %v1084 = vunpack.c.l.b16 %v228
    %v1085 = vunpack.c.h.b16 %v228
    %v1086 = vunpack.c.l.b16 %v229
    %v1087 = vunpack.c.h.b16 %v229
    %v1088 = vunpack.c.l.b16 %v230
    %v1089 = vunpack.c.h.b16 %v230
    %v1090 = vunpack.c.l.b16 %v231
    %v1091 = vunpack.c.h.b16 %v231
    %v1092 = vunpack.c.l.b16 %v232
    %v1093 = vunpack.c.h.b16 %v232
    %v1094 = vunpack.c.l.b16 %v233
    %v1095 = vunpack.c.h.b16 %v233
    %v1096 = vunpack.c.l.b16 %v234
    %v1097 = vunpack.c.h.b16 %v234
    %v1098 = vunpack.c.l.b16 %v235
    %v1099 = vunpack.c.h.b16 %v235
    %v1100 = vunpack.c.l.b16 %v236
    %v1101 = vunpack.c.h.b16 %v236
    %v1102 = vunpack.c.l.b16 %v237
    %v1103 = vunpack.c.h.b16 %v237
    %v1104 = vunpack.c.l.b16 %v238
    %v1105 = vunpack.c.h.b16 %v238
    %v1106 = vunpack.c.l.b16 %v239
    %v1107 = vunpack.c.h.b16 %v239
    %v1108 = vunpack.c.l.b16 %v240
    %v1109 = vunpack.c.h.b16 %v240
    %v1110 = vunpack.c.l.b16 %v241
    %v1111 = vunpack.c.h.b16 %v241
    %v1112 = vunpack.c.l.b16 %v242
    %v1113 = vunpack.c.h.b16 %v242
    %v1114 = vunpack.c.l.b16 %v243
    %v1115 = vunpack.c.h.b16 %v243
    %v1116 = vunpack.c.l.b16 %v244
    %v1117 = vunpack.c.h.b16 %v244
    %v1118 = vunpack.c.l.b16 %v245
    %v1119 = vunpack.c.h.b16 %v245
    %v1120 = vunpack.c.l.b16 %v246
    %v1121 = vunpack.c.h.b16 %v246
    %v1122 = vunpack.c.l.b16 %v247
    %v1123 = vunpack.c.h.b16 %v247
    %v1124 = vunpack.c.l.b16 %v248
    %v1125 = vunpack.c.h.b16 %v248
    %v1126 = vunpack.c.l.b16 %v249
    %v1127 = vunpack.c.h.b16 %v249
    %v1128 = vunpack.c.l.b16 %v250
    %v1129 = vunpack.c.h.b16 %v250
    %v1130 = vunpack.c.l.b16 %v251
    %v1131 = vunpack.c.h.b16 %v251
    %v1132 = vunpack.c.l.b16 %v252
    %v1133 = vunpack.c.h.b16 %v252
    %v1134 = vunpack.c.l.b16 %v253
    %v1135 = vunpack.c.h.b16 %v253
    %v1136 = vunpack.c.l.b16 %v254
    %v1137 = vunpack.c.h.b16 %v254
    %v1138 = vunpack.c.l.b16 %v255
    %v1139 = vunpack.c.h.b16 %v255
    %v1140 = vunpack.c.l.b16 %v256
    %v1141 = vunpack.c.h.b16 %v256
    %v1142 = vunpack.c.l.b16 %v257
    %v1143 = vunpack.c.h.b16 %v257
    %v1144 = vunpack.c.l.b16 %v258
    %v1145 = vunpack.c.h.b16 %v258
    %v1146 = vunpack.c.l.b16 %v259
    %v1147 = vunpack.c.h.b16 %v259
    %v1148 = vunpack.c.l.b16 %v260
    %v1149 = vunpack.c.h.b16 %v260
    %v1150 = vunpack.c.l.b16 %v261
    %v1151 = vunpack.c.h.b16 %v261
    %v1152 = vunpack.c.l.b16 %v262
    %v1153 = vunpack.c.h.b16 %v262
    %v1154 = vunpack.c.l.b16 %v263
    %v1155 = vunpack.c.h.b16 %v263
    %v1156 = vunpack.c.l.b16 %v264
    %v1157 = vunpack.c.h.b16 %v264
    %v1158 = vunpack.c.l.b16 %v265
    %v1159 = vunpack.c.h.b16 %v265
    %v1160 = vunpack.c.l.b16 %v266
    %v1161 = vunpack.c.h.b16 %v266
    %v1162 = vunpack.c.l.b16 %v267
    %v1163 = vunpack.c.h.b16 %v267
    %v1164 = vunpack.c.l.b16 %v268
    %v1165 = vunpack.c.h.b16 %v268
    %v1166 = vunpack.c.l.b16 %v269
    %v1167 = vunpack.c.h.b16 %v269
    %v1168 = vunpack.c.l.b16 %v270
    %v1169 = vunpack.c.h.b16 %v270
    %v1170 = vunpack.c.l.b16 %v271
    %v1171 = vunpack.c.h.b16 %v271
    %v1172 = vunpack.c.l.b16 %v272
    %v1173 = vunpack.c.h.b16 %v272
    %v1174 = vunpack.c.l.b16 %v273
    %v1175 = vunpack.c.h.b16 %v273
    %v1176 = vunpack.c.l.b16 %v274
    %v1177 = vunpack.c.h.b16 %v274
    %v1178 = vunpack.c.l.b16 %v275
    %v1179 = vunpack.c.h.b16 %v275
    %v1180 = vunpack.c.l.b16 %v276
    %v1181 = vunpack.c.h.b16 %v276
    %v1182 = vunpack.c.l.b16 %v277
    %v1183 = vunpack.c.h.b16 %v277
    %v1184 = vunpack.c.l.b16 %v278
    %v1185 = vunpack.c.h.b16 %v278
    %v1186 = vunpack.c.l.b16 %v279
    %v1187 = vunpack.c.h.b16 %v279
    %v1188 = vunpack.c.l.b16 %v280
    %v1189 = vunpack.c.h.b16 %v280
    %v1190 = vunpack.c.l.b16 %v281
    %v1191 = vunpack.c.h.b16 %v281
    %v1192 = vunpack.c.l.b16 %v282
    %v1193 = vunpack.c.h.b16 %v282
    %v1194 = vunpack.c.l.b16 %v283
    %v1195 = vunpack.c.h.b16 %v283
    %v1196 = vunpack.c.l.b16 %v284
    %v1197 = vunpack.c.h.b16 %v284
    %v1198 = vunpack.c.l.b16 %v285
    %v1199 = vunpack.c.h.b16 %v285
    %v1200 = vunpack.c.l.b16 %v286
    %v1201 = vunpack.c.h.b16 %v286
    %v1202 = vunpack.c.l.b16 %v287
    %v1203 = vunpack.c.h.b16 %v287
    %v1204 = vunpack.c.l.b16 %v288
    %v1205 = vunpack.c.h.b16 %v288
    %v1206 = vunpack.c.l.b16 %v289
    %v1207 = vunpack.c.h.b16 %v289
    %v1208 = vunpack.c.l.b16 %v290
    %v1209 = vunpack.c.h.b16 %v290
    %v1210 = vunpack.c.l.b16 %v291
    %v1211 = vunpack.c.h.b16 %v291
    %v1212 = vunpack.c.l.b16 %v292
    %v1213 = vunpack.c.h.b16 %v292
    %v1214 = vunpack.c.l.b16 %v293
    %v1215 = vunpack.c.h.b16 %v293
    %v1216 = vunpack.c.l.b16 %v294
    %v1217 = vunpack.c.h.b16 %v294
    %v1218 = vunpack.c.l.b16 %v295
    %v1219 = vunpack.c.h.b16 %v295
    %v1220 = vunpack.c.l.b16 %v296
    %v1221 = vunpack.c.h.b16 %v296
    %v1222 = vunpack.c.l.b16 %v297
    %v1223 = vunpack.c.h.b16 %v297
    %v1224 = vunpack.c.l.b16 %v298
    %v1225 = vunpack.c.h.b16 %v298
    %v1226 = vunpack.c.l.b16 %v299
    %v1227 = vunpack.c.h.b16 %v299
    %v1228 = vunpack.c.l.b16 %v300
    %v1229 = vunpack.c.h.b16 %v300
    %v1230 = vunpack.c.l.b16 %v301
    %v1231 = vunpack.c.h.b16 %v301
    %v1232 = vunpack.c.l.b16 %v302
    %v1233 = vunpack.c.h.b16 %v302
    %v1234 = vunpack.c.l.b16 %v303
    %v1235 = vunpack.c.h.b16 %v303
    %v1236 = vunpack.c.l.b16 %v304
    %v1237 = vunpack.c.h.b16 %v304
    %v1238 = vunpack.c.l.b16 %v305
    %v1239 = vunpack.c.h.b16 %v305
    %v1240 = vunpack.c.l.b16 %v306
    %v1241 = vunpack.c.h.b16 %v306
    %v1242 = vunpack.c.l.b16 %v307
    %v1243 = vunpack.c.h.b16 %v307
    %v1244 = vunpack.c.l.b16 %v308
    %v1245 = vunpack.c.h.b16 %v308
    %v1246 = vunpack.c.l.b16 %v309
    %v1247 = vunpack.c.h.b16 %v309
    %v1248 = vunpack.c.l.b16 %v310
    %v1249 = vunpack.c.h.b16 %v310
    %v1250 = vunpack.c.l.b16 %v311
    %v1251 = vunpack.c.h.b16 %v311
    %v1252 = vunpack.c.l.b16 %v312
    %v1253 = vunpack.c.h.b16 %v312
    %v1254 = vunpack.c.l.b16 %v313
    %v1255 = vunpack.c.h.b16 %v313
    %v1256 = vunpack.c.l.b16 %v314
    %v1257 = vunpack.c.h.b16 %v314
    %v1258 = vunpack.c.l.b16 %v315
    %v1259 = vunpack.c.h.b16 %v315
    %v1260 = vunpack.c.l.b16 %v316
    %v1261 = vunpack.c.h.b16 %v316
    %v1262 = vunpack.c.l.b16 %v317
    %v1263 = vunpack.c.h.b16 %v317
    %v1264 = vunpack.c.l.b16 %v318
    %v1265 = vunpack.c.h.b16 %v318
    %v1266 = vunpack.c.l.b16 %v319
    %v1267 = vunpack.c.h.b16 %v319
    %v1268 = vunpack.c.l.b16 %v320
    %v1269 = vunpack.c.h.b16 %v320
    %v1270 = vunpack.c.l.b16 %v321
    %v1271 = vunpack.c.h.b16 %v321
    %v1272 = vunpack.c.l.b16 %v322
    %v1273 = vunpack.c.h.b16 %v322
    %v1274 = vunpack.c.l.b16 %v323
    %v1275 = vunpack.c.h.b16 %v323
    %v1276 = vunpack.c.l.b16 %v324
    %v1277 = vunpack.c.h.b16 %v324
    %v1278 = vunpack.c.l.b16 %v325
    %v1279 = vunpack.c.h.b16 %v325
    %v1280 = vunpack.c.l.b16 %v326
    %v1281 = vunpack.c.h.b16 %v326
    %v1282 = vunpack.c.l.b16 %v327
    %v1283 = vunpack.c.h.b16 %v327
    %v1284 = vunpack.c.l.b16 %v328
    %v1285 = vunpack.c.h.b16 %v328
    %v1286 = vunpack.c.l.b16 %v329
    %v1287 = vunpack.c.h.b16 %v329
    %v1288 = vunpack.c.l.b16 %v330
    %v1289 = vunpack.c.h.b16 %v330
    %v1290 = vunpack.c.l.b16 %v331
    %v1291 = vunpack.c.h.b16 %v331
    %v1292 = vunpack.c.l.b16 %v332
    %v1293 = vunpack.c.h.b16 %v332
    %v1294 = vunpack.c.l.b16 %v333
    %v1295 = vunpack.c.h.b16 %v333
    %v1296 = vunpack.c.l.b16 %v334
    %v1297 = vunpack.c.h.b16 %v334
    %v1298 = vunpack.c.l.b16 %v335
    %v1299 = vunpack.c.h.b16 %v335
    %v1300 = vunpack.c.l.b16 %v336
    %v1301 = vunpack.c.h.b16 %v336
    %v1302 = vunpack.c.l.b16 %v337
    %v1303 = vunpack.c.h.b16 %v337
    %v1304 = vunpack.c.l.b16 %v338
    %v1305 = vunpack.c.h.b16 %v338
    %v1306 = vunpack.c.l.b16 %v339
    %v1307 = vunpack.c.h.b16 %v339
    %v1308 = vunpack.c.l.b16 %v340
    %v1309 = vunpack.c.h.b16 %v340
    %v1310 = vunpack.c.l.b16 %v341
    %v1311 = vunpack.c.h.b16 %v341
    %v1312 = vunpack.c.l.b16 %v342
    %v1313 = vunpack.c.h.b16 %v342
    %v1314 = vunpack.c.l.b16 %v343
    %v1315 = vunpack.c.h.b16 %v343
    %v1316 = vunpack.c.l.b16 %v344
    %v1317 = vunpack.c.h.b16 %v344
    %v1318 = vunpack.c.l.b16 %v345
    %v1319 = vunpack.c.h.b16 %v345
    %v1320 = vunpack.c.l.b16 %v346
    %v1321 = vunpack.c.h.b16 %v346
    %v1322 = vunpack.c.l.b16 %v347
    %v1323 = vunpack.c.h.b16 %v347
    %v1324 = vunpack.c.l.b16 %v348
    %v1325 = vunpack.c.h.b16 %v348
    %v1326 = vunpack.c.l.b16 %v349
    %v1327 = vunpack.c.h.b16 %v349
    %v1328 = vunpack.c.l.b16 %v350
    %v1329 = vunpack.c.h.b16 %v350
    %v1330 = vunpack.c.l.b16 %v351
    %v1331 = vunpack.c.h.b16 %v351
    %v1332 = vunpack.c.l.b16 %v352
    %v1333 = vunpack.c.h.b16 %v352
    %v1334 = vunpack.c.l.b16 %v353
    %v1335 = vunpack.c.h.b16 %v353
    %v1336 = vunpack.c.l.b16 %v354
    %v1337 = vunpack.c.h.b16 %v354
    %v1338 = vunpack.c.l.b16 %v355
    %v1339 = vunpack.c.h.b16 %v355
    %v1340 = vunpack.c.l.b16 %v356
    %v1341 = vunpack.c.h.b16 %v356
    %v1342 = vunpack.c.l.b16 %v357
    %v1343 = vunpack.c.h.b16 %v357
    %v1344 = vunpack.c.l.b16 %v358
    %v1345 = vunpack.c.h.b16 %v358
    %v1346 = vunpack.c.l.b16 %v359
    %v1347 = vunpack.c.h.b16 %v359
    %v1348 = vunpack.c.l.b16 %v360
    %v1349 = vunpack.c.h.b16 %v360
    %v1350 = vunpack.c.l.b16 %v361
    %v1351 = vunpack.c.h.b16 %v361
    %v1352 = vunpack.c.l.b16 %v362
    %v1353 = vunpack.c.h.b16 %v362
    %v1354 = vunpack.c.l.b16 %v363
    %v1355 = vunpack.c.h.b16 %v363
    %v1356 = vunpack.c.l.b16 %v364
    %v1357 = vunpack.c.h.b16 %v364
    %v1358 = vunpack.c.l.b16 %v365
    %v1359 = vunpack.c.h.b16 %v365
    %v1360 = vunpack.c.l.b16 %v366
    %v1361 = vunpack.c.h.b16 %v366
    %v1362 = vunpack.c.l.b16 %v367
    %v1363 = vunpack.c.h.b16 %v367
    %v1364 = vunpack.c.l.b16 %v368
    %v1365 = vunpack.c.h.b16 %v368
    %v1366 = vunpack.c.l.b16 %v369
    %v1367 = vunpack.c.h.b16 %v369
    %v1368 = vunpack.c.l.b16 %v370
    %v1369 = vunpack.c.h.b16 %v370
    %v1370 = vunpack.c.l.b16 %v371
    %v1371 = vunpack.c.h.b16 %v371
    %v1372 = vunpack.c.l.b16 %v372
    %v1373 = vunpack.c.h.b16 %v372
    %v1374 = vunpack.c.l.b16 %v373
    %v1375 = vunpack.c.h.b16 %v373
    %v1376 = vunpack.c.l.b16 %v374
    %v1377 = vunpack.c.h.b16 %v374
    %v1378 = vunpack.c.l.b16 %v375
    %v1379 = vunpack.c.h.b16 %v375
    %v1380 = vunpack.c.l.b16 %v376
    %v1381 = vunpack.c.h.b16 %v376
    %v1382 = vunpack.c.l.b16 %v377
    %v1383 = vunpack.c.h.b16 %v377
    %v1384 = vunpack.c.l.b16 %v378
    %v1385 = vunpack.c.h.b16 %v378
    %v1386 = vunpack.c.l.b16 %v379
    %v1387 = vunpack.c.h.b16 %v379
    %v1388 = vunpack.c.l.b16 %v380
    %v1389 = vunpack.c.h.b16 %v380
    %v1390 = vunpack.c.l.b16 %v381
    %v1391 = vunpack.c.h.b16 %v381
    %v1392 = vunpack.c.l.b16 %v382
    %v1393 = vunpack.c.h.b16 %v382
    %v1394 = vunpack.c.l.b16 %v383
    %v1395 = vunpack.c.h.b16 %v383
    %v1396 = vunpack.c.l.b16 %v384
    %v1397 = vunpack.c.h.b16 %v384
    %v1398 = vunpack.c.l.b16 %v385
    %v1399 = vunpack.c.h.b16 %v385
    %v1400 = vunpack.c.l.b16 %v386
    %v1401 = vunpack.c.h.b16 %v386
    %v1402 = vunpack.c.l.b16 %v387
    %v1403 = vunpack.c.h.b16 %v387
    %v1404 = vunpack.c.l.b16 %v388
    %v1405 = vunpack.c.h.b16 %v388
    %v1406 = vunpack.c.l.b16 %v389
    %v1407 = vunpack.c.h.b16 %v389
    %v1408 = vunpack.c.l.b16 %v390
    %v1409 = vunpack.c.h.b16 %v390
    %v1410 = vunpack.c.l.b16 %v391
    %v1411 = vunpack.c.h.b16 %v391
    %v1412 = vunpack.c.l.b16 %v392
    %v1413 = vunpack.c.h.b16 %v392
    %v1414 = vunpack.c.l.b16 %v393
    %v1415 = vunpack.c.h.b16 %v393
    %v1416 = vunpack.c.l.b16 %v394
    %v1417 = vunpack.c.h.b16 %v394
    %v1418 = vunpack.c.l.b16 %v395
    %v1419 = vunpack.c.h.b16 %v395
    %v1420 = vunpack.c.l.b16 %v396
    %v1421 = vunpack.c.h.b16 %v396
    %v1422 = vunpack.c.l.b16 %v397
    %v1423 = vunpack.c.h.b16 %v397
    %v1424 = vunpack.c.l.b16 %v398
    %v1425 = vunpack.c.h.b16 %v398
    %v1426 = vunpack.c.l.b16 %v399
    %v1427 = vunpack.c.h.b16 %v399
    %v1428 = vunpack.c.l.b16 %v400
    %v1429 = vunpack.c.h.b16 %v400
    %v1430 = vunpack.c.l.b16 %v401
    %v1431 = vunpack.c.h.b16 %v401
    %v1432 = vunpack.c.l.b16 %v402
    %v1433 = vunpack.c.h.b16 %v402
    %v1434 = vunpack.c.l.b16 %v403
    %v1435 = vunpack.c.h.b16 %v403
    %v1436 = vunpack.c.l.b16 %v404
    %v1437 = vunpack.c.h.b16 %v404
    %v1438 = vunpack.c.l.b16 %v405
    %v1439 = vunpack.c.h.b16 %v405
    %v1440 = vunpack.c.l.b16 %v406
    %v1441 = vunpack.c.h.b16 %v406
    %v1442 = vunpack.c.l.b16 %v407
    %v1443 = vunpack.c.h.b16 %v407
    %v1444 = vunpack.c.l.b16 %v408
    %v1445 = vunpack.c.h.b16 %v408
    %v1446 = vunpack.c.l.b16 %v409
    %v1447 = vunpack.c.h.b16 %v409
    %v1448 = vunpack.c.l.b16 %v410
    %v1449 = vunpack.c.h.b16 %v410
    %v1450 = vunpack.c.l.b16 %v411
    %v1451 = vunpack.c.h.b16 %v411
    %v1452 = vunpack.c.l.b16 %v412
    %v1453 = vunpack.c.h.b16 %v412
    %v1454 = vunpack.c.l.b16 %v413
    %v1455 = vunpack.c.h.b16 %v413
    %v1456 = vunpack.c.l.b16 %v414
    %v1457 = vunpack.c.h.b16 %v414
    %v1458 = vunpack.c.l.b16 %v415
    %v1459 = vunpack.c.h.b16 %v415
    %v1460 = vunpack.c.l.b16 %v416
    %v1461 = vunpack.c.h.b16 %v416
    %v1462 = vunpack.c.l.b16 %v417
    %v1463 = vunpack.c.h.b16 %v417
    %v1464 = vunpack.c.l.b16 %v418
    %v1465 = vunpack.c.h.b16 %v418
    %v1466 = vunpack.c.l.b16 %v419
    %v1467 = vunpack.c.h.b16 %v419
    %v1468 = vunpack.c.l.b16 %v420
    %v1469 = vunpack.c.h.b16 %v420
    %v1470 = vunpack.c.l.b16 %v421
    %v1471 = vunpack.c.h.b16 %v421
    %v1472 = vunpack.c.l.b16 %v422
    %v1473 = vunpack.c.h.b16 %v422
    %v1474 = vunpack.c.l.b16 %v423
    %v1475 = vunpack.c.h.b16 %v423
    %v1476 = vunpack.c.l.b16 %v424
    %v1477 = vunpack.c.h.b16 %v424
    %v1478 = vunpack.c.l.b16 %v425
    %v1479 = vunpack.c.h.b16 %v425
    %v1480 = vunpack.c.l.b16 %v426
    %v1481 = vunpack.c.h.b16 %v426
    %v1482 = vunpack.c.l.b16 %v427
    %v1483 = vunpack.c.h.b16 %v427
    %v1484 = vunpack.c.l.b16 %v428
    %v1485 = vunpack.c.h.b16 %v428
    %v1486 = vunpack.c.l.b16 %v429
    %v1487 = vunpack.c.h.b16 %v429
    %v1488 = vunpack.c.l.b16 %v430
    %v1489 = vunpack.c.h.b16 %v430
    %v1490 = vunpack.c.l.b16 %v431
    %v1491 = vunpack.c.h.b16 %v431
    %v1492 = vunpack.c.l.b16 %v432
    %v1493 = vunpack.c.h.b16 %v432
    %v1494 = vunpack.c.l.b16 %v433
    %v1495 = vunpack.c.h.b16 %v433
    %v1496 = vunpack.c.l.b16 %v434
    %v1497 = vunpack.c.h.b16 %v434
    %v1498 = vunpack.c.l.b16 %v435
    %v1499 = vunpack.c.h.b16 %v435
    %v1500 = vunpack.c.l.b16 %v436
    %v1501 = vunpack.c.h.b16 %v436
    %v1502 = vunpack.c.l.b16 %v437
    %v1503 = vunpack.c.h.b16 %v437
    %v1504 = vunpack.c.l.b16 %v438
    %v1505 = vunpack.c.h.b16 %v438
    %v1506 = vunpack.c.l.b16 %v439
    %v1507 = vunpack.c.h.b16 %v439
    %v1508 = vunpack.c.l.b16 %v440
    %v1509 = vunpack.c.h.b16 %v440
    %v1510 = vunpack.c.l.b16 %v441
    %v1511 = vunpack.c.h.b16 %v441
    %v1512 = vunpack.c.l.b16 %v442
    %v1513 = vunpack.c.h.b16 %v442
    %v1514 = vunpack.c.l.b16 %v443
    %v1515 = vunpack.c.h.b16 %v443
    %v1516 = vunpack.c.l.b16 %v444
    %v1517 = vunpack.c.h.b16 %v444
    %v1518 = vunpack.c.l.b16 %v445
    %v1519 = vunpack.c.h.b16 %v445
    %v1520 = vunpack.c.l.b16 %v446
    %v1521 = vunpack.c.h.b16 %v446
    %v1522 = vunpack.c.l.b16 %v447
    %v1523 = vunpack.c.h.b16 %v447
    %v1524 = vunpack.c.l.b16 %v448
    %v1525 = vunpack.c.h.b16 %v448
    %v1526 = vunpack.c.l.b16 %v449
    %v1527 = vunpack.c.h.b16 %v449
    %v1528 = vunpack.c.l.b16 %v450
    %v1529 = vunpack.c.h.b16 %v450
    %v1530 = vunpack.c.l.b16 %v451
    %v1531 = vunpack.c.h.b16 %v451
    %v1532 = vunpack.c.l.b16 %v452
    %v1533 = vunpack.c.h.b16 %v452
    %v1534 = vunpack.c.l.b16 %v453
    %v1535 = vunpack.c.h.b16 %v453
    %v1536 = vunpack.c.l.b16 %v454
    %v1537 = vunpack.c.h.b16 %v454
    %v1538 = vunpack.c.l.b16 %v455
    %v1539 = vunpack.c.h.b16 %v455
    %v1540 = vunpack.c.l.b16 %v456
    %v1541 = vunpack.c.h.b16 %v456
    %v1542 = vunpack.c.l.b16 %v457
    %v1543 = vunpack.c.h.b16 %v457
    %v1544 = vunpack.c.l.b16 %v458
    %v1545 = vunpack.c.h.b16 %v458
    %v1546 = vunpack.c.l.b16 %v459
    %v1547 = vunpack.c.h.b16 %v459
    %v1548 = vunpack.c.l.b16 %v460
    %v1549 = vunpack.c.h.b16 %v460
    %v1550 = vunpack.c.l.b16 %v461
    %v1551 = vunpack.c.h.b16 %v461
    %v1552 = vunpack.c.l.b16 %v462
    %v1553 = vunpack.c.h.b16 %v462
    %v1554 = vunpack.c.l.b16 %v463
    %v1555 = vunpack.c.h.b16 %v463
    %v1556 = vunpack.c.l.b16 %v464
    %v1557 = vunpack.c.h.b16 %v464
    %v1558 = vunpack.c.l.b16 %v465
    %v1559 = vunpack.c.h.b16 %v465
    %v1560 = vunpack.c.l.b16 %v466
    %v1561 = vunpack.c.h.b16 %v466
    %v1562 = vunpack.c.l.b16 %v467
    %v1563 = vunpack.c.h.b16 %v467
    %v1564 = vunpack.c.l.b16 %v468
    %v1565 = vunpack.c.h.b16 %v468
    %v1566 = vunpack.c.l.b16 %v469
    %v1567 = vunpack.c.h.b16 %v469
    %v1568 = vunpack.c.l.b16 %v470
    %v1569 = vunpack.c.h.b16 %v470
    %v1570 = vunpack.c.l.b16 %v471
    %v1571 = vunpack.c.h.b16 %v471
    %v1572 = vunpack.c.l.b16 %v472
    %v1573 = vunpack.c.h.b16 %v472
    %v1574 = vunpack.c.l.b16 %v473
    %v1575 = vunpack.c.h.b16 %v473
    %v1576 = vunpack.c.l.b16 %v474
    %v1577 = vunpack.c.h.b16 %v474
    %v1578 = vunpack.c.l.b16 %v475
    %v1579 = vunpack.c.h.b16 %v475
    %v1580 = vunpack.c.l.b16 %v476
    %v1581 = vunpack.c.h.b16 %v476
    %v1582 = vunpack.c.l.b16 %v477
    %v1583 = vunpack.c.h.b16 %v477
    %v1584 = vunpack.c.l.b16 %v478
    %v1585 = vunpack.c.h.b16 %v478
    %v1586 = vunpack.c.l.b16 %v479
    %v1587 = vunpack.c.h.b16 %v479
    %v1588 = vunpack.c.l.b16 %v480
    %v1589 = vunpack.c.h.b16 %v480
    %v1590 = vunpack.c.l.b16 %v481
    %v1591 = vunpack.c.h.b16 %v481
    %v1592 = vunpack.c.l.b16 %v482
    %v1593 = vunpack.c.h.b16 %v482
    %v1594 = vunpack.c.l.b16 %v483
    %v1595 = vunpack.c.h.b16 %v483
    %v1596 = vunpack.c.l.b16 %v484
    %v1597 = vunpack.c.h.b16 %v484
    %v1598 = vunpack.c.l.b16 %v485
    %v1599 = vunpack.c.h.b16 %v485
    %v1600 = vunpack.c.l.b16 %v486
    %v1601 = vunpack.c.h.b16 %v486
    %v1602 = vunpack.c.l.b16 %v487
    %v1603 = vunpack.c.h.b16 %v487
    %v1604 = vunpack.c.l.b16 %v488
    %v1605 = vunpack.c.h.b16 %v488
    %v1606 = vunpack.c.l.b16 %v489
    %v1607 = vunpack.c.h.b16 %v489
    %v1608 = vunpack.c.l.b16 %v490
    %v1609 = vunpack.c.h.b16 %v490
    %v1610 = vunpack.c.l.b16 %v491
    %v1611 = vunpack.c.h.b16 %v491
    %v1612 = vunpack.c.l.b16 %v492
    %v1613 = vunpack.c.h.b16 %v492
    %v1614 = vunpack.c.l.b16 %v493
    %v1615 = vunpack.c.h.b16 %v493
    %v1616 = vunpack.c.l.b16 %v494
    %v1617 = vunpack.c.h.b16 %v494
    %v1618 = vunpack.c.l.b16 %v495
    %v1619 = vunpack.c.h.b16 %v495
    %v1620 = vunpack.c.l.b16 %v496
    %v1621 = vunpack.c.h.b16 %v496
    %v1622 = vunpack.c.l.b16 %v497
    %v1623 = vunpack.c.h.b16 %v497
    %v1624 = vunpack.c.l.b16 %v498
    %v1625 = vunpack.c.h.b16 %v498
    %v1626 = vunpack.c.l.b16 %v499
    %v1627 = vunpack.c.h.b16 %v499
    %v1628 = vunpack.c.l.b16 %v500
    %v1629 = vunpack.c.h.b16 %v500
    %v1630 = vunpack.c.l.b16 %v501
    %v1631 = vunpack.c.h.b16 %v501
    %v1632 = vunpack.c.l.b16 %v502
    %v1633 = vunpack.c.h.b16 %v502
    %v1634 = vunpack.c.l.b16 %v503
    %v1635 = vunpack.c.h.b16 %v503
    %v1636 = vunpack.c.l.b16 %v504
    %v1637 = vunpack.c.h.b16 %v504
    %v1638 = vunpack.c.l.b16 %v505
    %v1639 = vunpack.c.h.b16 %v505
    %v1640 = vunpack.c.l.b16 %v506
    %v1641 = vunpack.c.h.b16 %v506
    %v1642 = vunpack.c.l.b16 %v507
    %v1643 = vunpack.c.h.b16 %v507
    %v1644 = vunpack.c.l.b16 %v508
    %v1645 = vunpack.c.h.b16 %v508
    %v1646 = vunpack.c.l.b16 %v509
    %v1647 = vunpack.c.h.b16 %v509
    %v1648 = vunpack.c.l.b16 %v510
    %v1649 = vunpack.c.h.b16 %v510
    %v1650 = vunpack.c.l.b16 %v511
    %v1651 = vunpack.c.h.b16 %v511
    %v1652 = vunpack.c.l.b16 %v512
    %v1653 = vunpack.c.h.b16 %v512
    %v1654 = vunpack.c.l.b16 %v513
    %v1655 = vunpack.c.h.b16 %v513
    %v1656 = vunpack.c.l.b16 %v514
    %v1657 = vunpack.c.h.b16 %v514
    %v1658 = vunpack.c.l.b16 %v515
    %v1659 = vunpack.c.h.b16 %v515
    %v1660 = vunpack.c.l.b16 %v516
    %v1661 = vunpack.c.h.b16 %v516
    %v1662 = vunpack.c.l.b16 %v517
    %v1663 = vunpack.c.h.b16 %v517
    %v1664 = vunpack.c.l.b16 %v518
    %v1665 = vunpack.c.h.b16 %v518
    %v1666 = vunpack.c.l.b16 %v519
    %v1667 = vunpack.c.h.b16 %v519
    %v1668 = vunpack.c.l.b16 %v520
    %v1669 = vunpack.c.h.b16 %v520
    %v1670 = vunpack.c.l.b16 %v521
    %v1671 = vunpack.c.h.b16 %v521
    %v1672 = vunpack.c.l.b16 %v522
    %v1673 = vunpack.c.h.b16 %v522
    %v1674 = vunpack.c.l.b16 %v523
    %v1675 = vunpack.c.h.b16 %v523
    %v1676 = vunpack.c.l.b16 %v524
    %v1677 = vunpack.c.h.b16 %v524
    %v1678 = vunpack.c.l.b16 %v525
    %v1679 = vunpack.c.h.b16 %v525
    %v1680 = vunpack.c.l.b16 %v526
    %v1681 = vunpack.c.h.b16 %v526
    %v1682 = vunpack.c.l.b16 %v527
    %v1683 = vunpack.c.h.b16 %v527
    %v1684 = vunpack.c.l.b16 %v528
    %v1685 = vunpack.c.h.b16 %v528
    %v1686 = vunpack.c.l.b16 %v529
    %v1687 = vunpack.c.h.b16 %v529
    %v1688 = vunpack.c.l.b16 %v530
    %v1689 = vunpack.c.h.b16 %v530
    %v1690 = vunpack.c.l.b16 %v531
    %v1691 = vunpack.c.h.b16 %v531
    %v1692 = vunpack.c.l.b16 %v532
    %v1693 = vunpack.c.h.b16 %v532
    %v1694 = vunpack.c.l.b16 %v533
    %v1695 = vunpack.c.h.b16 %v533
    %v1696 = vunpack.c.l.b16 %v534
    %v1697 = vunpack.c.h.b16 %v534
    %v1698 = vunpack.c.l.b16 %v535
    %v1699 = vunpack.c.h.b16 %v535
    %v1700 = vunpack.c.l.b16 %v536
    %v1701 = vunpack.c.h.b16 %v536
    %v1702 = vunpack.c.l.b16 %v537
    %v1703 = vunpack.c.h.b16 %v537
    %v1704 = vunpack.c.l.b16 %v538
    %v1705 = vunpack.c.h.b16 %v538
    %v1706 = vunpack.c.l.b16 %v539
    %v1707 = vunpack.c.h.b16 %v539
    %v1708 = vunpack.c.l.b16 %v540
    %v1709 = vunpack.c.h.b16 %v540
    %v1710 = vunpack.c.l.b16 %v541
    %v1711 = vunpack.c.h.b16 %v541
    %v1712 = vunpack.c.l.b16 %v542
    %v1713 = vunpack.c.h.b16 %v542
    %v1714 = vunpack.c.l.b16 %v543
    %v1715 = vunpack.c.h.b16 %v543
    %v1716 = vunpack.c.l.b16 %v544
    %v1717 = vunpack.c.h.b16 %v544
    %v1718 = vunpack.c.l.b16 %v545
    %v1719 = vunpack.c.h.b16 %v545
    %v1720 = vunpack.c.l.b16 %v546
    %v1721 = vunpack.c.h.b16 %v546
    %v1722 = vunpack.c.l.b16 %v547
    %v1723 = vunpack.c.h.b16 %v547
    %v1724 = vpack.c.b16 %v948, %v940
    %v1725 = vpack.c.b16 %v949, %v941
    %v1726 = vpack.c.b16 %v950, %v942
    %v1727 = vpack.c.b16 %v951, %v943
    %v1728 = vpack.c.b16 %v952, %v944
    %v1729 = vpack.c.b16 %v953, %v945
    %v1730 = vpack.c.b16 %v954, %v946
    %v1731 = vpack.c.b16 %v955, %v947
    %v1732 = vpack.c.b16 %v964, %v956
    %v1733 = vpack.c.b16 %v965, %v957
    %v1734 = vpack.c.b16 %v966, %v958
    %v1735 = vpack.c.b16 %v967, %v959
    %v1736 = vpack.c.b16 %v968, %v960
    %v1737 = vpack.c.b16 %v969, %v961
    %v1738 = vpack.c.b16 %v970, %v962
    %v1739 = vpack.c.b16 %v971, %v963
    %v1740 = vpack.c.b16 %v980, %v972
    %v1741 = vpack.c.b16 %v981, %v973
    %v1742 = vpack.c.b16 %v982, %v974
    %v1743 = vpack.c.b16 %v983, %v975
    %v1744 = vpack.c.b16 %v984, %v976
    %v1745 = vpack.c.b16 %v985, %v977
    %v1746 = vpack.c.b16 %v986, %v978
    %v1747 = vpack.c.b16 %v987, %v979
    %v1748 = vpack.c.b16 %v996, %v988
    %v1749 = vpack.c.b16 %v997, %v989
    %v1750 = vpack.c.b16 %v998, %v990
    %v1751 = vpack.c.b16 %v999, %v991
    %v1752 = vpack.c.b16 %v1000, %v992
    %v1753 = vpack.c.b16 %v1001, %v993
    %v1754 = vpack.c.b16 %v1002, %v994
    %v1755 = vpack.c.b16 %v1003, %v995
    %v1756 = vpack.c.b16 %v1012, %v1004
    %v1757 = vpack.c.b16 %v1013, %v1005
    %v1758 = vpack.c.b16 %v1014, %v1006
    %v1759 = vpack.c.b16 %v1015, %v1007
    %v1760 = vpack.c.b16 %v1016, %v1008
    %v1761 = vpack.c.b16 %v1017, %v1009
    %v1762 = vpack.c.b16 %v1018, %v1010
    %v1763 = vpack.c.b16 %v1019, %v1011
    %v1764 = vpack.c.b16 %v1028, %v1020
    %v1765 = vpack.c.b16 %v1029, %v1021
    %v1766 = vpack.c.b16 %v1030, %v1022
    %v1767 = vpack.c.b16 %v1031, %v1023
    %v1768 = vpack.c.b16 %v1032, %v1024
    %v1769 = vpack.c.b16 %v1033, %v1025
    %v1770 = vpack.c.b16 %v1034, %v1026
    %v1771 = vpack.c.b16 %v1035, %v1027
    %v1772 = vpack.c.b16 %v1044, %v1036
    %v1773 = vpack.c.b16 %v1045, %v1037
    %v1774 = vpack.c.b16 %v1046, %v1038
    %v1775 = vpack.c.b16 %v1047, %v1039
    %v1776 = vpack.c.b16 %v1048, %v1040
    %v1777 = vpack.c.b16 %v1049, %v1041
    %v1778 = vpack.c.b16 %v1050, %v1042
    %v1779 = vpack.c.b16 %v1051, %v1043
    %v1780 = vpack.c.b16 %v1060, %v1052
    %v1781 = vpack.c.b16 %v1061, %v1053
    %v1782 = vpack.c.b16 %v1062, %v1054
    %v1783 = vpack.c.b16 %v1063, %v1055
    %v1784 = vpack.c.b16 %v1064, %v1056
    %v1785 = vpack.c.b16 %v1065, %v1057
    %v1786 = vpack.c.b16 %v1066, %v1058
    %v1787 = vpack.c.b16 %v1067, %v1059
    %v1788 = vpack.c.b16 %v1076, %v1068
    %v1789 = vpack.c.b16 %v1077, %v1069
    %v1790 = vpack.c.b16 %v1078, %v1070
    %v1791 = vpack.c.b16 %v1079, %v1071
    %v1792 = vpack.c.b16 %v1080, %v1072
    %v1793 = vpack.c.b16 %v1081, %v1073
    %v1794 = vpack.c.b16 %v1082, %v1074
    %v1795 = vpack.c.b16 %v1083, %v1075
    %v1796 = vpack.c.b16 %v1092, %v1084
    %v1797 = vpack.c.b16 %v1093, %v1085
    %v1798 = vpack.c.b16 %v1094, %v1086
    %v1799 = vpack.c.b16 %v1095, %v1087
    %v1800 = vpack.c.b16 %v1096, %v1088
    %v1801 = vpack.c.b16 %v1097, %v1089
    %v1802 = vpack.c.b16 %v1098, %v1090
    %v1803 = vpack.c.b16 %v1099, %v1091
    %v1804 = vpack.c.b16 %v1108, %v1100
    %v1805 = vpack.c.b16 %v1109, %v1101
    %v1806 = vpack.c.b16 %v1110, %v1102
    %v1807 = vpack.c.b16 %v1111, %v1103
    %v1808 = vpack.c.b16 %v1112, %v1104
    %v1809 = vpack.c.b16 %v1113, %v1105
    %v1810 = vpack.c.b16 %v1114, %v1106
    %v1811 = vpack.c.b16 %v1115, %v1107
    %v1812 = vpack.c.b16 %v1124, %v1116
    %v1813 = vpack.c.b16 %v1125, %v1117
    %v1814 = vpack.c.b16 %v1126, %v1118
    %v1815 = vpack.c.b16 %v1127, %v1119
    %v1816 = vpack.c.b16 %v1128, %v1120
    %v1817 = vpack.c.b16 %v1129, %v1121
    %v1818 = vpack.c.b16 %v1130, %v1122
    %v1819 = vpack.c.b16 %v1131, %v1123
    %v1820 = vpack.c.b16 %v1140, %v1132
    %v1821 = vpack.c.b16 %v1141, %v1133
    %v1822 = vpack.c.b16 %v1142, %v1134
    %v1823 = vpack.c.b16 %v1143, %v1135
    %v1824 = vpack.c.b16 %v1144, %v1136
    %v1825 = vpack.c.b16 %v1145, %v1137
    %v1826 = vpack.c.b16 %v1146, %v1138
    %v1827 = vpack.c.b16 %v1147, %v1139
    %v1828 = vpack.c.b16 %v1156, %v1148
    %v1829 = vpack.c.b16 %v1157, %v1149
    %v1830 = vpack.c.b16 %v1158, %v1150
    %v1831 = vpack.c.b16 %v1159, %v1151
    %v1832 = vpack.c.b16 %v1160, %v1152
    %v1833 = vpack.c.b16 %v1161, %v1153
    %v1834 = vpack.c.b16 %v1162, %v1154
    %v1835 = vpack.c.b16 %v1163, %v1155
    %v1836 = vpack.c.b16 %v1172, %v1164
    %v1837 = vpack.c.b16 %v1173, %v1165
    %v1838 = vpack.c.b16 %v1174, %v1166
    %v1839 = vpack.c.b16 %v1175, %v1167
    %v1840 = vpack.c.b16 %v1176, %v1168
    %v1841 = vpack.c.b16 %v1177, %v1169
    %v1842 = vpack.c.b16 %v1178, %v1170
    %v1843 = vpack.c.b16 %v1179, %v1171
    %v1844 = vpack.c.b16 %v1188, %v1180
    %v1845 = vpack.c.b16 %v1189, %v1181
    %v1846 = vpack.c.b16 %v1190, %v1182
    %v1847 = vpack.c.b16 %v1191, %v1183
    %v1848 = vpack.c.b16 %v1192, %v1184
    %v1849 = vpack.c.b16 %v1193, %v1185
    %v1850 = vpack.c.b16 %v1194, %v1186
    %v1851 = vpack.c.b16 %v1195, %v1187
    %v1852 = vpack.c.b16 %v1204, %v1196
    %v1853 = vpack.c.b16 %v1205, %v1197
    %v1854 = vpack.c.b16 %v1206, %v1198
    %v1855 = vpack.c.b16 %v1207, %v1199
    %v1856 = vpack.c.b16 %v1208, %v1200
    %v1857 = vpack.c.b16 %v1209, %v1201
    %v1858 = vpack.c.b16 %v1210, %v1202
    %v1859 = vpack.c.b16 %v1211, %v1203
    %v1860 = vpack.c.b16 %v1220, %v1212
    %v1861 = vpack.c.b16 %v1221, %v1213
    %v1862 = vpack.c.b16 %v1222, %v1214
    %v1863 = vpack.c.b16 %v1223, %v1215
    %v1864 = vpack.c.b16 %v1224, %v1216
    %v1865 = vpack.c.b16 %v1225, %v1217
    %v1866 = vpack.c.b16 %v1226, %v1218
    %v1867 = vpack.c.b16 %v1227, %v1219
    %v1868 = vpack.c.b16 %v1236, %v1228
    %v1869 = vpack.c.b16 %v1237, %v1229
    %v1870 = vpack.c.b16 %v1238, %v1230
    %v1871 = vpack.c.b16 %v1239, %v1231
    %v1872 = vpack.c.b16 %v1240, %v1232
    %v1873 = vpack.c.b16 %v1241, %v1233
    %v1874 = vpack.c.b16 %v1242, %v1234
    %v1875 = vpack.c.b16 %v1243, %v1235
    %v1876 = vpack.c.b16 %v1252, %v1244
    %v1877 = vpack.c.b16 %v1253, %v1245
    %v1878 = vpack.c.b16 %v1254, %v1246
    %v1879 = vpack.c.b16 %v1255, %v1247
    %v1880 = vpack.c.b16 %v1256, %v1248
    %v1881 = vpack.c.b16 %v1257, %v1249
    %v1882 = vpack.c.b16 %v1258, %v1250
    %v1883 = vpack.c.b16 %v1259, %v1251
    %v1884 = vpack.c.b16 %v1268, %v1260
    %v1885 = vpack.c.b16 %v1269, %v1261
    %v1886 = vpack.c.b16 %v1270, %v1262
    %v1887 = vpack.c.b16 %v1271, %v1263
    %v1888 = vpack.c.b16 %v1272, %v1264
    %v1889 = vpack.c.b16 %v1273, %v1265
    %v1890 = vpack.c.b16 %v1274, %v1266
    %v1891 = vpack.c.b16 %v1275, %v1267
    %v1892 = vpack.c.b16 %v1284, %v1276
    %v1893 = vpack.c.b16 %v1285, %v1277
    %v1894 = vpack.c.b16 %v1286, %v1278
    %v1895 = vpack.c.b16 %v1287, %v1279
    %v1896 = vpack.c.b16 %v1288, %v1280
    %v1897 = vpack.c.b16 %v1289, %v1281
    %v1898 = vpack.c.b16 %v1290, %v1282
    %v1899 = vpack.c.b16 %v1291, %v1283
    %v1900 = vpack.c.b16 %v1300, %v1292
    %v1901 = vpack.c.b16 %v1301, %v1293
    %v1902 = vpack.c.b16 %v1302, %v1294
    %v1903 = vpack.c.b16 %v1303, %v1295
    %v1904 = vpack.c.b16 %v1304, %v1296
    %v1905 = vpack.c.b16 %v1305, %v1297
    %v1906 = vpack.c.b16 %v1306, %v1298
    %v1907 = vpack.c.b16 %v1307, %v1299
    %v1908 = vpack.c.b16 %v1316, %v1308
    %v1909 = vpack.c.b16 %v1317, %v1309
    %v1910 = vpack.c.b16 %v1318, %v1310
    %v1911 = vpack.c.b16 %v1319, %v1311
    %v1912 = vpack.c.b16 %v1320, %v1312
    %v1913 = vpack.c.b16 %v1321, %v1313
    %v1914 = vpack.c.b16 %v1322, %v1314
    %v1915 = vpack.c.b16 %v1323, %v1315
    %v1916 = vpack.c.b16 %v1332, %v1324
    %v1917 = vpack.c.b16 %v1333, %v1325
    %v1918 = vpack.c.b16 %v1334, %v1326
    %v1919 = vpack.c.b16 %v1335, %v1327
    %v1920 = vpack.c.b16 %v1336, %v1328
    %v1921 = vpack.c.b16 %v1337, %v1329
    %v1922 = vpack.c.b16 %v1338, %v1330
    %v1923 = vpack.c.b16 %v1339, %v1331
    %v1924 = vpack.c.b16 %v1348, %v1340
    %v1925 = vpack.c.b16 %v1349, %v1341
    %v1926 = vpack.c.b16 %v1350, %v1342
    %v1927 = vpack.c.b16 %v1351, %v1343
    %v1928 = vpack.c.b16 %v1352, %v1344
    %v1929 = vpack.c.b16 %v1353, %v1345
    %v1930 = vpack.c.b16 %v1354, %v1346
    %v1931 = vpack.c.b16 %v1355, %v1347
    %v1932 = vpack.c.b16 %v1364, %v1356
    %v1933 = vpack.c.b16 %v1365, %v1357
    %v1934 = vpack.c.b16 %v1366, %v1358
    %v1935 = vpack.c.b16 %v1367, %v1359
    %v1936 = vpack.c.b16 %v1368, %v1360
    %v1937 = vpack.c.b16 %v1369, %v1361
    %v1938 = vpack.c.b16 %v1370, %v1362
    %v1939 = vpack.c.b16 %v1371, %v1363
    %v1940 = vpack.c.b16 %v1380, %v1372
    %v1941 = vpack.c.b16 %v1381, %v1373
    %v1942 = vpack.c.b16 %v1382, %v1374
    %v1943 = vpack.c.b16 %v1383, %v1375
    %v1944 = vpack.c.b16 %v1384, %v1376
    %v1945 = vpack.c.b16 %v1385, %v1377
    %v1946 = vpack.c.b16 %v1386, %v1378
    %v1947 = vpack.c.b16 %v1387, %v1379
    %v1948 = vpack.c.b16 %v1396, %v1388
    %v1949 = vpack.c.b16 %v1397, %v1389
    %v1950 = vpack.c.b16 %v1398, %v1390
    %v1951 = vpack.c.b16 %v1399, %v1391
    %v1952 = vpack.c.b16 %v1400, %v1392
    %v1953 = vpack.c.b16 %v1401, %v1393
    %v1954 = vpack.c.b16 %v1402, %v1394
    %v1955 = vpack.c.b16 %v1403, %v1395
    %v1956 = vpack.c.b16 %v1412, %v1404
    %v1957 = vpack.c.b16 %v1413, %v1405
    %v1958 = vpack.c.b16 %v1414, %v1406
    %v1959 = vpack.c.b16 %v1415, %v1407
    %v1960 = vpack.c.b16 %v1416, %v1408
    %v1961 = vpack.c.b16 %v1417, %v1409
    %v1962 = vpack.c.b16 %v1418, %v1410
    %v1963 = vpack.c.b16 %v1419, %v1411
    %v1964 = vpack.c.b16 %v1428, %v1420
    %v1965 = vpack.c.b16 %v1429, %v1421
    %v1966 = vpack.c.b16 %v1430, %v1422
    %v1967 = vpack.c.b16 %v1431, %v1423
    %v1968 = vpack.c.b16 %v1432, %v1424
    %v1969 = vpack.c.b16 %v1433, %v1425
    %v1970 = vpack.c.b16 %v1434, %v1426
    %v1971 = vpack.c.b16 %v1435, %v1427
    %v1972 = vpack.c.b16 %v1444, %v1436
    %v1973 = vpack.c.b16 %v1445, %v1437
    %v1974 = vpack.c.b16 %v1446, %v1438
    %v1975 = vpack.c.b16 %v1447, %v1439
    %v1976 = vpack.c.b16 %v1448, %v1440
    %v1977 = vpack.c.b16 %v1449, %v1441
    %v1978 = vpack.c.b16 %v1450, %v1442
    %v1979 = vpack.c.b16 %v1451, %v1443
    %v1980 = vpack.c.b16 %v1460, %v1452
    %v1981 = vpack.c.b16 %v1461, %v1453
    %v1982 = vpack.c.b16 %v1462, %v1454
    %v1983 = vpack.c.b16 %v1463, %v1455
    %v1984 = vpack.c.b16 %v1464, %v1456
    %v1985 = vpack.c.b16 %v1465, %v1457
    %v1986 = vpack.c.b16 %v1466, %v1458
    %v1987 = vpack.c.b16 %v1467, %v1459
    %v1988 = vpack.c.b16 %v1476, %v1468
    %v1989 = vpack.c.b16 %v1477, %v1469
    %v1990 = vpack.c.b16 %v1478, %v1470
    %v1991 = vpack.c.b16 %v1479, %v1471
    %v1992 = vpack.c.b16 %v1480, %v1472
    %v1993 = vpack.c.b16 %v1481, %v1473
    %v1994 = vpack.c.b16 %v1482, %v1474
    %v1995 = vpack.c.b16 %v1483, %v1475
    %v1996 = vpack.c.b16 %v1492, %v1484
    %v1997 = vpack.c.b16 %v1493, %v1485
    %v1998 = vpack.c.b16 %v1494, %v1486
    %v1999 = vpack.c.b16 %v1495, %v1487
    %v2000 = vpack.c.b16 %v1496, %v1488
    %v2001 = vpack.c.b16 %v1497, %v1489
    %v2002 = vpack.c.b16 %v1498, %v1490
    %v2003 = vpack.c.b16 %v1499, %v1491
    %v2004 = vpack.c.b16 %v1508, %v1500
    %v2005 = vpack.c.b16 %v1509, %v1501
    %v2006 = vpack.c.b16 %v1510, %v1502
    %v2007 = vpack.c.b16 %v1511, %v1503
    %v2008 = vpack.c.b16 %v1512, %v1504
    %v2009 = vpack.c.b16 %v1513, %v1505
    %v2010 = vpack.c.b16 %v1514, %v1506
    %v2011 = vpack.c.b16 %v1515, %v1507
    %v2012 = vpack.c.b16 %v1524, %v1516
    %v2013 = vpack.c.b16 %v1525, %v1517
    %v2014 = vpack.c.b16 %v1526, %v1518
    %v2015 = vpack.c.b16 %v1527, %v1519
    %v2016 = vpack.c.b16 %v1528, %v1520
    %v2017 = vpack.c.b16 %v1529, %v1521
    %v2018 = vpack.c.b16 %v1530, %v1522
    %v2019 = vpack.c.b16 %v1531, %v1523
    %v2020 = vpack.c.b16 %v1540, %v1532
    %v2021 = vpack.c.b16 %v1541, %v1533
    %v2022 = vpack.c.b16 %v1542, %v1534
    %v2023 = vpack.c.b16 %v1543, %v1535
    %v2024 = vpack.c.b16 %v1544, %v1536
    %v2025 = vpack.c.b16 %v1545, %v1537
    %v2026 = vpack.c.b16 %v1546, %v1538
    %v2027 = vpack.c.b16 %v1547, %v1539
    %v2028 = vpack.c.b16 %v1556, %v1548
    %v2029 = vpack.c.b16 %v1557, %v1549
    %v2030 = vpack.c.b16 %v1558, %v1550
    %v2031 = vpack.c.b16 %v1559, %v1551
    %v2032 = vpack.c.b16 %v1560, %v1552
    %v2033 = vpack.c.b16 %v1561, %v1553
    %v2034 = vpack.c.b16 %v1562, %v1554
    %v2035 = vpack.c.b16 %v1563, %v1555
    %v2036 = vpack.c.b16 %v1572, %v1564
    %v2037 = vpack.c.b16 %v1573, %v1565
    %v2038 = vpack.c.b16 %v1574, %v1566
    %v2039 = vpack.c.b16 %v1575, %v1567
    %v2040 = vpack.c.b16 %v1576, %v1568
    %v2041 = vpack.c.b16 %v1577, %v1569
    %v2042 = vpack.c.b16 %v1578, %v1570
    %v2043 = vpack.c.b16 %v1579, %v1571
    %v2044 = vpack.c.b16 %v1588, %v1580
    %v2045 = vpack.c.b16 %v1589, %v1581
    %v2046 = vpack.c.b16 %v1590, %v1582
    %v2047 = vpack.c.b16 %v1591, %v1583
    %v2048 = vpack.c.b16 %v1592, %v1584
    %v2049 = vpack.c.b16 %v1593, %v1585
    %v2050 = vpack.c.b16 %v1594, %v1586
    %v2051 = vpack.c.b16 %v1595, %v1587
    %v2052 = vpack.c.b16 %v1604, %v1596
    %v2053 = vpack.c.b16 %v1605, %v1597
    %v2054 = vpack.c.b16 %v1606, %v1598
    %v2055 = vpack.c.b16 %v1607, %v1599
    %v2056 = vpack.c.b16 %v1608, %v1600
    %v2057 = vpack.c.b16 %v1609, %v1601
    %v2058 = vpack.c.b16 %v1610, %v1602
    %v2059 = vpack.c.b16 %v1611, %v1603
    %v2060 = vpack.c.b16 %v1620, %v1612
    %v2061 = vpack.c.b16 %v1621, %v1613
    %v2062 = vpack.c.b16 %v1622, %v1614
    %v2063 = vpack.c.b16 %v1623, %v1615
    %v2064 = vpack.c.b16 %v1624, %v1616
    %v2065 = vpack.c.b16 %v1625, %v1617
    %v2066 = vpack.c.b16 %v1626, %v1618
    %v2067 = vpack.c.b16 %v1627, %v1619
    %v2068 = vpack.c.b16 %v1636, %v1628
    %v2069 = vpack.c.b16 %v1637, %v1629
    %v2070 = vpack.c.b16 %v1638, %v1630
    %v2071 = vpack.c.b16 %v1639, %v1631
    %v2072 = vpack.c.b16 %v1640, %v1632
    %v2073 = vpack.c.b16 %v1641, %v1633
    %v2074 = vpack.c.b16 %v1642, %v1634
    %v2075 = vpack.c.b16 %v1643, %v1635
    %v2076 = vpack.c.b16 %v1652, %v1644
    %v2077 = vpack.c.b16 %v1653, %v1645
    %v2078 = vpack.c.b16 %v1654, %v1646
    %v2079 = vpack.c.b16 %v1655, %v1647
    %v2080 = vpack.c.b16 %v1656, %v1648
    %v2081 = vpack.c.b16 %v1657, %v1649
    %v2082 = vpack.c.b16 %v1658, %v1650
    %v2083 = vpack.c.b16 %v1659, %v1651
    %v2084 = vpack.c.b16 %v1668, %v1660
    %v2085 = vpack.c.b16 %v1669, %v1661
    %v2086 = vpack.c.b16 %v1670, %v1662
    %v2087 = vpack.c.b16 %v1671, %v1663
    %v2088 = vpack.c.b16 %v1672, %v1664
    %v2089 = vpack.c.b16 %v1673, %v1665
    %v2090 = vpack.c.b16 %v1674, %v1666
    %v2091 = vpack.c.b16 %v1675, %v1667
    %v2092 = vpack.c.b16 %v1684, %v1676
    %v2093 = vpack.c.b16 %v1685, %v1677
    %v2094 = vpack.c.b16 %v1686, %v1678
    %v2095 = vpack.c.b16 %v1687, %v1679
    %v2096 = vpack.c.b16 %v1688, %v1680
    %v2097 = vpack.c.b16 %v1689, %v1681
    %v2098 = vpack.c.b16 %v1690, %v1682
    %v2099 = vpack.c.b16 %v1691, %v1683
    %v2100 = vpack.c.b16 %v1700, %v1692
    %v2101 = vpack.c.b16 %v1701, %v1693
    %v2102 = vpack.c.b16 %v1702, %v1694
    %v2103 = vpack.c.b16 %v1703, %v1695
    %v2104 = vpack.c.b16 %v1704, %v1696
    %v2105 = vpack.c.b16 %v1705, %v1697
    %v2106 = vpack.c.b16 %v1706, %v1698
    %v2107 = vpack.c.b16 %v1707, %v1699
    %v2108 = vpack.c.b16 %v1716, %v1708
    %v2109 = vpack.c.b16 %v1717, %v1709
    %v2110 = vpack.c.b16 %v1718, %v1710
    %v2111 = vpack.c.b16 %v1719, %v1711
    %v2112 = vpack.c.b16 %v1720, %v1712
    %v2113 = vpack.c.b16 %v1721, %v1713
    %v2114 = vpack.c.b16 %v1722, %v1714
    %v2115 = vpack.c.b16 %v1723, %v1715
    %vm2508 = vcmask 130048
    %v2510 = vsel %vm2508, %v155, 0
    %2512 = vmatprep.subr.bf16.mxu0 %v1725
    %2513 = vmatpush1.bf16.msra.mxu0 %v1724
    %2514 = vmatprep.subr.bf16.mxu0 %v1733
    %2515 = vmatpush1.bf16.msra.mxu0 %v1732
    %2516 = vmatprep.subr.bf16.mxu0 %v1741
    %2517 = vmatpush1.bf16.msra.mxu0 %v1740
    %2518 = vmatprep.subr.bf16.mxu0 %v1749
    %2519 = vmatpush1.bf16.msra.mxu0 %v1748
    %2520 = vmatprep.subr.bf16.mxu0 %v1757
    %2521 = vmatpush1.bf16.msra.mxu0 %v1756
    %2522 = vmatprep.subr.bf16.mxu0 %v1765
    %2523 = vmatpush1.bf16.msra.mxu0 %v1764
    %2524 = vmatprep.subr.bf16.mxu0 %v1773
    %2525 = vmatpush1.bf16.msra.mxu0 %v1772
    %2526 = vmatprep.subr.bf16.mxu0 %v1781
    %2527 = vmatpush1.bf16.msra.mxu0 %v1780
    %2528 = vmatprep.subr.bf16.mxu0 %v1789
    %2529 = vmatpush1.bf16.msra.mxu0 %v1788
    %2530 = vmatprep.subr.bf16.mxu0 %v1797
    %2531 = vmatpush1.bf16.msra.mxu0 %v1796
    %2532 = vmatprep.subr.bf16.mxu0 %v1805
    %2533 = vmatpush1.bf16.msra.mxu0 %v1804
    %2534 = vmatprep.subr.bf16.mxu0 %v1813
    %2535 = vmatpush1.bf16.msra.mxu0 %v1812
    %2536 = vmatprep.subr.bf16.mxu0 %v1821
    %2537 = vmatpush1.bf16.msra.mxu0 %v1820
    %2538 = vmatprep.subr.bf16.mxu0 %v1829
    %2539 = vmatpush1.bf16.msra.mxu0 %v1828
    %2540 = vmatprep.subr.bf16.mxu0 %v1837
    %2541 = vmatpush1.bf16.msra.mxu0 %v1836
    %2542 = vmatprep.subr.bf16.mxu0 %v1845
    %2543 = vmatpush1.bf16.msra.mxu0 %v1844
    %2544 = vmatprep.mubr.bf16.mxu0 %v150
    %2545 = vmatmul.mubr.bf16.gmra.mrb[0].mxu0 %v149
    %v2546 = vpop.f32.mrb[0].mxu0
    %v2547 = vadd.f32 0.0, %v2546
    %v2548 = vpop.f32.mrb[0].mxu0
    %v2549 = vadd.f32 0.0, %v2548
    %v2550 = vpop.f32.mrb[0].mxu0
    %v2551 = vadd.f32 0.0, %v2550
    %v2552 = vpop.f32.mrb[0].mxu0
    %v2553 = vadd.f32 0.0, %v2552
    %2554 = vdwg.mxu0
    %2555 = vmatprep.subr.bf16.mxu0 %v1853
    %2556 = vmatpush1.bf16.msra.mxu0 %v1852
    %2557 = vmatprep.subr.bf16.mxu0 %v1861
    %2558 = vmatpush1.bf16.msra.mxu0 %v1860
    %2559 = vmatprep.subr.bf16.mxu0 %v1869
    %2560 = vmatpush1.bf16.msra.mxu0 %v1868
    %2561 = vmatprep.subr.bf16.mxu0 %v1877
    %2562 = vmatpush1.bf16.msra.mxu0 %v1876
    %2563 = vmatprep.subr.bf16.mxu0 %v1885
    %2564 = vmatpush1.bf16.msra.mxu0 %v1884
    %2565 = vmatprep.subr.bf16.mxu0 %v1893
    %2566 = vmatpush1.bf16.msra.mxu0 %v1892
    %2567 = vmatprep.subr.bf16.mxu0 %v1901
    %2568 = vmatpush1.bf16.msra.mxu0 %v1900
    %2569 = vmatprep.subr.bf16.mxu0 %v1909
    %2570 = vmatpush1.bf16.msra.mxu0 %v1908
    %2571 = vmatprep.subr.bf16.mxu0 %v1917
    %2572 = vmatpush1.bf16.msra.mxu0 %v1916
    %2573 = vmatprep.subr.bf16.mxu0 %v1925
    %2574 = vmatpush1.bf16.msra.mxu0 %v1924
    %2575 = vmatprep.subr.bf16.mxu0 %v1933
    %2576 = vmatpush1.bf16.msra.mxu0 %v1932
    %2577 = vmatprep.subr.bf16.mxu0 %v1941
    %2578 = vmatpush1.bf16.msra.mxu0 %v1940
    %2579 = vmatprep.subr.bf16.mxu0 %v1949
    %2580 = vmatpush1.bf16.msra.mxu0 %v1948
    %2581 = vmatprep.subr.bf16.mxu0 %v1957
    %2582 = vmatpush1.bf16.msra.mxu0 %v1956
    %2583 = vmatprep.subr.bf16.mxu0 %v1965
    %2584 = vmatpush1.bf16.msra.mxu0 %v1964
    %2585 = vmatprep.subr.bf16.mxu0 %v1973
    %2586 = vmatpush1.bf16.msra.mxu0 %v1972
    %2587 = vmatprep.mubr.bf16.mxu0 %v152
    %2588 = vmatmul.mubr.bf16.gmra.mrb[0].mxu0 %v151
    %v2589 = vpop.f32.mrb[0].mxu0
    %v2590 = vadd.f32 %v2547, %v2589
    %v2591 = vpop.f32.mrb[0].mxu0
    %v2592 = vadd.f32 %v2549, %v2591
    %v2593 = vpop.f32.mrb[0].mxu0
    %v2594 = vadd.f32 %v2551, %v2593
    %v2595 = vpop.f32.mrb[0].mxu0
    %v2596 = vadd.f32 %v2553, %v2595
    %2597 = vdwg.mxu0
    %2598 = vmatprep.subr.bf16.mxu0 %v1981
    %2599 = vmatpush1.bf16.msra.mxu0 %v1980
    %2600 = vmatprep.subr.bf16.mxu0 %v1989
    %2601 = vmatpush1.bf16.msra.mxu0 %v1988
    %2602 = vmatprep.subr.bf16.mxu0 %v1997
    %2603 = vmatpush1.bf16.msra.mxu0 %v1996
    %2604 = vmatprep.subr.bf16.mxu0 %v2005
    %2605 = vmatpush1.bf16.msra.mxu0 %v2004
    %2606 = vmatprep.subr.bf16.mxu0 %v2013
    %2607 = vmatpush1.bf16.msra.mxu0 %v2012
    %2608 = vmatprep.subr.bf16.mxu0 %v2021
    %2609 = vmatpush1.bf16.msra.mxu0 %v2020
    %2610 = vmatprep.subr.bf16.mxu0 %v2029
    %2611 = vmatpush1.bf16.msra.mxu0 %v2028
    %2612 = vmatprep.subr.bf16.mxu0 %v2037
    %2613 = vmatpush1.bf16.msra.mxu0 %v2036
    %2614 = vmatprep.subr.bf16.mxu0 %v2045
    %2615 = vmatpush1.bf16.msra.mxu0 %v2044
    %2616 = vmatprep.subr.bf16.mxu0 %v2053
    %2617 = vmatpush1.bf16.msra.mxu0 %v2052
    %2618 = vmatprep.subr.bf16.mxu0 %v2061
    %2619 = vmatpush1.bf16.msra.mxu0 %v2060
    %2620 = vmatprep.subr.bf16.mxu0 %v2069
    %2621 = vmatpush1.bf16.msra.mxu0 %v2068
    %2622 = vmatprep.subr.bf16.mxu0 %v2077
    %2623 = vmatpush1.bf16.msra.mxu0 %v2076
    %2624 = vmatprep.subr.bf16.mxu0 %v2085
    %2625 = vmatpush1.bf16.msra.mxu0 %v2084
    %2626 = vmatprep.subr.bf16.mxu0 %v2093
    %2627 = vmatpush1.bf16.msra.mxu0 %v2092
    %2628 = vmatprep.subr.bf16.mxu0 %v2101
    %2629 = vmatpush1.bf16.msra.mxu0 %v2100
    %2630 = vmatprep.mubr.bf16.mxu0 %v154
    %2631 = vmatmul.mubr.bf16.gmra.mrb[0].mxu0 %v153
    %v2632 = vpop.f32.mrb[0].mxu0
    %v2633 = vadd.f32 %v2590, %v2632
    %v2634 = vpop.f32.mrb[0].mxu0
    %v2635 = vadd.f32 %v2592, %v2634
    %v2636 = vpop.f32.mrb[0].mxu0
    %v2637 = vadd.f32 %v2594, %v2636
    %v2638 = vpop.f32.mrb[0].mxu0
    %v2639 = vadd.f32 %v2596, %v2638
    %2640 = vdwg.mxu0
    %2641 = vmatprep.subr.bf16.mxu0 %v2109
    %2642 = vmatpush1.bf16.msra.mxu0 %v2108
    %2643 = vmatprep.subr.bf16.mxu0 0
    %2644 = vmatpush1.bf16.msra.mxu0 0
    %2645 = vmatprep.subr.bf16.mxu0 0
    %2646 = vmatpush1.bf16.msra.mxu0 0
    %2647 = vmatprep.subr.bf16.mxu0 0
    %2648 = vmatpush1.bf16.msra.mxu0 0
    %2649 = vmatprep.subr.bf16.mxu0 0
    %2650 = vmatpush1.bf16.msra.mxu0 0
    %2651 = vmatprep.subr.bf16.mxu0 0
    %2652 = vmatpush1.bf16.msra.mxu0 0
    %2653 = vmatprep.subr.bf16.mxu0 0
    %2654 = vmatpush1.bf16.msra.mxu0 0
    %2655 = vmatprep.subr.bf16.mxu0 0
    %2656 = vmatpush1.bf16.msra.mxu0 0
    %2657 = vmatprep.subr.bf16.mxu0 0
    %2658 = vmatpush1.bf16.msra.mxu0 0
    %2659 = vmatprep.subr.bf16.mxu0 0
    %2660 = vmatpush1.bf16.msra.mxu0 0
    %2661 = vmatprep.subr.bf16.mxu0 0
    %2662 = vmatpush1.bf16.msra.mxu0 0
    %2663 = vmatprep.subr.bf16.mxu0 0
    %2664 = vmatpush1.bf16.msra.mxu0 0
    %2665 = vmatprep.subr.bf16.mxu0 0
    %2666 = vmatpush1.bf16.msra.mxu0 0
    %2667 = vmatprep.subr.bf16.mxu0 0
    %2668 = vmatpush1.bf16.msra.mxu0 0
    %2669 = vmatprep.subr.bf16.mxu0 0
    %2670 = vmatpush1.bf16.msra.mxu0 0
    %2671 = vmatprep.subr.bf16.mxu0 0
    %2672 = vmatpush1.bf16.msra.mxu0 0
    %2673 = vmatprep.mubr.bf16.mxu0 0
    %2674 = vmatmul.mubr.bf16.gmra.mrb[0].mxu0 %v2510
    %v2675 = vpop.f32.mrb[0].mxu0
    %v2676 = vadd.f32 %v2633, %v2675
    %v2677 = vpop.f32.mrb[0].mxu0
    %v2678 = vadd.f32 %v2635, %v2677
    %v2679 = vpop.f32.mrb[0].mxu0
    %v2680 = vadd.f32 %v2637, %v2679
    %v2681 = vpop.f32.mrb[0].mxu0
    %v2682 = vadd.f32 %v2639, %v2681
    %2683 = vdwg.mxu0
    %2684 = vmatprep.subr.bf16.mxu0 %v1727
    %2685 = vmatpush1.bf16.msra.mxu0 %v1726
    %2686 = vmatprep.subr.bf16.mxu0 %v1735
    %2687 = vmatpush1.bf16.msra.mxu0 %v1734
    %2688 = vmatprep.subr.bf16.mxu0 %v1743
    %2689 = vmatpush1.bf16.msra.mxu0 %v1742
    %2690 = vmatprep.subr.bf16.mxu0 %v1751
    %2691 = vmatpush1.bf16.msra.mxu0 %v1750
    %2692 = vmatprep.subr.bf16.mxu0 %v1759
    %2693 = vmatpush1.bf16.msra.mxu0 %v1758
    %2694 = vmatprep.subr.bf16.mxu0 %v1767
    %2695 = vmatpush1.bf16.msra.mxu0 %v1766
    %2696 = vmatprep.subr.bf16.mxu0 %v1775
    %2697 = vmatpush1.bf16.msra.mxu0 %v1774
    %2698 = vmatprep.subr.bf16.mxu0 %v1783
    %2699 = vmatpush1.bf16.msra.mxu0 %v1782
    %2700 = vmatprep.subr.bf16.mxu0 %v1791
    %2701 = vmatpush1.bf16.msra.mxu0 %v1790
    %2702 = vmatprep.subr.bf16.mxu0 %v1799
    %2703 = vmatpush1.bf16.msra.mxu0 %v1798
    %2704 = vmatprep.subr.bf16.mxu0 %v1807
    %2705 = vmatpush1.bf16.msra.mxu0 %v1806
    %2706 = vmatprep.subr.bf16.mxu0 %v1815
    %2707 = vmatpush1.bf16.msra.mxu0 %v1814
    %2708 = vmatprep.subr.bf16.mxu0 %v1823
    %2709 = vmatpush1.bf16.msra.mxu0 %v1822
    %2710 = vmatprep.subr.bf16.mxu0 %v1831
    %2711 = vmatpush1.bf16.msra.mxu0 %v1830
    %2712 = vmatprep.subr.bf16.mxu0 %v1839
    %2713 = vmatpush1.bf16.msra.mxu0 %v1838
    %2714 = vmatprep.subr.bf16.mxu0 %v1847
    %2715 = vmatpush1.bf16.msra.mxu0 %v1846
    %2716 = vmatprep.mubr.bf16.mxu0 %v150
    %2717 = vmatmul.mubr.bf16.gmra.mrb[0].mxu0 %v149
    %v2718 = vpop.f32.mrb[0].mxu0
    %v2719 = vadd.f32 0.0, %v2718
    %v2720 = vpop.f32.mrb[0].mxu0
    %v2721 = vadd.f32 0.0, %v2720
    %v2722 = vpop.f32.mrb[0].mxu0
    %v2723 = vadd.f32 0.0, %v2722
    %v2724 = vpop.f32.mrb[0].mxu0
    %v2725 = vadd.f32 0.0, %v2724
    %2726 = vdwg.mxu0
    %2727 = vmatprep.subr.bf16.mxu0 %v1855
    %2728 = vmatpush1.bf16.msra.mxu0 %v1854
    %2729 = vmatprep.subr.bf16.mxu0 %v1863
    %2730 = vmatpush1.bf16.msra.mxu0 %v1862
    %2731 = vmatprep.subr.bf16.mxu0 %v1871
    %2732 = vmatpush1.bf16.msra.mxu0 %v1870
    %2733 = vmatprep.subr.bf16.mxu0 %v1879
    %2734 = vmatpush1.bf16.msra.mxu0 %v1878
    %2735 = vmatprep.subr.bf16.mxu0 %v1887
    %2736 = vmatpush1.bf16.msra.mxu0 %v1886
    %2737 = vmatprep.subr.bf16.mxu0 %v1895
    %2738 = vmatpush1.bf16.msra.mxu0 %v1894
    %2739 = vmatprep.subr.bf16.mxu0 %v1903
    %2740 = vmatpush1.bf16.msra.mxu0 %v1902
    %2741 = vmatprep.subr.bf16.mxu0 %v1911
    %2742 = vmatpush1.bf16.msra.mxu0 %v1910
    %2743 = vmatprep.subr.bf16.mxu0 %v1919
    %2744 = vmatpush1.bf16.msra.mxu0 %v1918
    %2745 = vmatprep.subr.bf16.mxu0 %v1927
    %2746 = vmatpush1.bf16.msra.mxu0 %v1926
    %2747 = vmatprep.subr.bf16.mxu0 %v1935
    %2748 = vmatpush1.bf16.msra.mxu0 %v1934
    %2749 = vmatprep.subr.bf16.mxu0 %v1943
    %2750 = vmatpush1.bf16.msra.mxu0 %v1942
    %2751 = vmatprep.subr.bf16.mxu0 %v1951
    %2752 = vmatpush1.bf16.msra.mxu0 %v1950
    %2753 = vmatprep.subr.bf16.mxu0 %v1959
    %2754 = vmatpush1.bf16.msra.mxu0 %v1958
    %2755 = vmatprep.subr.bf16.mxu0 %v1967
    %2756 = vmatpush1.bf16.msra.mxu0 %v1966
    %2757 = vmatprep.subr.bf16.mxu0 %v1975
    %2758 = vmatpush1.bf16.msra.mxu0 %v1974
    %2759 = vmatprep.mubr.bf16.mxu0 %v152
    %2760 = vmatmul.mubr.bf16.gmra.mrb[0].mxu0 %v151
    %v2761 = vpop.f32.mrb[0].mxu0
    %v2762 = vadd.f32 %v2719, %v2761
    %v2763 = vpop.f32.mrb[0].mxu0
    %v2764 = vadd.f32 %v2721, %v2763
    %v2765 = vpop.f32.mrb[0].mxu0
    %v2766 = vadd.f32 %v2723, %v2765
    %v2767 = vpop.f32.mrb[0].mxu0
    %v2768 = vadd.f32 %v2725, %v2767
    %2769 = vdwg.mxu0
    %2770 = vmatprep.subr.bf16.mxu0 %v1983
    %2771 = vmatpush1.bf16.msra.mxu0 %v1982
    %2772 = vmatprep.subr.bf16.mxu0 %v1991
    %2773 = vmatpush1.bf16.msra.mxu0 %v1990
    %2774 = vmatprep.subr.bf16.mxu0 %v1999
    %2775 = vmatpush1.bf16.msra.mxu0 %v1998
    %2776 = vmatprep.subr.bf16.mxu0 %v2007
    %2777 = vmatpush1.bf16.msra.mxu0 %v2006
    %2778 = vmatprep.subr.bf16.mxu0 %v2015
    %2779 = vmatpush1.bf16.msra.mxu0 %v2014
    %2780 = vmatprep.subr.bf16.mxu0 %v2023
    %2781 = vmatpush1.bf16.msra.mxu0 %v2022
    %2782 = vmatprep.subr.bf16.mxu0 %v2031
    %2783 = vmatpush1.bf16.msra.mxu0 %v2030
    %2784 = vmatprep.subr.bf16.mxu0 %v2039
    %2785 = vmatpush1.bf16.msra.mxu0 %v2038
    %2786 = vmatprep.subr.bf16.mxu0 %v2047
    %2787 = vmatpush1.bf16.msra.mxu0 %v2046
    %2788 = vmatprep.subr.bf16.mxu0 %v2055
    %2789 = vmatpush1.bf16.msra.mxu0 %v2054
    %2790 = vmatprep.subr.bf16.mxu0 %v2063
    %2791 = vmatpush1.bf16.msra.mxu0 %v2062
    %2792 = vmatprep.subr.bf16.mxu0 %v2071
    %2793 = vmatpush1.bf16.msra.mxu0 %v2070
    %2794 = vmatprep.subr.bf16.mxu0 %v2079
    %2795 = vmatpush1.bf16.msra.mxu0 %v2078
    %2796 = vmatprep.subr.bf16.mxu0 %v2087
    %2797 = vmatpush1.bf16.msra.mxu0 %v2086
    %2798 = vmatprep.subr.bf16.mxu0 %v2095
    %2799 = vmatpush1.bf16.msra.mxu0 %v2094
    %2800 = vmatprep.subr.bf16.mxu0 %v2103
    %2801 = vmatpush1.bf16.msra.mxu0 %v2102
    %2802 = vmatprep.mubr.bf16.mxu0 %v154
    %2803 = vmatmul.mubr.bf16.gmra.mrb[0].mxu0 %v153
    %v2804 = vpop.f32.mrb[0].mxu0
    %v2805 = vadd.f32 %v2762, %v2804
    %v2806 = vpop.f32.mrb[0].mxu0
    %v2807 = vadd.f32 %v2764, %v2806
    %v2808 = vpop.f32.mrb[0].mxu0
    %v2809 = vadd.f32 %v2766, %v2808
    %v2810 = vpop.f32.mrb[0].mxu0
    %v2811 = vadd.f32 %v2768, %v2810
    %2812 = vdwg.mxu0
    %2813 = vmatprep.subr.bf16.mxu0 %v2111
    %2814 = vmatpush1.bf16.msra.mxu0 %v2110
    %2815 = vmatprep.subr.bf16.mxu0 0
    %2816 = vmatpush1.bf16.msra.mxu0 0
    %2817 = vmatprep.subr.bf16.mxu0 0
    %2818 = vmatpush1.bf16.msra.mxu0 0
    %2819 = vmatprep.subr.bf16.mxu0 0
    %2820 = vmatpush1.bf16.msra.mxu0 0
    %2821 = vmatprep.subr.bf16.mxu0 0
    %2822 = vmatpush1.bf16.msra.mxu0 0
    %2823 = vmatprep.subr.bf16.mxu0 0
    %2824 = vmatpush1.bf16.msra.mxu0 0
    %2825 = vmatprep.subr.bf16.mxu0 0
    %2826 = vmatpush1.bf16.msra.mxu0 0
    %2827 = vmatprep.subr.bf16.mxu0 0
    %2828 = vmatpush1.bf16.msra.mxu0 0
    %2829 = vmatprep.subr.bf16.mxu0 0
    %2830 = vmatpush1.bf16.msra.mxu0 0
    %2831 = vmatprep.subr.bf16.mxu0 0
    %2832 = vmatpush1.bf16.msra.mxu0 0
    %2833 = vmatprep.subr.bf16.mxu0 0
    %2834 = vmatpush1.bf16.msra.mxu0 0
    %2835 = vmatprep.subr.bf16.mxu0 0
    %2836 = vmatpush1.bf16.msra.mxu0 0
    %2837 = vmatprep.subr.bf16.mxu0 0
    %2838 = vmatpush1.bf16.msra.mxu0 0
    %2839 = vmatprep.subr.bf16.mxu0 0
    %2840 = vmatpush1.bf16.msra.mxu0 0
    %2841 = vmatprep.subr.bf16.mxu0 0
    %2842 = vmatpush1.bf16.msra.mxu0 0
    %2843 = vmatprep.subr.bf16.mxu0 0
    %2844 = vmatpush1.bf16.msra.mxu0 0
    %2845 = vmatprep.mubr.bf16.mxu0 0
    %2846 = vmatmul.mubr.bf16.gmra.mrb[0].mxu0 %v2510
    %v2847 = vpop.f32.mrb[0].mxu0
    %v2848 = vadd.f32 %v2805, %v2847
    %v2849 = vpop.f32.mrb[0].mxu0
    %v2850 = vadd.f32 %v2807, %v2849
    %v2851 = vpop.f32.mrb[0].mxu0
    %v2852 = vadd.f32 %v2809, %v2851
    %v2853 = vpop.f32.mrb[0].mxu0
    %v2854 = vadd.f32 %v2811, %v2853
    %2855 = vdwg.mxu0
    %2856 = vmatprep.subr.bf16.mxu0 %v1729
    %2857 = vmatpush1.bf16.msra.mxu0 %v1728
    %2858 = vmatprep.subr.bf16.mxu0 %v1737
    %2859 = vmatpush1.bf16.msra.mxu0 %v1736
    %2860 = vmatprep.subr.bf16.mxu0 %v1745
    %2861 = vmatpush1.bf16.msra.mxu0 %v1744
    %2862 = vmatprep.subr.bf16.mxu0 %v1753
    %2863 = vmatpush1.bf16.msra.mxu0 %v1752
    %2864 = vmatprep.subr.bf16.mxu0 %v1761
    %2865 = vmatpush1.bf16.msra.mxu0 %v1760
    %2866 = vmatprep.subr.bf16.mxu0 %v1769
    %2867 = vmatpush1.bf16.msra.mxu0 %v1768
    %2868 = vmatprep.subr.bf16.mxu0 %v1777
    %2869 = vmatpush1.bf16.msra.mxu0 %v1776
    %2870 = vmatprep.subr.bf16.mxu0 %v1785
    %2871 = vmatpush1.bf16.msra.mxu0 %v1784
    %2872 = vmatprep.subr.bf16.mxu0 %v1793
    %2873 = vmatpush1.bf16.msra.mxu0 %v1792
    %2874 = vmatprep.subr.bf16.mxu0 %v1801
    %2875 = vmatpush1.bf16.msra.mxu0 %v1800
    %2876 = vmatprep.subr.bf16.mxu0 %v1809
    %2877 = vmatpush1.bf16.msra.mxu0 %v1808
    %2878 = vmatprep.subr.bf16.mxu0 %v1817
    %2879 = vmatpush1.bf16.msra.mxu0 %v1816
    %2880 = vmatprep.subr.bf16.mxu0 %v1825
    %2881 = vmatpush1.bf16.msra.mxu0 %v1824
    %2882 = vmatprep.subr.bf16.mxu0 %v1833
    %2883 = vmatpush1.bf16.msra.mxu0 %v1832
    %2884 = vmatprep.subr.bf16.mxu0 %v1841
    %2885 = vmatpush1.bf16.msra.mxu0 %v1840
    %2886 = vmatprep.subr.bf16.mxu0 %v1849
    %2887 = vmatpush1.bf16.msra.mxu0 %v1848
    %2888 = vmatprep.mubr.bf16.mxu0 %v150
    %2889 = vmatmul.mubr.bf16.gmra.mrb[0].mxu0 %v149
    %v2890 = vpop.f32.mrb[0].mxu0
    %v2891 = vadd.f32 0.0, %v2890
    %v2892 = vpop.f32.mrb[0].mxu0
    %v2893 = vadd.f32 0.0, %v2892
    %v2894 = vpop.f32.mrb[0].mxu0
    %v2895 = vadd.f32 0.0, %v2894
    %v2896 = vpop.f32.mrb[0].mxu0
    %v2897 = vadd.f32 0.0, %v2896
    %2898 = vdwg.mxu0
    %2899 = vmatprep.subr.bf16.mxu0 %v1857
    %2900 = vmatpush1.bf16.msra.mxu0 %v1856
    %2901 = vmatprep.subr.bf16.mxu0 %v1865
    %2902 = vmatpush1.bf16.msra.mxu0 %v1864
    %2903 = vmatprep.subr.bf16.mxu0 %v1873
    %2904 = vmatpush1.bf16.msra.mxu0 %v1872
    %2905 = vmatprep.subr.bf16.mxu0 %v1881
    %2906 = vmatpush1.bf16.msra.mxu0 %v1880
    %2907 = vmatprep.subr.bf16.mxu0 %v1889
    %2908 = vmatpush1.bf16.msra.mxu0 %v1888
    %2909 = vmatprep.subr.bf16.mxu0 %v1897
    %2910 = vmatpush1.bf16.msra.mxu0 %v1896
    %2911 = vmatprep.subr.bf16.mxu0 %v1905
    %2912 = vmatpush1.bf16.msra.mxu0 %v1904
    %2913 = vmatprep.subr.bf16.mxu0 %v1913
    %2914 = vmatpush1.bf16.msra.mxu0 %v1912
    %2915 = vmatprep.subr.bf16.mxu0 %v1921
    %2916 = vmatpush1.bf16.msra.mxu0 %v1920
    %2917 = vmatprep.subr.bf16.mxu0 %v1929
    %2918 = vmatpush1.bf16.msra.mxu0 %v1928
    %2919 = vmatprep.subr.bf16.mxu0 %v1937
    %2920 = vmatpush1.bf16.msra.mxu0 %v1936
    %2921 = vmatprep.subr.bf16.mxu0 %v1945
    %2922 = vmatpush1.bf16.msra.mxu0 %v1944
    %2923 = vmatprep.subr.bf16.mxu0 %v1953
    %2924 = vmatpush1.bf16.msra.mxu0 %v1952
    %2925 = vmatprep.subr.bf16.mxu0 %v1961
    %2926 = vmatpush1.bf16.msra.mxu0 %v1960
    %2927 = vmatprep.subr.bf16.mxu0 %v1969
    %2928 = vmatpush1.bf16.msra.mxu0 %v1968
    %2929 = vmatprep.subr.bf16.mxu0 %v1977
    %2930 = vmatpush1.bf16.msra.mxu0 %v1976
    %2931 = vmatprep.mubr.bf16.mxu0 %v152
    %2932 = vmatmul.mubr.bf16.gmra.mrb[0].mxu0 %v151
    %v2933 = vpop.f32.mrb[0].mxu0
    %v2934 = vadd.f32 %v2891, %v2933
    %v2935 = vpop.f32.mrb[0].mxu0
    %v2936 = vadd.f32 %v2893, %v2935
    %v2937 = vpop.f32.mrb[0].mxu0
    %v2938 = vadd.f32 %v2895, %v2937
    %v2939 = vpop.f32.mrb[0].mxu0
    %v2940 = vadd.f32 %v2897, %v2939
    %2941 = vdwg.mxu0
    %2942 = vmatprep.subr.bf16.mxu0 %v1985
    %2943 = vmatpush1.bf16.msra.mxu0 %v1984
    %2944 = vmatprep.subr.bf16.mxu0 %v1993
    %2945 = vmatpush1.bf16.msra.mxu0 %v1992
    %2946 = vmatprep.subr.bf16.mxu0 %v2001
    %2947 = vmatpush1.bf16.msra.mxu0 %v2000
    %2948 = vmatprep.subr.bf16.mxu0 %v2009
    %2949 = vmatpush1.bf16.msra.mxu0 %v2008
    %2950 = vmatprep.subr.bf16.mxu0 %v2017
    %2951 = vmatpush1.bf16.msra.mxu0 %v2016
    %2952 = vmatprep.subr.bf16.mxu0 %v2025
    %2953 = vmatpush1.bf16.msra.mxu0 %v2024
    %2954 = vmatprep.subr.bf16.mxu0 %v2033
    %2955 = vmatpush1.bf16.msra.mxu0 %v2032
    %2956 = vmatprep.subr.bf16.mxu0 %v2041
    %2957 = vmatpush1.bf16.msra.mxu0 %v2040
    %2958 = vmatprep.subr.bf16.mxu0 %v2049
    %2959 = vmatpush1.bf16.msra.mxu0 %v2048
    %2960 = vmatprep.subr.bf16.mxu0 %v2057
    %2961 = vmatpush1.bf16.msra.mxu0 %v2056
    %2962 = vmatprep.subr.bf16.mxu0 %v2065
    %2963 = vmatpush1.bf16.msra.mxu0 %v2064
    %2964 = vmatprep.subr.bf16.mxu0 %v2073
    %2965 = vmatpush1.bf16.msra.mxu0 %v2072
    %2966 = vmatprep.subr.bf16.mxu0 %v2081
    %2967 = vmatpush1.bf16.msra.mxu0 %v2080
    %2968 = vmatprep.subr.bf16.mxu0 %v2089
    %2969 = vmatpush1.bf16.msra.mxu0 %v2088
    %2970 = vmatprep.subr.bf16.mxu0 %v2097
    %2971 = vmatpush1.bf16.msra.mxu0 %v2096
    %2972 = vmatprep.subr.bf16.mxu0 %v2105
    %2973 = vmatpush1.bf16.msra.mxu0 %v2104
    %2974 = vmatprep.mubr.bf16.mxu0 %v154
    %2975 = vmatmul.mubr.bf16.gmra.mrb[0].mxu0 %v153
    %v2976 = vpop.f32.mrb[0].mxu0
    %v2977 = vadd.f32 %v2934, %v2976
    %v2978 = vpop.f32.mrb[0].mxu0
    %v2979 = vadd.f32 %v2936, %v2978
    %v2980 = vpop.f32.mrb[0].mxu0
    %v2981 = vadd.f32 %v2938, %v2980
    %v2982 = vpop.f32.mrb[0].mxu0
    %v2983 = vadd.f32 %v2940, %v2982
    %2984 = vdwg.mxu0
    %2985 = vmatprep.subr.bf16.mxu0 %v2113
    %2986 = vmatpush1.bf16.msra.mxu0 %v2112
    %2987 = vmatprep.subr.bf16.mxu0 0
    %2988 = vmatpush1.bf16.msra.mxu0 0
    %2989 = vmatprep.subr.bf16.mxu0 0
    %2990 = vmatpush1.bf16.msra.mxu0 0
    %2991 = vmatprep.subr.bf16.mxu0 0
    %2992 = vmatpush1.bf16.msra.mxu0 0
    %2993 = vmatprep.subr.bf16.mxu0 0
    %2994 = vmatpush1.bf16.msra.mxu0 0
    %2995 = vmatprep.subr.bf16.mxu0 0
    %2996 = vmatpush1.bf16.msra.mxu0 0
    %2997 = vmatprep.subr.bf16.mxu0 0
    %2998 = vmatpush1.bf16.msra.mxu0 0
    %2999 = vmatprep.subr.bf16.mxu0 0
    %3000 = vmatpush1.bf16.msra.mxu0 0
    %3001 = vmatprep.subr.bf16.mxu0 0
    %3002 = vmatpush1.bf16.msra.mxu0 0
    %3003 = vmatprep.subr.bf16.mxu0 0
    %3004 = vmatpush1.bf16.msra.mxu0 0
    %3005 = vmatprep.subr.bf16.mxu0 0
    %3006 = vmatpush1.bf16.msra.mxu0 0
    %3007 = vmatprep.subr.bf16.mxu0 0
    %3008 = vmatpush1.bf16.msra.mxu0 0
    %3009 = vmatprep.subr.bf16.mxu0 0
    %3010 = vmatpush1.bf16.msra.mxu0 0
    %3011 = vmatprep.subr.bf16.mxu0 0
    %3012 = vmatpush1.bf16.msra.mxu0 0
    %3013 = vmatprep.subr.bf16.mxu0 0
    %3014 = vmatpush1.bf16.msra.mxu0 0
    %3015 = vmatprep.subr.bf16.mxu0 0
    %3016 = vmatpush1.bf16.msra.mxu0 0
    %3017 = vmatprep.mubr.bf16.mxu0 0
    %3018 = vmatmul.mubr.bf16.gmra.mrb[0].mxu0 %v2510
    %v3019 = vpop.f32.mrb[0].mxu0
    %v3020 = vadd.f32 %v2977, %v3019
    %v3021 = vpop.f32.mrb[0].mxu0
    %v3022 = vadd.f32 %v2979, %v3021
    %v3023 = vpop.f32.mrb[0].mxu0
    %v3024 = vadd.f32 %v2981, %v3023
    %v3025 = vpop.f32.mrb[0].mxu0
    %v3026 = vadd.f32 %v2983, %v3025
    %3027 = vdwg.mxu0
    %3028 = vmatprep.subr.bf16.mxu0 %v1731
    %3029 = vmatpush1.bf16.msra.mxu0 %v1730
    %3030 = vmatprep.subr.bf16.mxu0 %v1739
    %3031 = vmatpush1.bf16.msra.mxu0 %v1738
    %3032 = vmatprep.subr.bf16.mxu0 %v1747
    %3033 = vmatpush1.bf16.msra.mxu0 %v1746
    %3034 = vmatprep.subr.bf16.mxu0 %v1755
    %3035 = vmatpush1.bf16.msra.mxu0 %v1754
    %3036 = vmatprep.subr.bf16.mxu0 %v1763
    %3037 = vmatpush1.bf16.msra.mxu0 %v1762
    %3038 = vmatprep.subr.bf16.mxu0 %v1771
    %3039 = vmatpush1.bf16.msra.mxu0 %v1770
    %3040 = vmatprep.subr.bf16.mxu0 %v1779
    %3041 = vmatpush1.bf16.msra.mxu0 %v1778
    %3042 = vmatprep.subr.bf16.mxu0 %v1787
    %3043 = vmatpush1.bf16.msra.mxu0 %v1786
    %3044 = vmatprep.subr.bf16.mxu0 %v1795
    %3045 = vmatpush1.bf16.msra.mxu0 %v1794
    %3046 = vmatprep.subr.bf16.mxu0 %v1803
    %3047 = vmatpush1.bf16.msra.mxu0 %v1802
    %3048 = vmatprep.subr.bf16.mxu0 %v1811
    %3049 = vmatpush1.bf16.msra.mxu0 %v1810
    %3050 = vmatprep.subr.bf16.mxu0 %v1819
    %3051 = vmatpush1.bf16.msra.mxu0 %v1818
    %3052 = vmatprep.subr.bf16.mxu0 %v1827
    %3053 = vmatpush1.bf16.msra.mxu0 %v1826
    %3054 = vmatprep.subr.bf16.mxu0 %v1835
    %3055 = vmatpush1.bf16.msra.mxu0 %v1834
    %3056 = vmatprep.subr.bf16.mxu0 %v1843
    %3057 = vmatpush1.bf16.msra.mxu0 %v1842
    %3058 = vmatprep.subr.bf16.mxu0 %v1851
    %3059 = vmatpush1.bf16.msra.mxu0 %v1850
    %3060 = vmatprep.mubr.bf16.mxu0 %v150
    %3061 = vmatmul.mubr.bf16.gmra.mrb[0].mxu0 %v149
    %v3062 = vpop.f32.mrb[0].mxu0
    %v3063 = vadd.f32 0.0, %v3062
    %v3064 = vpop.f32.mrb[0].mxu0
    %v3065 = vadd.f32 0.0, %v3064
    %v3066 = vpop.f32.mrb[0].mxu0
    %v3067 = vadd.f32 0.0, %v3066
    %v3068 = vpop.f32.mrb[0].mxu0
    %v3069 = vadd.f32 0.0, %v3068
    %3070 = vdwg.mxu0
    %3071 = vmatprep.subr.bf16.mxu0 %v1859
    %3072 = vmatpush1.bf16.msra.mxu0 %v1858
    %3073 = vmatprep.subr.bf16.mxu0 %v1867
    %3074 = vmatpush1.bf16.msra.mxu0 %v1866
    %3075 = vmatprep.subr.bf16.mxu0 %v1875
    %3076 = vmatpush1.bf16.msra.mxu0 %v1874
    %3077 = vmatprep.subr.bf16.mxu0 %v1883
    %3078 = vmatpush1.bf16.msra.mxu0 %v1882
    %3079 = vmatprep.subr.bf16.mxu0 %v1891
    %3080 = vmatpush1.bf16.msra.mxu0 %v1890
    %3081 = vmatprep.subr.bf16.mxu0 %v1899
    %3082 = vmatpush1.bf16.msra.mxu0 %v1898
    %3083 = vmatprep.subr.bf16.mxu0 %v1907
    %3084 = vmatpush1.bf16.msra.mxu0 %v1906
    %3085 = vmatprep.subr.bf16.mxu0 %v1915
    %3086 = vmatpush1.bf16.msra.mxu0 %v1914
    %3087 = vmatprep.subr.bf16.mxu0 %v1923
    %3088 = vmatpush1.bf16.msra.mxu0 %v1922
    %3089 = vmatprep.subr.bf16.mxu0 %v1931
    %3090 = vmatpush1.bf16.msra.mxu0 %v1930
    %3091 = vmatprep.subr.bf16.mxu0 %v1939
    %3092 = vmatpush1.bf16.msra.mxu0 %v1938
    %3093 = vmatprep.subr.bf16.mxu0 %v1947
    %3094 = vmatpush1.bf16.msra.mxu0 %v1946
    %3095 = vmatprep.subr.bf16.mxu0 %v1955
    %3096 = vmatpush1.bf16.msra.mxu0 %v1954
    %3097 = vmatprep.subr.bf16.mxu0 %v1963
    %3098 = vmatpush1.bf16.msra.mxu0 %v1962
    %3099 = vmatprep.subr.bf16.mxu0 %v1971
    %3100 = vmatpush1.bf16.msra.mxu0 %v1970
    %3101 = vmatprep.subr.bf16.mxu0 %v1979
    %3102 = vmatpush1.bf16.msra.mxu0 %v1978
    %3103 = vmatprep.mubr.bf16.mxu0 %v152
    %3104 = vmatmul.mubr.bf16.gmra.mrb[0].mxu0 %v151
    %v3105 = vpop.f32.mrb[0].mxu0
    %v3106 = vadd.f32 %v3063, %v3105
    %v3107 = vpop.f32.mrb[0].mxu0
    %v3108 = vadd.f32 %v3065, %v3107
    %v3109 = vpop.f32.mrb[0].mxu0
    %v3110 = vadd.f32 %v3067, %v3109
    %v3111 = vpop.f32.mrb[0].mxu0
    %v3112 = vadd.f32 %v3069, %v3111
    %3113 = vdwg.mxu0
    %3114 = vmatprep.subr.bf16.mxu0 %v1987
    %3115 = vmatpush1.bf16.msra.mxu0 %v1986
    %3116 = vmatprep.subr.bf16.mxu0 %v1995
    %3117 = vmatpush1.bf16.msra.mxu0 %v1994
    %3118 = vmatprep.subr.bf16.mxu0 %v2003
    %3119 = vmatpush1.bf16.msra.mxu0 %v2002
    %3120 = vmatprep.subr.bf16.mxu0 %v2011
    %3121 = vmatpush1.bf16.msra.mxu0 %v2010
    %3122 = vmatprep.subr.bf16.mxu0 %v2019
    %3123 = vmatpush1.bf16.msra.mxu0 %v2018
    %3124 = vmatprep.subr.bf16.mxu0 %v2027
    %3125 = vmatpush1.bf16.msra.mxu0 %v2026
    %3126 = vmatprep.subr.bf16.mxu0 %v2035
    %3127 = vmatpush1.bf16.msra.mxu0 %v2034
    %3128 = vmatprep.subr.bf16.mxu0 %v2043
    %3129 = vmatpush1.bf16.msra.mxu0 %v2042
    %3130 = vmatprep.subr.bf16.mxu0 %v2051
    %3131 = vmatpush1.bf16.msra.mxu0 %v2050
    %3132 = vmatprep.subr.bf16.mxu0 %v2059
    %3133 = vmatpush1.bf16.msra.mxu0 %v2058
    %3134 = vmatprep.subr.bf16.mxu0 %v2067
    %3135 = vmatpush1.bf16.msra.mxu0 %v2066
    %3136 = vmatprep.subr.bf16.mxu0 %v2075
    %3137 = vmatpush1.bf16.msra.mxu0 %v2074
    %3138 = vmatprep.subr.bf16.mxu0 %v2083
    %3139 = vmatpush1.bf16.msra.mxu0 %v2082
    %3140 = vmatprep.subr.bf16.mxu0 %v2091
    %3141 = vmatpush1.bf16.msra.mxu0 %v2090
    %3142 = vmatprep.subr.bf16.mxu0 %v2099
    %3143 = vmatpush1.bf16.msra.mxu0 %v2098
    %3144 = vmatprep.subr.bf16.mxu0 %v2107
    %3145 = vmatpush1.bf16.msra.mxu0 %v2106
    %3146 = vmatprep.mubr.bf16.mxu0 %v154
    %3147 = vmatmul.mubr.bf16.gmra.mrb[0].mxu0 %v153
    %v3148 = vpop.f32.mrb[0].mxu0
    %v3149 = vadd.f32 %v3106, %v3148
    %v3150 = vpop.f32.mrb[0].mxu0
    %v3151 = vadd.f32 %v3108, %v3150
    %v3152 = vpop.f32.mrb[0].mxu0
    %v3153 = vadd.f32 %v3110, %v3152
    %v3154 = vpop.f32.mrb[0].mxu0
    %v3155 = vadd.f32 %v3112, %v3154
    %3156 = vdwg.mxu0
    %3157 = vmatprep.subr.bf16.mxu0 %v2115
    %3158 = vmatpush1.bf16.msra.mxu0 %v2114
    %3159 = vmatprep.subr.bf16.mxu0 0
    %3160 = vmatpush1.bf16.msra.mxu0 0
    %3161 = vmatprep.subr.bf16.mxu0 0
    %3162 = vmatpush1.bf16.msra.mxu0 0
    %3163 = vmatprep.subr.bf16.mxu0 0
    %3164 = vmatpush1.bf16.msra.mxu0 0
    %3165 = vmatprep.subr.bf16.mxu0 0
    %3166 = vmatpush1.bf16.msra.mxu0 0
    %3167 = vmatprep.subr.bf16.mxu0 0
    %3168 = vmatpush1.bf16.msra.mxu0 0
    %3169 = vmatprep.subr.bf16.mxu0 0
    %3170 = vmatpush1.bf16.msra.mxu0 0
    %3171 = vmatprep.subr.bf16.mxu0 0
    %3172 = vmatpush1.bf16.msra.mxu0 0
    %3173 = vmatprep.subr.bf16.mxu0 0
    %3174 = vmatpush1.bf16.msra.mxu0 0
    %3175 = vmatprep.subr.bf16.mxu0 0
    %3176 = vmatpush1.bf16.msra.mxu0 0
    %3177 = vmatprep.subr.bf16.mxu0 0
    %3178 = vmatpush1.bf16.msra.mxu0 0
    %3179 = vmatprep.subr.bf16.mxu0 0
    %3180 = vmatpush1.bf16.msra.mxu0 0
    %3181 = vmatprep.subr.bf16.mxu0 0
    %3182 = vmatpush1.bf16.msra.mxu0 0
    %3183 = vmatprep.subr.bf16.mxu0 0
    %3184 = vmatpush1.bf16.msra.mxu0 0
    %3185 = vmatprep.subr.bf16.mxu0 0
    %3186 = vmatpush1.bf16.msra.mxu0 0
    %3187 = vmatprep.subr.bf16.mxu0 0
    %3188 = vmatpush1.bf16.msra.mxu0 0
    %3189 = vmatprep.mubr.bf16.mxu0 0
    %3190 = vmatmul.mubr.bf16.gmra.mrb[0].mxu0 %v2510
    %v3191 = vpop.f32.mrb[0].mxu0
    %v3192 = vadd.f32 %v3149, %v3191
    %v3193 = vpop.f32.mrb[0].mxu0
    %v3194 = vadd.f32 %v3151, %v3193
    %v3195 = vpop.f32.mrb[0].mxu0
    %v3196 = vadd.f32 %v3153, %v3195
    %v3197 = vpop.f32.mrb[0].mxu0
    %v3198 = vadd.f32 %v3155, %v3197
    %3199 = vdwg.mxu0
    %v3200 = vpack.c.bf16 %v2680, %v2676
    %v3201 = vpack.c.bf16 %v2682, %v2678
    %v3202 = vpack.c.bf16 %v2852, %v2848
    %v3203 = vpack.c.bf16 %v2854, %v2850
    %v3204 = vpack.c.bf16 %v3024, %v3020
    %v3205 = vpack.c.bf16 %v3026, %v3022
    %v3206 = vpack.c.bf16 %v3196, %v3192
    %v3207 = vpack.c.bf16 %v3198, %v3194
    %v3208 = vld [vmem:[#allocation4] sm:$0xff]
    %v3210 = vcombine.high %v3208, %v3208
    %v3212 = vunpack.c.l.s4 1966171168
    %v3213 = vunpack.c.0.s8 %v3212
    %v3214 = vlaneseq
    %v3215 = vshrl.u32 %v3214, 7
    %v3216 = vsub.s32 %v3213, %v3215
    %v3217 = vrot.slane %v3208, %v3216
    %v3219 = vunpack.c.l.s4 1966171168
    %v3220 = vunpack.c.0.s8 %v3219
    %v3221 = vlaneseq
    %v3222 = vshrl.u32 %v3221, 7
    %v3223 = vsub.s32 %v3220, %v3222
    %v3224 = vrot.slane %v3210, %v3223
    %v3225 = vcombine.high %v3217, %v3217
    %v3226 = vcombine.high %v3224, %v3224
    %v3228 = vunpack.c.l.s4 1966171168
    %v3229 = vunpack.c.0.s8 %v3228
    %v3230 = vlaneseq
    %v3231 = vshrl.u32 %v3230, 7
    %v3232 = vsub.s32 %v3229, %v3231
    %v3233 = vrot.slane %v3217, %v3232
    %v3235 = vunpack.c.l.s4 1966171168
    %v3236 = vunpack.c.0.s8 %v3235
    %v3237 = vlaneseq
    %v3238 = vshrl.u32 %v3237, 7
    %v3239 = vsub.s32 %v3236, %v3238
    %v3240 = vrot.slane %v3224, %v3239
    %v3242 = vunpack.c.l.s4 1966171168
    %v3243 = vunpack.c.0.s8 %v3242
    %v3244 = vlaneseq
    %v3245 = vshrl.u32 %v3244, 7
    %v3246 = vsub.s32 %v3243, %v3245
    %v3247 = vrot.slane %v3225, %v3246
    %v3249 = vunpack.c.l.s4 1966171168
    %v3250 = vunpack.c.0.s8 %v3249
    %v3251 = vlaneseq
    %v3252 = vshrl.u32 %v3251, 7
    %v3253 = vsub.s32 %v3250, %v3252
    %v3254 = vrot.slane %v3226, %v3253
    %v3255 = vcombine.high %v3233, %v3233
    %v3256 = vcombine.high %v3240, %v3240
    %v3257 = vcombine.high %v3247, %v3247
    %v3258 = vcombine.high %v3254, %v3254
    %v3260 = vpack.i.b16 %v3233, %v3233
    %v3262 = vlaneseq
    %v3263 = vshrl.u32 %v3262, 7
    %v3264 = vsub.s32 0, %v3263
    %v3265 = vrot.slane %v3260, %v3264
    %v3267 = vpack.i.b16 %v3247, %v3247
    %v3269 = vlaneseq
    %v3270 = vshrl.u32 %v3269, 7
    %v3271 = vsub.s32 0, %v3270
    %v3272 = vrot.slane %v3267, %v3271
    %v3274 = vpack.i.b16 %v3255, %v3255
    %v3276 = vlaneseq
    %v3277 = vshrl.u32 %v3276, 7
    %v3278 = vsub.s32 0, %v3277
    %v3279 = vrot.slane %v3274, %v3278
    %v3281 = vpack.i.b16 %v3257, %v3257
    %v3283 = vlaneseq
    %v3284 = vshrl.u32 %v3283, 7
    %v3285 = vsub.s32 0, %v3284
    %v3286 = vrot.slane %v3281, %v3285
    %v3288 = vpack.i.b16 %v3240, %v3240
    %v3290 = vlaneseq
    %v3291 = vshrl.u32 %v3290, 7
    %v3292 = vsub.s32 0, %v3291
    %v3293 = vrot.slane %v3288, %v3292
    %v3295 = vpack.i.b16 %v3254, %v3254
    %v3297 = vlaneseq
    %v3298 = vshrl.u32 %v3297, 7
    %v3299 = vsub.s32 0, %v3298
    %v3300 = vrot.slane %v3295, %v3299
    %v3302 = vpack.i.b16 %v3256, %v3256
    %v3304 = vlaneseq
    %v3305 = vshrl.u32 %v3304, 7
    %v3306 = vsub.s32 0, %v3305
    %v3307 = vrot.slane %v3302, %v3306
    %v3309 = vpack.i.b16 %v3258, %v3258
    %v3311 = vlaneseq
    %v3312 = vshrl.u32 %v3311, 7
    %v3313 = vsub.s32 0, %v3312
    %v3314 = vrot.slane %v3309, %v3313
    %v3315 = vadd.bf16 %v3200, %v3265
    %v3316 = vadd.bf16 %v3201, %v3272
    %v3317 = vadd.bf16 %v3202, %v3279
    %v3318 = vadd.bf16 %v3203, %v3286
    %v3319 = vadd.bf16 %v3204, %v3293
    %v3320 = vadd.bf16 %v3205, %v3300
    %v3321 = vadd.bf16 %v3206, %v3307
    %v3322 = vadd.bf16 %v3207, %v3314
    %vm3323 = vcmp.gt.bf16.partialorder %v3315, 0
    %vm3324 = vcmp.gt.bf16.partialorder %v3316, 0
    %vm3325 = vcmp.gt.bf16.partialorder %v3317, 0
    %vm3326 = vcmp.gt.bf16.partialorder %v3318, 0
    %vm3327 = vcmp.gt.bf16.partialorder %v3319, 0
    %vm3328 = vcmp.gt.bf16.partialorder %v3320, 0
    %vm3329 = vcmp.gt.bf16.partialorder %v3321, 0
    %vm3330 = vcmp.gt.bf16.partialorder %v3322, 0
    %v3331 = vmul.bf16 %v3315, 1045249613
    %v3332 = vmul.bf16 %v3316, 1045249613
    %v3333 = vmul.bf16 %v3317, 1045249613
    %v3334 = vmul.bf16 %v3318, 1045249613
    %v3335 = vmul.bf16 %v3319, 1045249613
    %v3336 = vmul.bf16 %v3320, 1045249613
    %v3337 = vmul.bf16 %v3321, 1045249613
    %v3338 = vmul.bf16 %v3322, 1045249613
    %v3339 = vsel %vm3323, %v3315, %v3331
    %v3340 = vsel %vm3324, %v3316, %v3332
    %v3341 = vsel %vm3325, %v3317, %v3333
    %v3342 = vsel %vm3326, %v3318, %v3334
    %v3343 = vsel %vm3327, %v3319, %v3335
    %v3344 = vsel %vm3328, %v3320, %v3336
    %v3345 = vsel %vm3329, %v3321, %v3337
    %v3346 = vsel %vm3330, %v3322, %v3338
    %v3347 = vld [vmem:[#allocation6] sm:$0xff]
    %v3348 = vld [vmem:[#allocation6 + $0x8] sm:$0xff]
    %v3349 = vld [vmem:[#allocation6 + $0x10] sm:$0xff]
    %v3350 = vld [vmem:[#allocation6 + $0x18] sm:$0xff]
    %v3351 = vld [vmem:[#allocation6 + $0x20] sm:$0xff]
    %v3352 = vld [vmem:[#allocation6 + $0x28] sm:$0xff]
    %v3353 = vld [vmem:[#allocation6 + $0x30] sm:$0xff]
    %v3354 = vld [vmem:[#allocation6 + $0x38] sm:$0xff]
    %v3355 = vld [vmem:[#allocation6 + $0x40] sm:$0xff]
    %v3356 = vld [vmem:[#allocation6 + $0x48] sm:$0xff]
    %v3357 = vld [vmem:[#allocation6 + $0x50] sm:$0xff]
    %v3358 = vld [vmem:[#allocation6 + $0x58] sm:$0xff]
    %v3359 = vld [vmem:[#allocation6 + $0x60] sm:$0xff]
    %v3360 = vld [vmem:[#allocation6 + $0x68] sm:$0xff]
    %v3361 = vld [vmem:[#allocation6 + $0x70] sm:$0xff]
    %v3362 = vld [vmem:[#allocation6 + $0x78] sm:$0xff]
    %v3363 = vld [vmem:[#allocation6 + $0x80] sm:$0xff]
    %v3364 = vld [vmem:[#allocation6 + $0x88] sm:$0xff]
    %v3365 = vld [vmem:[#allocation6 + $0x90] sm:$0xff]
    %v3366 = vld [vmem:[#allocation6 + $0x98] sm:$0xff]
    %v3367 = vld [vmem:[#allocation6 + $0xa0] sm:$0xff]
    %v3368 = vld [vmem:[#allocation6 + $0xa8] sm:$0xff]
    %v3369 = vld [vmem:[#allocation6 + $0xb0] sm:$0xff]
    %v3370 = vld [vmem:[#allocation6 + $0xb8] sm:$0xff]
    %v3371 = vld [vmem:[#allocation6 + $0xc0] sm:$0xff]
    %v3372 = vld [vmem:[#allocation6 + $0xc8] sm:$0xff]
    %v3373 = vld [vmem:[#allocation6 + $0xd0] sm:$0xff]
    %v3374 = vld [vmem:[#allocation6 + $0xd8] sm:$0xff]
    %v3375 = vld [vmem:[#allocation6 + $0xe0] sm:$0xff]
    %v3376 = vld [vmem:[#allocation6 + $0xe8] sm:$0xff]
    %v3377 = vld [vmem:[#allocation6 + $0xf0] sm:$0xff]
    %v3378 = vld [vmem:[#allocation6 + $0xf8] sm:$0xff]
    %v3379 = vld [vmem:[#allocation6 + $0x100] sm:$0xff]
    %v3380 = vld [vmem:[#allocation6 + $0x108] sm:$0xff]
    %v3381 = vld [vmem:[#allocation6 + $0x110] sm:$0xff]
    %v3382 = vld [vmem:[#allocation6 + $0x118] sm:$0xff]
    %v3383 = vld [vmem:[#allocation6 + $0x120] sm:$0xff]
    %v3384 = vld [vmem:[#allocation6 + $0x128] sm:$0xff]
    %v3385 = vld [vmem:[#allocation6 + $0x130] sm:$0xff]
    %v3386 = vld [vmem:[#allocation6 + $0x138] sm:$0xff]
    %v3387 = vld [vmem:[#allocation6 + $0x140] sm:$0xff]
    %v3388 = vld [vmem:[#allocation6 + $0x148] sm:$0xff]
    %v3389 = vld [vmem:[#allocation6 + $0x150] sm:$0xff]
    %v3390 = vld [vmem:[#allocation6 + $0x158] sm:$0xff]
    %v3391 = vld [vmem:[#allocation6 + $0x160] sm:$0xff]
    %v3392 = vld [vmem:[#allocation6 + $0x168] sm:$0xff]
    %v3393 = vld [vmem:[#allocation6 + $0x170] sm:$0xff]
    %v3394 = vld [vmem:[#allocation6 + $0x178] sm:$0xff]
    %v3395 = vld [vmem:[#allocation6 + $0x180] sm:$0xff]
    %v3396 = vld [vmem:[#allocation6 + $0x188] sm:$0xff]
    %v3397 = vld [vmem:[#allocation6 + $0x190] sm:$0xff]
    %v3398 = vld [vmem:[#allocation6 + $0x198] sm:$0xff]
    %v3399 = vld [vmem:[#allocation6 + $0x1a0] sm:$0xff]
    %v3400 = vld [vmem:[#allocation6 + $0x1a8] sm:$0xff]
    %v3401 = vld [vmem:[#allocation6 + $0x1b0] sm:$0xff]
    %v3402 = vld [vmem:[#allocation6 + $0x1b8] sm:$0xff]
    %v3403 = vld [vmem:[#allocation6 + $0x1c0] sm:$0xff]
    %v3404 = vld [vmem:[#allocation6 + $0x1c8] sm:$0xff]
    %v3405 = vld [vmem:[#allocation6 + $0x1d0] sm:$0xff]
    %v3406 = vld [vmem:[#allocation6 + $0x1d8] sm:$0xff]
    %v3407 = vld [vmem:[#allocation6 + $0x1e0] sm:$0xff]
    %v3408 = vld [vmem:[#allocation6 + $0x1e8] sm:$0xff]
    %v3409 = vld [vmem:[#allocation6 + $0x1f0] sm:$0xff]
    %v3410 = vld [vmem:[#allocation6 + $0x1f8] sm:$0xff]
    %v3411 = vld [vmem:[#allocation6 + $0x200] sm:$0xff]
    %v3412 = vld [vmem:[#allocation6 + $0x208] sm:$0xff]
    %v3413 = vld [vmem:[#allocation6 + $0x210] sm:$0xff]
    %v3414 = vld [vmem:[#allocation6 + $0x218] sm:$0xff]
    %v3415 = vld [vmem:[#allocation6 + $0x220] sm:$0xff]
    %v3416 = vld [vmem:[#allocation6 + $0x228] sm:$0xff]
    %v3417 = vld [vmem:[#allocation6 + $0x230] sm:$0xff]
    %v3418 = vld [vmem:[#allocation6 + $0x238] sm:$0xff]
    %v3419 = vld [vmem:[#allocation6 + $0x240] sm:$0xff]
    %v3420 = vld [vmem:[#allocation6 + $0x248] sm:$0xff]
    %v3421 = vld [vmem:[#allocation6 + $0x250] sm:$0xff]
    %v3422 = vld [vmem:[#allocation6 + $0x258] sm:$0xff]
    %v3423 = vld [vmem:[#allocation6 + $0x260] sm:$0xff]
    %v3424 = vld [vmem:[#allocation6 + $0x268] sm:$0xff]
    %v3425 = vld [vmem:[#allocation6 + $0x270] sm:$0xff]
    %v3426 = vld [vmem:[#allocation6 + $0x278] sm:$0xff]
    %v3427 = vld [vmem:[#allocation6 + $0x280] sm:$0xff]
    %v3428 = vld [vmem:[#allocation6 + $0x288] sm:$0xff]
    %v3429 = vld [vmem:[#allocation6 + $0x290] sm:$0xff]
    %v3430 = vld [vmem:[#allocation6 + $0x298] sm:$0xff]
    %v3431 = vld [vmem:[#allocation6 + $0x2a0] sm:$0xff]
    %v3432 = vld [vmem:[#allocation6 + $0x2a8] sm:$0xff]
    %v3433 = vld [vmem:[#allocation6 + $0x2b0] sm:$0xff]
    %v3434 = vld [vmem:[#allocation6 + $0x2b8] sm:$0xff]
    %v3435 = vld [vmem:[#allocation6 + $0x2c0] sm:$0xff]
    %v3436 = vld [vmem:[#allocation6 + $0x2c8] sm:$0xff]
    %v3437 = vld [vmem:[#allocation6 + $0x2d0] sm:$0xff]
    %v3438 = vld [vmem:[#allocation6 + $0x2d8] sm:$0xff]
    %v3439 = vld [vmem:[#allocation6 + $0x2e0] sm:$0xff]
    %v3440 = vld [vmem:[#allocation6 + $0x2e8] sm:$0xff]
    %v3441 = vld [vmem:[#allocation6 + $0x2f0] sm:$0xff]
    %v3442 = vld [vmem:[#allocation6 + $0x2f8] sm:$0xff]
    %v3443 = vld [vmem:[#allocation6 + $0x300] sm:$0xff]
    %v3444 = vld [vmem:[#allocation6 + $0x308] sm:$0xff]
    %v3445 = vld [vmem:[#allocation6 + $0x310] sm:$0xff]
    %v3446 = vld [vmem:[#allocation6 + $0x318] sm:$0xff]
    %v3447 = vld [vmem:[#allocation6 + $0x320] sm:$0xff]
    %v3448 = vld [vmem:[#allocation6 + $0x328] sm:$0xff]
    %v3449 = vld [vmem:[#allocation6 + $0x330] sm:$0xff]
    %v3450 = vld [vmem:[#allocation6 + $0x338] sm:$0xff]
    %v3451 = vld [vmem:[#allocation6 + $0x340] sm:$0xff]
    %v3452 = vld [vmem:[#allocation6 + $0x348] sm:$0xff]
    %v3453 = vld [vmem:[#allocation6 + $0x350] sm:$0xff]
    %v3454 = vld [vmem:[#allocation6 + $0x358] sm:$0xff]
    %v3455 = vld [vmem:[#allocation6 + $0x360] sm:$0xff]
    %v3456 = vld [vmem:[#allocation6 + $0x368] sm:$0xff]
    %v3457 = vld [vmem:[#allocation6 + $0x370] sm:$0xff]
    %v3458 = vld [vmem:[#allocation6 + $0x378] sm:$0xff]
    %v3459 = vld [vmem:[#allocation6 + $0x380] sm:$0xff]
    %v3460 = vld [vmem:[#allocation6 + $0x388] sm:$0xff]
    %v3461 = vld [vmem:[#allocation6 + $0x390] sm:$0xff]
    %v3462 = vld [vmem:[#allocation6 + $0x398] sm:$0xff]
    %v3463 = vld [vmem:[#allocation6 + $0x3a0] sm:$0xff]
    %v3464 = vld [vmem:[#allocation6 + $0x3a8] sm:$0xff]
    %v3465 = vld [vmem:[#allocation6 + $0x3b0] sm:$0xff]
    %v3466 = vld [vmem:[#allocation6 + $0x3b8] sm:$0xff]
    %v3467 = vld [vmem:[#allocation6 + $0x3c0] sm:$0xff]
    %v3468 = vld [vmem:[#allocation6 + $0x3c8] sm:$0xff]
    %v3469 = vld [vmem:[#allocation6 + $0x3d0] sm:$0xff]
    %v3470 = vld [vmem:[#allocation6 + $0x3d8] sm:$0xff]
    %v3471 = vld [vmem:[#allocation6 + $0x3e0] sm:$0xff]
    %v3472 = vld [vmem:[#allocation6 + $0x3e8] sm:$0xff]
    %v3473 = vld [vmem:[#allocation6 + $0x3f0] sm:$0xff]
    %v3474 = vld [vmem:[#allocation6 + $0x3f8] sm:$0xff]
    %v3475 = vld [vmem:[#allocation6 + $0x400] sm:$0xff]
    %v3476 = vld [vmem:[#allocation6 + $0x408] sm:$0xff]
    %v3477 = vld [vmem:[#allocation6 + $0x410] sm:$0xff]
    %v3478 = vld [vmem:[#allocation6 + $0x418] sm:$0xff]
    %v3479 = vld [vmem:[#allocation6 + $0x420] sm:$0xff]
    %v3480 = vld [vmem:[#allocation6 + $0x428] sm:$0xff]
    %v3481 = vld [vmem:[#allocation6 + $0x430] sm:$0xff]
    %v3482 = vld [vmem:[#allocation6 + $0x438] sm:$0xff]
    %v3483 = vld [vmem:[#allocation6 + $0x440] sm:$0xff]
    %v3484 = vld [vmem:[#allocation6 + $0x448] sm:$0xff]
    %v3485 = vld [vmem:[#allocation6 + $0x450] sm:$0xff]
    %v3486 = vld [vmem:[#allocation6 + $0x458] sm:$0xff]
    %v3487 = vld [vmem:[#allocation6 + $0x460] sm:$0xff]
    %v3488 = vld [vmem:[#allocation6 + $0x468] sm:$0xff]
    %v3489 = vld [vmem:[#allocation6 + $0x470] sm:$0xff]
    %v3490 = vld [vmem:[#allocation6 + $0x478] sm:$0xff]
    %v3491 = vld [vmem:[#allocation6 + $0x480] sm:$0xff]
    %v3492 = vld [vmem:[#allocation6 + $0x488] sm:$0xff]
    %v3493 = vld [vmem:[#allocation6 + $0x490] sm:$0xff]
    %v3494 = vld [vmem:[#allocation6 + $0x498] sm:$0xff]
    %v3495 = vld [vmem:[#allocation6 + $0x4a0] sm:$0xff]
    %v3496 = vld [vmem:[#allocation6 + $0x4a8] sm:$0xff]
    %v3497 = vld [vmem:[#allocation6 + $0x4b0] sm:$0xff]
    %v3498 = vld [vmem:[#allocation6 + $0x4b8] sm:$0xff]
    %v3499 = vld [vmem:[#allocation6 + $0x4c0] sm:$0xff]
    %v3500 = vld [vmem:[#allocation6 + $0x4c8] sm:$0xff]
    %v3501 = vld [vmem:[#allocation6 + $0x4d0] sm:$0xff]
    %v3502 = vld [vmem:[#allocation6 + $0x4d8] sm:$0xff]
    %v3503 = vld [vmem:[#allocation6 + $0x4e0] sm:$0xff]
    %v3504 = vld [vmem:[#allocation6 + $0x4e8] sm:$0xff]
    %v3505 = vld [vmem:[#allocation6 + $0x4f0] sm:$0xff]
    %v3506 = vld [vmem:[#allocation6 + $0x4f8] sm:$0xff]
    %v3507 = vld [vmem:[#allocation6 + $0x500] sm:$0xff]
    %v3508 = vld [vmem:[#allocation6 + $0x508] sm:$0xff]
    %v3509 = vld [vmem:[#allocation6 + $0x510] sm:$0xff]
    %v3510 = vld [vmem:[#allocation6 + $0x518] sm:$0xff]
    %v3511 = vld [vmem:[#allocation6 + $0x520] sm:$0xff]
    %v3512 = vld [vmem:[#allocation6 + $0x528] sm:$0xff]
    %v3513 = vld [vmem:[#allocation6 + $0x530] sm:$0xff]
    %v3514 = vld [vmem:[#allocation6 + $0x538] sm:$0xff]
    %v3515 = vld [vmem:[#allocation6 + $0x540] sm:$0xff]
    %v3516 = vld [vmem:[#allocation6 + $0x548] sm:$0xff]
    %v3517 = vld [vmem:[#allocation6 + $0x550] sm:$0xff]
    %v3518 = vld [vmem:[#allocation6 + $0x558] sm:$0xff]
    %v3519 = vld [vmem:[#allocation6 + $0x560] sm:$0xff]
    %v3520 = vld [vmem:[#allocation6 + $0x568] sm:$0xff]
    %v3521 = vld [vmem:[#allocation6 + $0x570] sm:$0xff]
    %v3522 = vld [vmem:[#allocation6 + $0x578] sm:$0xff]
    %v3523 = vld [vmem:[#allocation6 + $0x580] sm:$0xff]
    %v3524 = vld [vmem:[#allocation6 + $0x588] sm:$0xff]
    %v3525 = vld [vmem:[#allocation6 + $0x590] sm:$0xff]
    %v3526 = vld [vmem:[#allocation6 + $0x598] sm:$0xff]
    %v3527 = vld [vmem:[#allocation6 + $0x5a0] sm:$0xff]
    %v3528 = vld [vmem:[#allocation6 + $0x5a8] sm:$0xff]
    %v3529 = vld [vmem:[#allocation6 + $0x5b0] sm:$0xff]
    %v3530 = vld [vmem:[#allocation6 + $0x5b8] sm:$0xff]
    %v3531 = vld [vmem:[#allocation6 + $0x5c0] sm:$0xff]
    %v3532 = vld [vmem:[#allocation6 + $0x5c8] sm:$0xff]
    %v3533 = vld [vmem:[#allocation6 + $0x5d0] sm:$0xff]
    %v3534 = vld [vmem:[#allocation6 + $0x5d8] sm:$0xff]
    %v3535 = vld [vmem:[#allocation6 + $0x5e0] sm:$0xff]
    %v3536 = vld [vmem:[#allocation6 + $0x5e8] sm:$0xff]
    %v3537 = vld [vmem:[#allocation6 + $0x5f0] sm:$0xff]
    %v3538 = vld [vmem:[#allocation6 + $0x5f8] sm:$0xff]
    %v3539 = vld [vmem:[#allocation6 + $0x600] sm:$0xff]
    %v3540 = vld [vmem:[#allocation6 + $0x608] sm:$0xff]
    %v3541 = vld [vmem:[#allocation6 + $0x610] sm:$0xff]
    %v3542 = vld [vmem:[#allocation6 + $0x618] sm:$0xff]
    %v3543 = vld [vmem:[#allocation6 + $0x620] sm:$0xff]
    %v3544 = vld [vmem:[#allocation6 + $0x628] sm:$0xff]
    %v3545 = vld [vmem:[#allocation6 + $0x630] sm:$0xff]
    %v3546 = vld [vmem:[#allocation6 + $0x638] sm:$0xff]
    %v3547 = vld [vmem:[#allocation6 + $0x640] sm:$0xff]
    %v3548 = vld [vmem:[#allocation6 + $0x648] sm:$0xff]
    %v3549 = vld [vmem:[#allocation6 + $0x650] sm:$0xff]
    %v3550 = vld [vmem:[#allocation6 + $0x658] sm:$0xff]
    %v3551 = vld [vmem:[#allocation6 + $0x660] sm:$0xff]
    %v3552 = vld [vmem:[#allocation6 + $0x668] sm:$0xff]
    %v3553 = vld [vmem:[#allocation6 + $0x670] sm:$0xff]
    %v3554 = vld [vmem:[#allocation6 + $0x678] sm:$0xff]
    %v3555 = vld [vmem:[#allocation6 + $0x680] sm:$0xff]
    %v3556 = vld [vmem:[#allocation6 + $0x688] sm:$0xff]
    %v3557 = vld [vmem:[#allocation6 + $0x690] sm:$0xff]
    %v3558 = vld [vmem:[#allocation6 + $0x698] sm:$0xff]
    %v3559 = vld [vmem:[#allocation6 + $0x6a0] sm:$0xff]
    %v3560 = vld [vmem:[#allocation6 + $0x6a8] sm:$0xff]
    %v3561 = vld [vmem:[#allocation6 + $0x6b0] sm:$0xff]
    %v3562 = vld [vmem:[#allocation6 + $0x6b8] sm:$0xff]
    %v3563 = vld [vmem:[#allocation6 + $0x6c0] sm:$0xff]
    %v3564 = vld [vmem:[#allocation6 + $0x6c8] sm:$0xff]
    %v3565 = vld [vmem:[#allocation6 + $0x6d0] sm:$0xff]
    %v3566 = vld [vmem:[#allocation6 + $0x6d8] sm:$0xff]
    %v3567 = vld [vmem:[#allocation6 + $0x6e0] sm:$0xff]
    %v3568 = vld [vmem:[#allocation6 + $0x6e8] sm:$0xff]
    %v3569 = vld [vmem:[#allocation6 + $0x6f0] sm:$0xff]
    %v3570 = vld [vmem:[#allocation6 + $0x6f8] sm:$0xff]
    %v3571 = vld [vmem:[#allocation6 + $0x700] sm:$0xff]
    %v3572 = vld [vmem:[#allocation6 + $0x708] sm:$0xff]
    %v3573 = vld [vmem:[#allocation6 + $0x710] sm:$0xff]
    %v3574 = vld [vmem:[#allocation6 + $0x718] sm:$0xff]
    %v3575 = vld [vmem:[#allocation6 + $0x720] sm:$0xff]
    %v3576 = vld [vmem:[#allocation6 + $0x728] sm:$0xff]
    %v3577 = vld [vmem:[#allocation6 + $0x730] sm:$0xff]
    %v3578 = vld [vmem:[#allocation6 + $0x738] sm:$0xff]
    %v3579 = vld [vmem:[#allocation6 + $0x740] sm:$0xff]
    %v3580 = vld [vmem:[#allocation6 + $0x748] sm:$0xff]
    %v3581 = vld [vmem:[#allocation6 + $0x750] sm:$0xff]
    %v3582 = vld [vmem:[#allocation6 + $0x758] sm:$0xff]
    %v3583 = vld [vmem:[#allocation6 + $0x760] sm:$0xff]
    %v3584 = vld [vmem:[#allocation6 + $0x768] sm:$0xff]
    %v3585 = vld [vmem:[#allocation6 + $0x770] sm:$0xff]
    %v3586 = vld [vmem:[#allocation6 + $0x778] sm:$0xff]
    %v3587 = vld [vmem:[#allocation6 + $0x780] sm:$0xff]
    %v3588 = vld [vmem:[#allocation6 + $0x788] sm:$0xff]
    %v3589 = vld [vmem:[#allocation6 + $0x790] sm:$0xff]
    %v3590 = vld [vmem:[#allocation6 + $0x798] sm:$0xff]
    %v3591 = vld [vmem:[#allocation6 + $0x7a0] sm:$0xff]
    %v3592 = vld [vmem:[#allocation6 + $0x7a8] sm:$0xff]
    %v3593 = vld [vmem:[#allocation6 + $0x7b0] sm:$0xff]
    %v3594 = vld [vmem:[#allocation6 + $0x7b8] sm:$0xff]
    %v3595 = vld [vmem:[#allocation6 + $0x7c0] sm:$0xff]
    %v3596 = vld [vmem:[#allocation6 + $0x7c8] sm:$0xff]
    %v3597 = vld [vmem:[#allocation6 + $0x7d0] sm:$0xff]
    %v3598 = vld [vmem:[#allocation6 + $0x7d8] sm:$0xff]
    %v3599 = vld [vmem:[#allocation6 + $0x7e0] sm:$0xff]
    %v3600 = vld [vmem:[#allocation6 + $0x7e8] sm:$0xff]
    %v3601 = vld [vmem:[#allocation6 + $0x7f0] sm:$0xff]
    %v3602 = vld [vmem:[#allocation6 + $0x7f8] sm:$0xff]
    %v3859 = vunpack.c.l.b16 %v3347
    %v3860 = vunpack.c.h.b16 %v3347
    %v3861 = vunpack.c.l.b16 %v3348
    %v3862 = vunpack.c.h.b16 %v3348
    %v3863 = vunpack.c.l.b16 %v3349
    %v3864 = vunpack.c.h.b16 %v3349
    %v3865 = vunpack.c.l.b16 %v3350
    %v3866 = vunpack.c.h.b16 %v3350
    %v3867 = vunpack.c.l.b16 %v3351
    %v3868 = vunpack.c.h.b16 %v3351
    %v3869 = vunpack.c.l.b16 %v3352
    %v3870 = vunpack.c.h.b16 %v3352
    %v3871 = vunpack.c.l.b16 %v3353
    %v3872 = vunpack.c.h.b16 %v3353
    %v3873 = vunpack.c.l.b16 %v3354
    %v3874 = vunpack.c.h.b16 %v3354
    %v3875 = vunpack.c.l.b16 %v3355
    %v3876 = vunpack.c.h.b16 %v3355
    %v3877 = vunpack.c.l.b16 %v3356
    %v3878 = vunpack.c.h.b16 %v3356
    %v3879 = vunpack.c.l.b16 %v3357
    %v3880 = vunpack.c.h.b16 %v3357
    %v3881 = vunpack.c.l.b16 %v3358
    %v3882 = vunpack.c.h.b16 %v3358
    %v3883 = vunpack.c.l.b16 %v3359
    %v3884 = vunpack.c.h.b16 %v3359
    %v3885 = vunpack.c.l.b16 %v3360
    %v3886 = vunpack.c.h.b16 %v3360
    %v3887 = vunpack.c.l.b16 %v3361
    %v3888 = vunpack.c.h.b16 %v3361
    %v3889 = vunpack.c.l.b16 %v3362
    %v3890 = vunpack.c.h.b16 %v3362
    %v3891 = vunpack.c.l.b16 %v3363
    %v3892 = vunpack.c.h.b16 %v3363
    %v3893 = vunpack.c.l.b16 %v3364
    %v3894 = vunpack.c.h.b16 %v3364
    %v3895 = vunpack.c.l.b16 %v3365
    %v3896 = vunpack.c.h.b16 %v3365
    %v3897 = vunpack.c.l.b16 %v3366
    %v3898 = vunpack.c.h.b16 %v3366
    %v3899 = vunpack.c.l.b16 %v3367
    %v3900 = vunpack.c.h.b16 %v3367
    %v3901 = vunpack.c.l.b16 %v3368
    %v3902 = vunpack.c.h.b16 %v3368
    %v3903 = vunpack.c.l.b16 %v3369
    %v3904 = vunpack.c.h.b16 %v3369
    %v3905 = vunpack.c.l.b16 %v3370
    %v3906 = vunpack.c.h.b16 %v3370
    %v3907 = vunpack.c.l.b16 %v3371
    %v3908 = vunpack.c.h.b16 %v3371
    %v3909 = vunpack.c.l.b16 %v3372
    %v3910 = vunpack.c.h.b16 %v3372
    %v3911 = vunpack.c.l.b16 %v3373
    %v3912 = vunpack.c.h.b16 %v3373
    %v3913 = vunpack.c.l.b16 %v3374
    %v3914 = vunpack.c.h.b16 %v3374
    %v3915 = vunpack.c.l.b16 %v3375
    %v3916 = vunpack.c.h.b16 %v3375
    %v3917 = vunpack.c.l.b16 %v3376
    %v3918 = vunpack.c.h.b16 %v3376
    %v3919 = vunpack.c.l.b16 %v3377
    %v3920 = vunpack.c.h.b16 %v3377
    %v3921 = vunpack.c.l.b16 %v3378
    %v3922 = vunpack.c.h.b16 %v3378
    %v3923 = vunpack.c.l.b16 %v3379
    %v3924 = vunpack.c.h.b16 %v3379
    %v3925 = vunpack.c.l.b16 %v3380
    %v3926 = vunpack.c.h.b16 %v3380
    %v3927 = vunpack.c.l.b16 %v3381
    %v3928 = vunpack.c.h.b16 %v3381
    %v3929 = vunpack.c.l.b16 %v3382
    %v3930 = vunpack.c.h.b16 %v3382
    %v3931 = vunpack.c.l.b16 %v3383
    %v3932 = vunpack.c.h.b16 %v3383
    %v3933 = vunpack.c.l.b16 %v3384
    %v3934 = vunpack.c.h.b16 %v3384
    %v3935 = vunpack.c.l.b16 %v3385
    %v3936 = vunpack.c.h.b16 %v3385
    %v3937 = vunpack.c.l.b16 %v3386
    %v3938 = vunpack.c.h.b16 %v3386
    %v3939 = vunpack.c.l.b16 %v3387
    %v3940 = vunpack.c.h.b16 %v3387
    %v3941 = vunpack.c.l.b16 %v3388
    %v3942 = vunpack.c.h.b16 %v3388
    %v3943 = vunpack.c.l.b16 %v3389
    %v3944 = vunpack.c.h.b16 %v3389
    %v3945 = vunpack.c.l.b16 %v3390
    %v3946 = vunpack.c.h.b16 %v3390
    %v3947 = vunpack.c.l.b16 %v3391
    %v3948 = vunpack.c.h.b16 %v3391
    %v3949 = vunpack.c.l.b16 %v3392
    %v3950 = vunpack.c.h.b16 %v3392
    %v3951 = vunpack.c.l.b16 %v3393
    %v3952 = vunpack.c.h.b16 %v3393
    %v3953 = vunpack.c.l.b16 %v3394
    %v3954 = vunpack.c.h.b16 %v3394
    %v3955 = vunpack.c.l.b16 %v3395
    %v3956 = vunpack.c.h.b16 %v3395
    %v3957 = vunpack.c.l.b16 %v3396
    %v3958 = vunpack.c.h.b16 %v3396
    %v3959 = vunpack.c.l.b16 %v3397
    %v3960 = vunpack.c.h.b16 %v3397
    %v3961 = vunpack.c.l.b16 %v3398
    %v3962 = vunpack.c.h.b16 %v3398
    %v3963 = vunpack.c.l.b16 %v3399
    %v3964 = vunpack.c.h.b16 %v3399
    %v3965 = vunpack.c.l.b16 %v3400
    %v3966 = vunpack.c.h.b16 %v3400
    %v3967 = vunpack.c.l.b16 %v3401
    %v3968 = vunpack.c.h.b16 %v3401
    %v3969 = vunpack.c.l.b16 %v3402
    %v3970 = vunpack.c.h.b16 %v3402
    %v3971 = vunpack.c.l.b16 %v3403
    %v3972 = vunpack.c.h.b16 %v3403
    %v3973 = vunpack.c.l.b16 %v3404
    %v3974 = vunpack.c.h.b16 %v3404
    %v3975 = vunpack.c.l.b16 %v3405
    %v3976 = vunpack.c.h.b16 %v3405
    %v3977 = vunpack.c.l.b16 %v3406
    %v3978 = vunpack.c.h.b16 %v3406
    %v3979 = vunpack.c.l.b16 %v3407
    %v3980 = vunpack.c.h.b16 %v3407
    %v3981 = vunpack.c.l.b16 %v3408
    %v3982 = vunpack.c.h.b16 %v3408
    %v3983 = vunpack.c.l.b16 %v3409
    %v3984 = vunpack.c.h.b16 %v3409
    %v3985 = vunpack.c.l.b16 %v3410
    %v3986 = vunpack.c.h.b16 %v3410
    %v3987 = vunpack.c.l.b16 %v3411
    %v3988 = vunpack.c.h.b16 %v3411
    %v3989 = vunpack.c.l.b16 %v3412
    %v3990 = vunpack.c.h.b16 %v3412
    %v3991 = vunpack.c.l.b16 %v3413
    %v3992 = vunpack.c.h.b16 %v3413
    %v3993 = vunpack.c.l.b16 %v3414
    %v3994 = vunpack.c.h.b16 %v3414
    %v3995 = vunpack.c.l.b16 %v3415
    %v3996 = vunpack.c.h.b16 %v3415
    %v3997 = vunpack.c.l.b16 %v3416
    %v3998 = vunpack.c.h.b16 %v3416
    %v3999 = vunpack.c.l.b16 %v3417
    %v4000 = vunpack.c.h.b16 %v3417
    %v4001 = vunpack.c.l.b16 %v3418
    %v4002 = vunpack.c.h.b16 %v3418
    %v4003 = vunpack.c.l.b16 %v3419
    %v4004 = vunpack.c.h.b16 %v3419
    %v4005 = vunpack.c.l.b16 %v3420
    %v4006 = vunpack.c.h.b16 %v3420
    %v4007 = vunpack.c.l.b16 %v3421
    %v4008 = vunpack.c.h.b16 %v3421
    %v4009 = vunpack.c.l.b16 %v3422
    %v4010 = vunpack.c.h.b16 %v3422
    %v4011 = vunpack.c.l.b16 %v3423
    %v4012 = vunpack.c.h.b16 %v3423
    %v4013 = vunpack.c.l.b16 %v3424
    %v4014 = vunpack.c.h.b16 %v3424
    %v4015 = vunpack.c.l.b16 %v3425
    %v4016 = vunpack.c.h.b16 %v3425
    %v4017 = vunpack.c.l.b16 %v3426
    %v4018 = vunpack.c.h.b16 %v3426
    %v4019 = vunpack.c.l.b16 %v3427
    %v4020 = vunpack.c.h.b16 %v3427
    %v4021 = vunpack.c.l.b16 %v3428
    %v4022 = vunpack.c.h.b16 %v3428
    %v4023 = vunpack.c.l.b16 %v3429
    %v4024 = vunpack.c.h.b16 %v3429
    %v4025 = vunpack.c.l.b16 %v3430
    %v4026 = vunpack.c.h.b16 %v3430
    %v4027 = vunpack.c.l.b16 %v3431
    %v4028 = vunpack.c.h.b16 %v3431
    %v4029 = vunpack.c.l.b16 %v3432
    %v4030 = vunpack.c.h.b16 %v3432
    %v4031 = vunpack.c.l.b16 %v3433
    %v4032 = vunpack.c.h.b16 %v3433
    %v4033 = vunpack.c.l.b16 %v3434
    %v4034 = vunpack.c.h.b16 %v3434
    %v4035 = vunpack.c.l.b16 %v3435
    %v4036 = vunpack.c.h.b16 %v3435
    %v4037 = vunpack.c.l.b16 %v3436
    %v4038 = vunpack.c.h.b16 %v3436
    %v4039 = vunpack.c.l.b16 %v3437
    %v4040 = vunpack.c.h.b16 %v3437
    %v4041 = vunpack.c.l.b16 %v3438
    %v4042 = vunpack.c.h.b16 %v3438
    %v4043 = vunpack.c.l.b16 %v3439
    %v4044 = vunpack.c.h.b16 %v3439
    %v4045 = vunpack.c.l.b16 %v3440
    %v4046 = vunpack.c.h.b16 %v3440
    %v4047 = vunpack.c.l.b16 %v3441
    %v4048 = vunpack.c.h.b16 %v3441
    %v4049 = vunpack.c.l.b16 %v3442
    %v4050 = vunpack.c.h.b16 %v3442
    %v4051 = vunpack.c.l.b16 %v3443
    %v4052 = vunpack.c.h.b16 %v3443
    %v4053 = vunpack.c.l.b16 %v3444
    %v4054 = vunpack.c.h.b16 %v3444
    %v4055 = vunpack.c.l.b16 %v3445
    %v4056 = vunpack.c.h.b16 %v3445
    %v4057 = vunpack.c.l.b16 %v3446
    %v4058 = vunpack.c.h.b16 %v3446
    %v4059 = vunpack.c.l.b16 %v3447
    %v4060 = vunpack.c.h.b16 %v3447
    %v4061 = vunpack.c.l.b16 %v3448
    %v4062 = vunpack.c.h.b16 %v3448
    %v4063 = vunpack.c.l.b16 %v3449
    %v4064 = vunpack.c.h.b16 %v3449
    %v4065 = vunpack.c.l.b16 %v3450
    %v4066 = vunpack.c.h.b16 %v3450
    %v4067 = vunpack.c.l.b16 %v3451
    %v4068 = vunpack.c.h.b16 %v3451
    %v4069 = vunpack.c.l.b16 %v3452
    %v4070 = vunpack.c.h.b16 %v3452
    %v4071 = vunpack.c.l.b16 %v3453
    %v4072 = vunpack.c.h.b16 %v3453
    %v4073 = vunpack.c.l.b16 %v3454
    %v4074 = vunpack.c.h.b16 %v3454
    %v4075 = vunpack.c.l.b16 %v3455
    %v4076 = vunpack.c.h.b16 %v3455
    %v4077 = vunpack.c.l.b16 %v3456
    %v4078 = vunpack.c.h.b16 %v3456
    %v4079 = vunpack.c.l.b16 %v3457
    %v4080 = vunpack.c.h.b16 %v3457
    %v4081 = vunpack.c.l.b16 %v3458
    %v4082 = vunpack.c.h.b16 %v3458
    %v4083 = vunpack.c.l.b16 %v3459
    %v4084 = vunpack.c.h.b16 %v3459
    %v4085 = vunpack.c.l.b16 %v3460
    %v4086 = vunpack.c.h.b16 %v3460
    %v4087 = vunpack.c.l.b16 %v3461
    %v4088 = vunpack.c.h.b16 %v3461
    %v4089 = vunpack.c.l.b16 %v3462
    %v4090 = vunpack.c.h.b16 %v3462
    %v4091 = vunpack.c.l.b16 %v3463
    %v4092 = vunpack.c.h.b16 %v3463
    %v4093 = vunpack.c.l.b16 %v3464
    %v4094 = vunpack.c.h.b16 %v3464
    %v4095 = vunpack.c.l.b16 %v3465
    %v4096 = vunpack.c.h.b16 %v3465
    %v4097 = vunpack.c.l.b16 %v3466
    %v4098 = vunpack.c.h.b16 %v3466
    %v4099 = vunpack.c.l.b16 %v3467
    %v4100 = vunpack.c.h.b16 %v3467
    %v4101 = vunpack.c.l.b16 %v3468
    %v4102 = vunpack.c.h.b16 %v3468
    %v4103 = vunpack.c.l.b16 %v3469
    %v4104 = vunpack.c.h.b16 %v3469
    %v4105 = vunpack.c.l.b16 %v3470
    %v4106 = vunpack.c.h.b16 %v3470
    %v4107 = vunpack.c.l.b16 %v3471
    %v4108 = vunpack.c.h.b16 %v3471
    %v4109 = vunpack.c.l.b16 %v3472
    %v4110 = vunpack.c.h.b16 %v3472
    %v4111 = vunpack.c.l.b16 %v3473
    %v4112 = vunpack.c.h.b16 %v3473
    %v4113 = vunpack.c.l.b16 %v3474
    %v4114 = vunpack.c.h.b16 %v3474
    %v4115 = vunpack.c.l.b16 %v3475
    %v4116 = vunpack.c.h.b16 %v3475
    %v4117 = vunpack.c.l.b16 %v3476
    %v4118 = vunpack.c.h.b16 %v3476
    %v4119 = vunpack.c.l.b16 %v3477
    %v4120 = vunpack.c.h.b16 %v3477
    %v4121 = vunpack.c.l.b16 %v3478
    %v4122 = vunpack.c.h.b16 %v3478
    %v4123 = vunpack.c.l.b16 %v3479
    %v4124 = vunpack.c.h.b16 %v3479
    %v4125 = vunpack.c.l.b16 %v3480
    %v4126 = vunpack.c.h.b16 %v3480
    %v4127 = vunpack.c.l.b16 %v3481
    %v4128 = vunpack.c.h.b16 %v3481
    %v4129 = vunpack.c.l.b16 %v3482
    %v4130 = vunpack.c.h.b16 %v3482
    %v4131 = vunpack.c.l.b16 %v3483
    %v4132 = vunpack.c.h.b16 %v3483
    %v4133 = vunpack.c.l.b16 %v3484
    %v4134 = vunpack.c.h.b16 %v3484
    %v4135 = vunpack.c.l.b16 %v3485
    %v4136 = vunpack.c.h.b16 %v3485
    %v4137 = vunpack.c.l.b16 %v3486
    %v4138 = vunpack.c.h.b16 %v3486
    %v4139 = vunpack.c.l.b16 %v3487
    %v4140 = vunpack.c.h.b16 %v3487
    %v4141 = vunpack.c.l.b16 %v3488
    %v4142 = vunpack.c.h.b16 %v3488
    %v4143 = vunpack.c.l.b16 %v3489
    %v4144 = vunpack.c.h.b16 %v3489
    %v4145 = vunpack.c.l.b16 %v3490
    %v4146 = vunpack.c.h.b16 %v3490
    %v4147 = vunpack.c.l.b16 %v3491
    %v4148 = vunpack.c.h.b16 %v3491
    %v4149 = vunpack.c.l.b16 %v3492
    %v4150 = vunpack.c.h.b16 %v3492
    %v4151 = vunpack.c.l.b16 %v3493
    %v4152 = vunpack.c.h.b16 %v3493
    %v4153 = vunpack.c.l.b16 %v3494
    %v4154 = vunpack.c.h.b16 %v3494
    %v4155 = vunpack.c.l.b16 %v3495
    %v4156 = vunpack.c.h.b16 %v3495
    %v4157 = vunpack.c.l.b16 %v3496
    %v4158 = vunpack.c.h.b16 %v3496
    %v4159 = vunpack.c.l.b16 %v3497
    %v4160 = vunpack.c.h.b16 %v3497
    %v4161 = vunpack.c.l.b16 %v3498
    %v4162 = vunpack.c.h.b16 %v3498
    %v4163 = vunpack.c.l.b16 %v3499
    %v4164 = vunpack.c.h.b16 %v3499
    %v4165 = vunpack.c.l.b16 %v3500
    %v4166 = vunpack.c.h.b16 %v3500
    %v4167 = vunpack.c.l.b16 %v3501
    %v4168 = vunpack.c.h.b16 %v3501
    %v4169 = vunpack.c.l.b16 %v3502
    %v4170 = vunpack.c.h.b16 %v3502
    %v4171 = vunpack.c.l.b16 %v3503
    %v4172 = vunpack.c.h.b16 %v3503
    %v4173 = vunpack.c.l.b16 %v3504
    %v4174 = vunpack.c.h.b16 %v3504
    %v4175 = vunpack.c.l.b16 %v3505
    %v4176 = vunpack.c.h.b16 %v3505
    %v4177 = vunpack.c.l.b16 %v3506
    %v4178 = vunpack.c.h.b16 %v3506
    %v4179 = vunpack.c.l.b16 %v3507
    %v4180 = vunpack.c.h.b16 %v3507
    %v4181 = vunpack.c.l.b16 %v3508
    %v4182 = vunpack.c.h.b16 %v3508
    %v4183 = vunpack.c.l.b16 %v3509
    %v4184 = vunpack.c.h.b16 %v3509
    %v4185 = vunpack.c.l.b16 %v3510
    %v4186 = vunpack.c.h.b16 %v3510
    %v4187 = vunpack.c.l.b16 %v3511
    %v4188 = vunpack.c.h.b16 %v3511
    %v4189 = vunpack.c.l.b16 %v3512
    %v4190 = vunpack.c.h.b16 %v3512
    %v4191 = vunpack.c.l.b16 %v3513
    %v4192 = vunpack.c.h.b16 %v3513
    %v4193 = vunpack.c.l.b16 %v3514
    %v4194 = vunpack.c.h.b16 %v3514
    %v4195 = vunpack.c.l.b16 %v3515
    %v4196 = vunpack.c.h.b16 %v3515
    %v4197 = vunpack.c.l.b16 %v3516
    %v4198 = vunpack.c.h.b16 %v3516
    %v4199 = vunpack.c.l.b16 %v3517
    %v4200 = vunpack.c.h.b16 %v3517
    %v4201 = vunpack.c.l.b16 %v3518
    %v4202 = vunpack.c.h.b16 %v3518
    %v4203 = vunpack.c.l.b16 %v3519
    %v4204 = vunpack.c.h.b16 %v3519
    %v4205 = vunpack.c.l.b16 %v3520
    %v4206 = vunpack.c.h.b16 %v3520
    %v4207 = vunpack.c.l.b16 %v3521
    %v4208 = vunpack.c.h.b16 %v3521
    %v4209 = vunpack.c.l.b16 %v3522
    %v4210 = vunpack.c.h.b16 %v3522
    %v4211 = vunpack.c.l.b16 %v3523
    %v4212 = vunpack.c.h.b16 %v3523
    %v4213 = vunpack.c.l.b16 %v3524
    %v4214 = vunpack.c.h.b16 %v3524
    %v4215 = vunpack.c.l.b16 %v3525
    %v4216 = vunpack.c.h.b16 %v3525
    %v4217 = vunpack.c.l.b16 %v3526
    %v4218 = vunpack.c.h.b16 %v3526
    %v4219 = vunpack.c.l.b16 %v3527
    %v4220 = vunpack.c.h.b16 %v3527
    %v4221 = vunpack.c.l.b16 %v3528
    %v4222 = vunpack.c.h.b16 %v3528
    %v4223 = vunpack.c.l.b16 %v3529
    %v4224 = vunpack.c.h.b16 %v3529
    %v4225 = vunpack.c.l.b16 %v3530
    %v4226 = vunpack.c.h.b16 %v3530
    %v4227 = vunpack.c.l.b16 %v3531
    %v4228 = vunpack.c.h.b16 %v3531
    %v4229 = vunpack.c.l.b16 %v3532
    %v4230 = vunpack.c.h.b16 %v3532
    %v4231 = vunpack.c.l.b16 %v3533
    %v4232 = vunpack.c.h.b16 %v3533
    %v4233 = vunpack.c.l.b16 %v3534
    %v4234 = vunpack.c.h.b16 %v3534
    %v4235 = vunpack.c.l.b16 %v3535
    %v4236 = vunpack.c.h.b16 %v3535
    %v4237 = vunpack.c.l.b16 %v3536
    %v4238 = vunpack.c.h.b16 %v3536
    %v4239 = vunpack.c.l.b16 %v3537
    %v4240 = vunpack.c.h.b16 %v3537
    %v4241 = vunpack.c.l.b16 %v3538
    %v4242 = vunpack.c.h.b16 %v3538
    %v4243 = vunpack.c.l.b16 %v3539
    %v4244 = vunpack.c.h.b16 %v3539
    %v4245 = vunpack.c.l.b16 %v3540
    %v4246 = vunpack.c.h.b16 %v3540
    %v4247 = vunpack.c.l.b16 %v3541
    %v4248 = vunpack.c.h.b16 %v3541
    %v4249 = vunpack.c.l.b16 %v3542
    %v4250 = vunpack.c.h.b16 %v3542
    %v4251 = vunpack.c.l.b16 %v3543
    %v4252 = vunpack.c.h.b16 %v3543
    %v4253 = vunpack.c.l.b16 %v3544
    %v4254 = vunpack.c.h.b16 %v3544
    %v4255 = vunpack.c.l.b16 %v3545
    %v4256 = vunpack.c.h.b16 %v3545
    %v4257 = vunpack.c.l.b16 %v3546
    %v4258 = vunpack.c.h.b16 %v3546
    %v4259 = vunpack.c.l.b16 %v3547
    %v4260 = vunpack.c.h.b16 %v3547
    %v4261 = vunpack.c.l.b16 %v3548
    %v4262 = vunpack.c.h.b16 %v3548
    %v4263 = vunpack.c.l.b16 %v3549
    %v4264 = vunpack.c.h.b16 %v3549
    %v4265 = vunpack.c.l.b16 %v3550
    %v4266 = vunpack.c.h.b16 %v3550
    %v4267 = vunpack.c.l.b16 %v3551
    %v4268 = vunpack.c.h.b16 %v3551
    %v4269 = vunpack.c.l.b16 %v3552
    %v4270 = vunpack.c.h.b16 %v3552
    %v4271 = vunpack.c.l.b16 %v3553
    %v4272 = vunpack.c.h.b16 %v3553
    %v4273 = vunpack.c.l.b16 %v3554
    %v4274 = vunpack.c.h.b16 %v3554
    %v4275 = vunpack.c.l.b16 %v3555
    %v4276 = vunpack.c.h.b16 %v3555
    %v4277 = vunpack.c.l.b16 %v3556
    %v4278 = vunpack.c.h.b16 %v3556
    %v4279 = vunpack.c.l.b16 %v3557
    %v4280 = vunpack.c.h.b16 %v3557
    %v4281 = vunpack.c.l.b16 %v3558
    %v4282 = vunpack.c.h.b16 %v3558
    %v4283 = vunpack.c.l.b16 %v3559
    %v4284 = vunpack.c.h.b16 %v3559
    %v4285 = vunpack.c.l.b16 %v3560
    %v4286 = vunpack.c.h.b16 %v3560
    %v4287 = vunpack.c.l.b16 %v3561
    %v4288 = vunpack.c.h.b16 %v3561
    %v4289 = vunpack.c.l.b16 %v3562
    %v4290 = vunpack.c.h.b16 %v3562
    %v4291 = vunpack.c.l.b16 %v3563
    %v4292 = vunpack.c.h.b16 %v3563
    %v4293 = vunpack.c.l.b16 %v3564
    %v4294 = vunpack.c.h.b16 %v3564
    %v4295 = vunpack.c.l.b16 %v3565
    %v4296 = vunpack.c.h.b16 %v3565
    %v4297 = vunpack.c.l.b16 %v3566
    %v4298 = vunpack.c.h.b16 %v3566
    %v4299 = vunpack.c.l.b16 %v3567
    %v4300 = vunpack.c.h.b16 %v3567
    %v4301 = vunpack.c.l.b16 %v3568
    %v4302 = vunpack.c.h.b16 %v3568
    %v4303 = vunpack.c.l.b16 %v3569
    %v4304 = vunpack.c.h.b16 %v3569
    %v4305 = vunpack.c.l.b16 %v3570
    %v4306 = vunpack.c.h.b16 %v3570
    %v4307 = vunpack.c.l.b16 %v3571
    %v4308 = vunpack.c.h.b16 %v3571
    %v4309 = vunpack.c.l.b16 %v3572
    %v4310 = vunpack.c.h.b16 %v3572
    %v4311 = vunpack.c.l.b16 %v3573
    %v4312 = vunpack.c.h.b16 %v3573
    %v4313 = vunpack.c.l.b16 %v3574
    %v4314 = vunpack.c.h.b16 %v3574
    %v4315 = vunpack.c.l.b16 %v3575
    %v4316 = vunpack.c.h.b16 %v3575
    %v4317 = vunpack.c.l.b16 %v3576
    %v4318 = vunpack.c.h.b16 %v3576
    %v4319 = vunpack.c.l.b16 %v3577
    %v4320 = vunpack.c.h.b16 %v3577
    %v4321 = vunpack.c.l.b16 %v3578
    %v4322 = vunpack.c.h.b16 %v3578
    %v4323 = vunpack.c.l.b16 %v3579
    %v4324 = vunpack.c.h.b16 %v3579
    %v4325 = vunpack.c.l.b16 %v3580
    %v4326 = vunpack.c.h.b16 %v3580
    %v4327 = vunpack.c.l.b16 %v3581
    %v4328 = vunpack.c.h.b16 %v3581
    %v4329 = vunpack.c.l.b16 %v3582
    %v4330 = vunpack.c.h.b16 %v3582
    %v4331 = vunpack.c.l.b16 %v3583
    %v4332 = vunpack.c.h.b16 %v3583
    %v4333 = vunpack.c.l.b16 %v3584
    %v4334 = vunpack.c.h.b16 %v3584
    %v4335 = vunpack.c.l.b16 %v3585
    %v4336 = vunpack.c.h.b16 %v3585
    %v4337 = vunpack.c.l.b16 %v3586
    %v4338 = vunpack.c.h.b16 %v3586
    %v4339 = vunpack.c.l.b16 %v3587
    %v4340 = vunpack.c.h.b16 %v3587
    %v4341 = vunpack.c.l.b16 %v3588
    %v4342 = vunpack.c.h.b16 %v3588
    %v4343 = vunpack.c.l.b16 %v3589
    %v4344 = vunpack.c.h.b16 %v3589
    %v4345 = vunpack.c.l.b16 %v3590
    %v4346 = vunpack.c.h.b16 %v3590
    %v4347 = vunpack.c.l.b16 %v3591
    %v4348 = vunpack.c.h.b16 %v3591
    %v4349 = vunpack.c.l.b16 %v3592
    %v4350 = vunpack.c.h.b16 %v3592
    %v4351 = vunpack.c.l.b16 %v3593
    %v4352 = vunpack.c.h.b16 %v3593
    %v4353 = vunpack.c.l.b16 %v3594
    %v4354 = vunpack.c.h.b16 %v3594
    %v4355 = vunpack.c.l.b16 %v3595
    %v4356 = vunpack.c.h.b16 %v3595
    %v4357 = vunpack.c.l.b16 %v3596
    %v4358 = vunpack.c.h.b16 %v3596
    %v4359 = vunpack.c.l.b16 %v3597
    %v4360 = vunpack.c.h.b16 %v3597
    %v4361 = vunpack.c.l.b16 %v3598
    %v4362 = vunpack.c.h.b16 %v3598
    %v4363 = vunpack.c.l.b16 %v3599
    %v4364 = vunpack.c.h.b16 %v3599
    %v4365 = vunpack.c.l.b16 %v3600
    %v4366 = vunpack.c.h.b16 %v3600
    %v4367 = vunpack.c.l.b16 %v3601
    %v4368 = vunpack.c.h.b16 %v3601
    %v4369 = vunpack.c.l.b16 %v3602
    %v4370 = vunpack.c.h.b16 %v3602
    %v4371 = vpack.c.b16 %v3863, %v3859
    %v4372 = vpack.c.b16 %v3864, %v3860
    %v4373 = vpack.c.b16 %v3865, %v3861
    %v4374 = vpack.c.b16 %v3866, %v3862
    %v4375 = vpack.c.b16 %v3871, %v3867
    %v4376 = vpack.c.b16 %v3872, %v3868
    %v4377 = vpack.c.b16 %v3873, %v3869
    %v4378 = vpack.c.b16 %v3874, %v3870
    %v4379 = vpack.c.b16 %v3879, %v3875
    %v4380 = vpack.c.b16 %v3880, %v3876
    %v4381 = vpack.c.b16 %v3881, %v3877
    %v4382 = vpack.c.b16 %v3882, %v3878
    %v4383 = vpack.c.b16 %v3887, %v3883
    %v4384 = vpack.c.b16 %v3888, %v3884
    %v4385 = vpack.c.b16 %v3889, %v3885
    %v4386 = vpack.c.b16 %v3890, %v3886
    %v4387 = vpack.c.b16 %v3895, %v3891
    %v4388 = vpack.c.b16 %v3896, %v3892
    %v4389 = vpack.c.b16 %v3897, %v3893
    %v4390 = vpack.c.b16 %v3898, %v3894
    %v4391 = vpack.c.b16 %v3903, %v3899
    %v4392 = vpack.c.b16 %v3904, %v3900
    %v4393 = vpack.c.b16 %v3905, %v3901
    %v4394 = vpack.c.b16 %v3906, %v3902
    %v4395 = vpack.c.b16 %v3911, %v3907
    %v4396 = vpack.c.b16 %v3912, %v3908
    %v4397 = vpack.c.b16 %v3913, %v3909
    %v4398 = vpack.c.b16 %v3914, %v3910
    %v4399 = vpack.c.b16 %v3919, %v3915
    %v4400 = vpack.c.b16 %v3920, %v3916
    %v4401 = vpack.c.b16 %v3921, %v3917
    %v4402 = vpack.c.b16 %v3922, %v3918
    %v4403 = vpack.c.b16 %v3927, %v3923
    %v4404 = vpack.c.b16 %v3928, %v3924
    %v4405 = vpack.c.b16 %v3929, %v3925
    %v4406 = vpack.c.b16 %v3930, %v3926
    %v4407 = vpack.c.b16 %v3935, %v3931
    %v4408 = vpack.c.b16 %v3936, %v3932
    %v4409 = vpack.c.b16 %v3937, %v3933
    %v4410 = vpack.c.b16 %v3938, %v3934
    %v4411 = vpack.c.b16 %v3943, %v3939
    %v4412 = vpack.c.b16 %v3944, %v3940
    %v4413 = vpack.c.b16 %v3945, %v3941
    %v4414 = vpack.c.b16 %v3946, %v3942
    %v4415 = vpack.c.b16 %v3951, %v3947
    %v4416 = vpack.c.b16 %v3952, %v3948
    %v4417 = vpack.c.b16 %v3953, %v3949
    %v4418 = vpack.c.b16 %v3954, %v3950
    %v4419 = vpack.c.b16 %v3959, %v3955
    %v4420 = vpack.c.b16 %v3960, %v3956
    %v4421 = vpack.c.b16 %v3961, %v3957
    %v4422 = vpack.c.b16 %v3962, %v3958
    %v4423 = vpack.c.b16 %v3967, %v3963
    %v4424 = vpack.c.b16 %v3968, %v3964
    %v4425 = vpack.c.b16 %v3969, %v3965
    %v4426 = vpack.c.b16 %v3970, %v3966
    %v4427 = vpack.c.b16 %v3975, %v3971
    %v4428 = vpack.c.b16 %v3976, %v3972
    %v4429 = vpack.c.b16 %v3977, %v3973
    %v4430 = vpack.c.b16 %v3978, %v3974
    %v4431 = vpack.c.b16 %v3983, %v3979
    %v4432 = vpack.c.b16 %v3984, %v3980
    %v4433 = vpack.c.b16 %v3985, %v3981
    %v4434 = vpack.c.b16 %v3986, %v3982
    %v4435 = vpack.c.b16 %v3991, %v3987
    %v4436 = vpack.c.b16 %v3992, %v3988
    %v4437 = vpack.c.b16 %v3993, %v3989
    %v4438 = vpack.c.b16 %v3994, %v3990
    %v4439 = vpack.c.b16 %v3999, %v3995
    %v4440 = vpack.c.b16 %v4000, %v3996
    %v4441 = vpack.c.b16 %v4001, %v3997
    %v4442 = vpack.c.b16 %v4002, %v3998
    %v4443 = vpack.c.b16 %v4007, %v4003
    %v4444 = vpack.c.b16 %v4008, %v4004
    %v4445 = vpack.c.b16 %v4009, %v4005
    %v4446 = vpack.c.b16 %v4010, %v4006
    %v4447 = vpack.c.b16 %v4015, %v4011
    %v4448 = vpack.c.b16 %v4016, %v4012
    %v4449 = vpack.c.b16 %v4017, %v4013
    %v4450 = vpack.c.b16 %v4018, %v4014
    %v4451 = vpack.c.b16 %v4023, %v4019
    %v4452 = vpack.c.b16 %v4024, %v4020
    %v4453 = vpack.c.b16 %v4025, %v4021
    %v4454 = vpack.c.b16 %v4026, %v4022
    %v4455 = vpack.c.b16 %v4031, %v4027
    %v4456 = vpack.c.b16 %v4032, %v4028
    %v4457 = vpack.c.b16 %v4033, %v4029
    %v4458 = vpack.c.b16 %v4034, %v4030
    %v4459 = vpack.c.b16 %v4039, %v4035
    %v4460 = vpack.c.b16 %v4040, %v4036
    %v4461 = vpack.c.b16 %v4041, %v4037
    %v4462 = vpack.c.b16 %v4042, %v4038
    %v4463 = vpack.c.b16 %v4047, %v4043
    %v4464 = vpack.c.b16 %v4048, %v4044
    %v4465 = vpack.c.b16 %v4049, %v4045
    %v4466 = vpack.c.b16 %v4050, %v4046
    %v4467 = vpack.c.b16 %v4055, %v4051
    %v4468 = vpack.c.b16 %v4056, %v4052
    %v4469 = vpack.c.b16 %v4057, %v4053
    %v4470 = vpack.c.b16 %v4058, %v4054
    %v4471 = vpack.c.b16 %v4063, %v4059
    %v4472 = vpack.c.b16 %v4064, %v4060
    %v4473 = vpack.c.b16 %v4065, %v4061
    %v4474 = vpack.c.b16 %v4066, %v4062
    %v4475 = vpack.c.b16 %v4071, %v4067
    %v4476 = vpack.c.b16 %v4072, %v4068
    %v4477 = vpack.c.b16 %v4073, %v4069
    %v4478 = vpack.c.b16 %v4074, %v4070
    %v4479 = vpack.c.b16 %v4079, %v4075
    %v4480 = vpack.c.b16 %v4080, %v4076
    %v4481 = vpack.c.b16 %v4081, %v4077
    %v4482 = vpack.c.b16 %v4082, %v4078
    %v4483 = vpack.c.b16 %v4087, %v4083
    %v4484 = vpack.c.b16 %v4088, %v4084
    %v4485 = vpack.c.b16 %v4089, %v4085
    %v4486 = vpack.c.b16 %v4090, %v4086
    %v4487 = vpack.c.b16 %v4095, %v4091
    %v4488 = vpack.c.b16 %v4096, %v4092
    %v4489 = vpack.c.b16 %v4097, %v4093
    %v4490 = vpack.c.b16 %v4098, %v4094
    %v4491 = vpack.c.b16 %v4103, %v4099
    %v4492 = vpack.c.b16 %v4104, %v4100
    %v4493 = vpack.c.b16 %v4105, %v4101
    %v4494 = vpack.c.b16 %v4106, %v4102
    %v4495 = vpack.c.b16 %v4111, %v4107
    %v4496 = vpack.c.b16 %v4112, %v4108
    %v4497 = vpack.c.b16 %v4113, %v4109
    %v4498 = vpack.c.b16 %v4114, %v4110
    %v4499 = vpack.c.b16 %v4119, %v4115
    %v4500 = vpack.c.b16 %v4120, %v4116
    %v4501 = vpack.c.b16 %v4121, %v4117
    %v4502 = vpack.c.b16 %v4122, %v4118
    %v4503 = vpack.c.b16 %v4127, %v4123
    %v4504 = vpack.c.b16 %v4128, %v4124
    %v4505 = vpack.c.b16 %v4129, %v4125
    %v4506 = vpack.c.b16 %v4130, %v4126
    %v4507 = vpack.c.b16 %v4135, %v4131
    %v4508 = vpack.c.b16 %v4136, %v4132
    %v4509 = vpack.c.b16 %v4137, %v4133
    %v4510 = vpack.c.b16 %v4138, %v4134
    %v4511 = vpack.c.b16 %v4143, %v4139
    %v4512 = vpack.c.b16 %v4144, %v4140
    %v4513 = vpack.c.b16 %v4145, %v4141
    %v4514 = vpack.c.b16 %v4146, %v4142
    %v4515 = vpack.c.b16 %v4151, %v4147
    %v4516 = vpack.c.b16 %v4152, %v4148
    %v4517 = vpack.c.b16 %v4153, %v4149
    %v4518 = vpack.c.b16 %v4154, %v4150
    %v4519 = vpack.c.b16 %v4159, %v4155
    %v4520 = vpack.c.b16 %v4160, %v4156
    %v4521 = vpack.c.b16 %v4161, %v4157
    %v4522 = vpack.c.b16 %v4162, %v4158
    %v4523 = vpack.c.b16 %v4167, %v4163
    %v4524 = vpack.c.b16 %v4168, %v4164
    %v4525 = vpack.c.b16 %v4169, %v4165
    %v4526 = vpack.c.b16 %v4170, %v4166
    %v4527 = vpack.c.b16 %v4175, %v4171
    %v4528 = vpack.c.b16 %v4176, %v4172
    %v4529 = vpack.c.b16 %v4177, %v4173
    %v4530 = vpack.c.b16 %v4178, %v4174
    %v4531 = vpack.c.b16 %v4183, %v4179
    %v4532 = vpack.c.b16 %v4184, %v4180
    %v4533 = vpack.c.b16 %v4185, %v4181
    %v4534 = vpack.c.b16 %v4186, %v4182
    %v4535 = vpack.c.b16 %v4191, %v4187
    %v4536 = vpack.c.b16 %v4192, %v4188
    %v4537 = vpack.c.b16 %v4193, %v4189
    %v4538 = vpack.c.b16 %v4194, %v4190
    %v4539 = vpack.c.b16 %v4199, %v4195
    %v4540 = vpack.c.b16 %v4200, %v4196
    %v4541 = vpack.c.b16 %v4201, %v4197
    %v4542 = vpack.c.b16 %v4202, %v4198
    %v4543 = vpack.c.b16 %v4207, %v4203
    %v4544 = vpack.c.b16 %v4208, %v4204
    %v4545 = vpack.c.b16 %v4209, %v4205
    %v4546 = vpack.c.b16 %v4210, %v4206
    %v4547 = vpack.c.b16 %v4215, %v4211
    %v4548 = vpack.c.b16 %v4216, %v4212
    %v4549 = vpack.c.b16 %v4217, %v4213
    %v4550 = vpack.c.b16 %v4218, %v4214
    %v4551 = vpack.c.b16 %v4223, %v4219
    %v4552 = vpack.c.b16 %v4224, %v4220
    %v4553 = vpack.c.b16 %v4225, %v4221
    %v4554 = vpack.c.b16 %v4226, %v4222
    %v4555 = vpack.c.b16 %v4231, %v4227
    %v4556 = vpack.c.b16 %v4232, %v4228
    %v4557 = vpack.c.b16 %v4233, %v4229
    %v4558 = vpack.c.b16 %v4234, %v4230
    %v4559 = vpack.c.b16 %v4239, %v4235
    %v4560 = vpack.c.b16 %v4240, %v4236
    %v4561 = vpack.c.b16 %v4241, %v4237
    %v4562 = vpack.c.b16 %v4242, %v4238
    %v4563 = vpack.c.b16 %v4247, %v4243
    %v4564 = vpack.c.b16 %v4248, %v4244
    %v4565 = vpack.c.b16 %v4249, %v4245
    %v4566 = vpack.c.b16 %v4250, %v4246
    %v4567 = vpack.c.b16 %v4255, %v4251
    %v4568 = vpack.c.b16 %v4256, %v4252
    %v4569 = vpack.c.b16 %v4257, %v4253
    %v4570 = vpack.c.b16 %v4258, %v4254
    %v4571 = vpack.c.b16 %v4263, %v4259
    %v4572 = vpack.c.b16 %v4264, %v4260
    %v4573 = vpack.c.b16 %v4265, %v4261
    %v4574 = vpack.c.b16 %v4266, %v4262
    %v4575 = vpack.c.b16 %v4271, %v4267
    %v4576 = vpack.c.b16 %v4272, %v4268
    %v4577 = vpack.c.b16 %v4273, %v4269
    %v4578 = vpack.c.b16 %v4274, %v4270
    %v4579 = vpack.c.b16 %v4279, %v4275
    %v4580 = vpack.c.b16 %v4280, %v4276
    %v4581 = vpack.c.b16 %v4281, %v4277
    %v4582 = vpack.c.b16 %v4282, %v4278
    %v4583 = vpack.c.b16 %v4287, %v4283
    %v4584 = vpack.c.b16 %v4288, %v4284
    %v4585 = vpack.c.b16 %v4289, %v4285
    %v4586 = vpack.c.b16 %v4290, %v4286
    %v4587 = vpack.c.b16 %v4295, %v4291
    %v4588 = vpack.c.b16 %v4296, %v4292
    %v4589 = vpack.c.b16 %v4297, %v4293
    %v4590 = vpack.c.b16 %v4298, %v4294
    %v4591 = vpack.c.b16 %v4303, %v4299
    %v4592 = vpack.c.b16 %v4304, %v4300
    %v4593 = vpack.c.b16 %v4305, %v4301
    %v4594 = vpack.c.b16 %v4306, %v4302
    %v4595 = vpack.c.b16 %v4311, %v4307
    %v4596 = vpack.c.b16 %v4312, %v4308
    %v4597 = vpack.c.b16 %v4313, %v4309
    %v4598 = vpack.c.b16 %v4314, %v4310
    %v4599 = vpack.c.b16 %v4319, %v4315
    %v4600 = vpack.c.b16 %v4320, %v4316
    %v4601 = vpack.c.b16 %v4321, %v4317
    %v4602 = vpack.c.b16 %v4322, %v4318
    %v4603 = vpack.c.b16 %v4327, %v4323
    %v4604 = vpack.c.b16 %v4328, %v4324
    %v4605 = vpack.c.b16 %v4329, %v4325
    %v4606 = vpack.c.b16 %v4330, %v4326
    %v4607 = vpack.c.b16 %v4335, %v4331
    %v4608 = vpack.c.b16 %v4336, %v4332
    %v4609 = vpack.c.b16 %v4337, %v4333
    %v4610 = vpack.c.b16 %v4338, %v4334
    %v4611 = vpack.c.b16 %v4343, %v4339
    %v4612 = vpack.c.b16 %v4344, %v4340
    %v4613 = vpack.c.b16 %v4345, %v4341
    %v4614 = vpack.c.b16 %v4346, %v4342
    %v4615 = vpack.c.b16 %v4351, %v4347
    %v4616 = vpack.c.b16 %v4352, %v4348
    %v4617 = vpack.c.b16 %v4353, %v4349
    %v4618 = vpack.c.b16 %v4354, %v4350
    %v4619 = vpack.c.b16 %v4359, %v4355
    %v4620 = vpack.c.b16 %v4360, %v4356
    %v4621 = vpack.c.b16 %v4361, %v4357
    %v4622 = vpack.c.b16 %v4362, %v4358
    %v4623 = vpack.c.b16 %v4367, %v4363
    %v4624 = vpack.c.b16 %v4368, %v4364
    %v4625 = vpack.c.b16 %v4369, %v4365
    %v4626 = vpack.c.b16 %v4370, %v4366
    %4883 = vmatprep.subr.bf16.mxu0 %v4372
    %4884 = vmatpush1.bf16.msra.mxu0 %v4371
    %4885 = vmatprep.subr.bf16.mxu0 %v4376
    %4886 = vmatpush1.bf16.msra.mxu0 %v4375
    %4887 = vmatprep.subr.bf16.mxu0 %v4380
    %4888 = vmatpush1.bf16.msra.mxu0 %v4379
    %4889 = vmatprep.subr.bf16.mxu0 %v4384
    %4890 = vmatpush1.bf16.msra.mxu0 %v4383
    %4891 = vmatprep.subr.bf16.mxu0 %v4388
    %4892 = vmatpush1.bf16.msra.mxu0 %v4387
    %4893 = vmatprep.subr.bf16.mxu0 %v4392
    %4894 = vmatpush1.bf16.msra.mxu0 %v4391
    %4895 = vmatprep.subr.bf16.mxu0 %v4396
    %4896 = vmatpush1.bf16.msra.mxu0 %v4395
    %4897 = vmatprep.subr.bf16.mxu0 %v4400
    %4898 = vmatpush1.bf16.msra.mxu0 %v4399
    %4899 = vmatprep.subr.bf16.mxu0 %v4404
    %4900 = vmatpush1.bf16.msra.mxu0 %v4403
    %4901 = vmatprep.subr.bf16.mxu0 %v4408
    %4902 = vmatpush1.bf16.msra.mxu0 %v4407
    %4903 = vmatprep.subr.bf16.mxu0 %v4412
    %4904 = vmatpush1.bf16.msra.mxu0 %v4411
    %4905 = vmatprep.subr.bf16.mxu0 %v4416
    %4906 = vmatpush1.bf16.msra.mxu0 %v4415
    %4907 = vmatprep.subr.bf16.mxu0 %v4420
    %4908 = vmatpush1.bf16.msra.mxu0 %v4419
    %4909 = vmatprep.subr.bf16.mxu0 %v4424
    %4910 = vmatpush1.bf16.msra.mxu0 %v4423
    %4911 = vmatprep.subr.bf16.mxu0 %v4428
    %4912 = vmatpush1.bf16.msra.mxu0 %v4427
    %4913 = vmatprep.subr.bf16.mxu0 %v4432
    %4914 = vmatpush1.bf16.msra.mxu0 %v4431
    %4915 = vmatprep.mubr.bf16.mxu0 %v3340
    %4916 = vmatmul.mubr.bf16.gmra.mrb[0].mxu0 %v3339
    %v4917 = vpop.f32.mrb[0].mxu0
    %v4918 = vadd.f32 0.0, %v4917
    %v4919 = vpop.f32.mrb[0].mxu0
    %v4920 = vadd.f32 0.0, %v4919
    %v4921 = vpop.f32.mrb[0].mxu0
    %v4922 = vadd.f32 0.0, %v4921
    %v4923 = vpop.f32.mrb[0].mxu0
    %v4924 = vadd.f32 0.0, %v4923
    %4925 = vdwg.mxu0
    %4926 = vmatprep.subr.bf16.mxu0 %v4436
    %4927 = vmatpush1.bf16.msra.mxu0 %v4435
    %4928 = vmatprep.subr.bf16.mxu0 %v4440
    %4929 = vmatpush1.bf16.msra.mxu0 %v4439
    %4930 = vmatprep.subr.bf16.mxu0 %v4444
    %4931 = vmatpush1.bf16.msra.mxu0 %v4443
    %4932 = vmatprep.subr.bf16.mxu0 %v4448
    %4933 = vmatpush1.bf16.msra.mxu0 %v4447
    %4934 = vmatprep.subr.bf16.mxu0 %v4452
    %4935 = vmatpush1.bf16.msra.mxu0 %v4451
    %4936 = vmatprep.subr.bf16.mxu0 %v4456
    %4937 = vmatpush1.bf16.msra.mxu0 %v4455
    %4938 = vmatprep.subr.bf16.mxu0 %v4460
    %4939 = vmatpush1.bf16.msra.mxu0 %v4459
    %4940 = vmatprep.subr.bf16.mxu0 %v4464
    %4941 = vmatpush1.bf16.msra.mxu0 %v4463
    %4942 = vmatprep.subr.bf16.mxu0 %v4468
    %4943 = vmatpush1.bf16.msra.mxu0 %v4467
    %4944 = vmatprep.subr.bf16.mxu0 %v4472
    %4945 = vmatpush1.bf16.msra.mxu0 %v4471
    %4946 = vmatprep.subr.bf16.mxu0 %v4476
    %4947 = vmatpush1.bf16.msra.mxu0 %v4475
    %4948 = vmatprep.subr.bf16.mxu0 %v4480
    %4949 = vmatpush1.bf16.msra.mxu0 %v4479
    %4950 = vmatprep.subr.bf16.mxu0 %v4484
    %4951 = vmatpush1.bf16.msra.mxu0 %v4483
    %4952 = vmatprep.subr.bf16.mxu0 %v4488
    %4953 = vmatpush1.bf16.msra.mxu0 %v4487
    %4954 = vmatprep.subr.bf16.mxu0 %v4492
    %4955 = vmatpush1.bf16.msra.mxu0 %v4491
    %4956 = vmatprep.subr.bf16.mxu0 %v4496
    %4957 = vmatpush1.bf16.msra.mxu0 %v4495
    %4958 = vmatprep.mubr.bf16.mxu0 %v3342
    %4959 = vmatmul.mubr.bf16.gmra.mrb[0].mxu0 %v3341
    %v4960 = vpop.f32.mrb[0].mxu0
    %v4961 = vadd.f32 %v4918, %v4960
    %v4962 = vpop.f32.mrb[0].mxu0
    %v4963 = vadd.f32 %v4920, %v4962
    %v4964 = vpop.f32.mrb[0].mxu0
    %v4965 = vadd.f32 %v4922, %v4964
    %v4966 = vpop.f32.mrb[0].mxu0
    %v4967 = vadd.f32 %v4924, %v4966
    %4968 = vdwg.mxu0
    %4969 = vmatprep.subr.bf16.mxu0 %v4500
    %4970 = vmatpush1.bf16.msra.mxu0 %v4499
    %4971 = vmatprep.subr.bf16.mxu0 %v4504
    %4972 = vmatpush1.bf16.msra.mxu0 %v4503
    %4973 = vmatprep.subr.bf16.mxu0 %v4508
    %4974 = vmatpush1.bf16.msra.mxu0 %v4507
    %4975 = vmatprep.subr.bf16.mxu0 %v4512
    %4976 = vmatpush1.bf16.msra.mxu0 %v4511
    %4977 = vmatprep.subr.bf16.mxu0 %v4516
    %4978 = vmatpush1.bf16.msra.mxu0 %v4515
    %4979 = vmatprep.subr.bf16.mxu0 %v4520
    %4980 = vmatpush1.bf16.msra.mxu0 %v4519
    %4981 = vmatprep.subr.bf16.mxu0 %v4524
    %4982 = vmatpush1.bf16.msra.mxu0 %v4523
    %4983 = vmatprep.subr.bf16.mxu0 %v4528
    %4984 = vmatpush1.bf16.msra.mxu0 %v4527
    %4985 = vmatprep.subr.bf16.mxu0 %v4532
    %4986 = vmatpush1.bf16.msra.mxu0 %v4531
    %4987 = vmatprep.subr.bf16.mxu0 %v4536
    %4988 = vmatpush1.bf16.msra.mxu0 %v4535
    %4989 = vmatprep.subr.bf16.mxu0 %v4540
    %4990 = vmatpush1.bf16.msra.mxu0 %v4539
    %4991 = vmatprep.subr.bf16.mxu0 %v4544
    %4992 = vmatpush1.bf16.msra.mxu0 %v4543
    %4993 = vmatprep.subr.bf16.mxu0 %v4548
    %4994 = vmatpush1.bf16.msra.mxu0 %v4547
    %4995 = vmatprep.subr.bf16.mxu0 %v4552
    %4996 = vmatpush1.bf16.msra.mxu0 %v4551
    %4997 = vmatprep.subr.bf16.mxu0 %v4556
    %4998 = vmatpush1.bf16.msra.mxu0 %v4555
    %4999 = vmatprep.subr.bf16.mxu0 %v4560
    %5000 = vmatpush1.bf16.msra.mxu0 %v4559
    %5001 = vmatprep.mubr.bf16.mxu0 %v3344
    %5002 = vmatmul.mubr.bf16.gmra.mrb[0].mxu0 %v3343
    %v5003 = vpop.f32.mrb[0].mxu0
    %v5004 = vadd.f32 %v4961, %v5003
    %v5005 = vpop.f32.mrb[0].mxu0
    %v5006 = vadd.f32 %v4963, %v5005
    %v5007 = vpop.f32.mrb[0].mxu0
    %v5008 = vadd.f32 %v4965, %v5007
    %v5009 = vpop.f32.mrb[0].mxu0
    %v5010 = vadd.f32 %v4967, %v5009
    %5011 = vdwg.mxu0
    %5012 = vmatprep.subr.bf16.mxu0 %v4564
    %5013 = vmatpush1.bf16.msra.mxu0 %v4563
    %5014 = vmatprep.subr.bf16.mxu0 %v4568
    %5015 = vmatpush1.bf16.msra.mxu0 %v4567
    %5016 = vmatprep.subr.bf16.mxu0 %v4572
    %5017 = vmatpush1.bf16.msra.mxu0 %v4571
    %5018 = vmatprep.subr.bf16.mxu0 %v4576
    %5019 = vmatpush1.bf16.msra.mxu0 %v4575
    %5020 = vmatprep.subr.bf16.mxu0 %v4580
    %5021 = vmatpush1.bf16.msra.mxu0 %v4579
    %5022 = vmatprep.subr.bf16.mxu0 %v4584
    %5023 = vmatpush1.bf16.msra.mxu0 %v4583
    %5024 = vmatprep.subr.bf16.mxu0 %v4588
    %5025 = vmatpush1.bf16.msra.mxu0 %v4587
    %5026 = vmatprep.subr.bf16.mxu0 %v4592
    %5027 = vmatpush1.bf16.msra.mxu0 %v4591
    %5028 = vmatprep.subr.bf16.mxu0 %v4596
    %5029 = vmatpush1.bf16.msra.mxu0 %v4595
    %5030 = vmatprep.subr.bf16.mxu0 %v4600
    %5031 = vmatpush1.bf16.msra.mxu0 %v4599
    %5032 = vmatprep.subr.bf16.mxu0 %v4604
    %5033 = vmatpush1.bf16.msra.mxu0 %v4603
    %5034 = vmatprep.subr.bf16.mxu0 %v4608
    %5035 = vmatpush1.bf16.msra.mxu0 %v4607
    %5036 = vmatprep.subr.bf16.mxu0 %v4612
    %5037 = vmatpush1.bf16.msra.mxu0 %v4611
    %5038 = vmatprep.subr.bf16.mxu0 %v4616
    %5039 = vmatpush1.bf16.msra.mxu0 %v4615
    %5040 = vmatprep.subr.bf16.mxu0 %v4620
    %5041 = vmatpush1.bf16.msra.mxu0 %v4619
    %5042 = vmatprep.subr.bf16.mxu0 %v4624
    %5043 = vmatpush1.bf16.msra.mxu0 %v4623
    %5044 = vmatprep.mubr.bf16.mxu0 %v3346
    %5045 = vmatmul.mubr.bf16.gmra.mrb[0].mxu0 %v3345
    %v5046 = vpop.f32.mrb[0].mxu0
    %v5047 = vadd.f32 %v5004, %v5046
    %v5048 = vpop.f32.mrb[0].mxu0
    %v5049 = vadd.f32 %v5006, %v5048
    %v5050 = vpop.f32.mrb[0].mxu0
    %v5051 = vadd.f32 %v5008, %v5050
    %v5052 = vpop.f32.mrb[0].mxu0
    %v5053 = vadd.f32 %v5010, %v5052
    %5054 = vdwg.mxu0
    %5055 = vmatprep.subr.bf16.mxu0 %v4374
    %5056 = vmatpush1.bf16.msra.mxu0 %v4373
    %5057 = vmatprep.subr.bf16.mxu0 %v4378
    %5058 = vmatpush1.bf16.msra.mxu0 %v4377
    %5059 = vmatprep.subr.bf16.mxu0 %v4382
    %5060 = vmatpush1.bf16.msra.mxu0 %v4381
    %5061 = vmatprep.subr.bf16.mxu0 %v4386
    %5062 = vmatpush1.bf16.msra.mxu0 %v4385
    %5063 = vmatprep.subr.bf16.mxu0 %v4390
    %5064 = vmatpush1.bf16.msra.mxu0 %v4389
    %5065 = vmatprep.subr.bf16.mxu0 %v4394
    %5066 = vmatpush1.bf16.msra.mxu0 %v4393
    %5067 = vmatprep.subr.bf16.mxu0 %v4398
    %5068 = vmatpush1.bf16.msra.mxu0 %v4397
    %5069 = vmatprep.subr.bf16.mxu0 %v4402
    %5070 = vmatpush1.bf16.msra.mxu0 %v4401
    %5071 = vmatprep.subr.bf16.mxu0 %v4406
    %5072 = vmatpush1.bf16.msra.mxu0 %v4405
    %5073 = vmatprep.subr.bf16.mxu0 %v4410
    %5074 = vmatpush1.bf16.msra.mxu0 %v4409
    %5075 = vmatprep.subr.bf16.mxu0 %v4414
    %5076 = vmatpush1.bf16.msra.mxu0 %v4413
    %5077 = vmatprep.subr.bf16.mxu0 %v4418
    %5078 = vmatpush1.bf16.msra.mxu0 %v4417
    %5079 = vmatprep.subr.bf16.mxu0 %v4422
    %5080 = vmatpush1.bf16.msra.mxu0 %v4421
    %5081 = vmatprep.subr.bf16.mxu0 %v4426
    %5082 = vmatpush1.bf16.msra.mxu0 %v4425
    %5083 = vmatprep.subr.bf16.mxu0 %v4430
    %5084 = vmatpush1.bf16.msra.mxu0 %v4429
    %5085 = vmatprep.subr.bf16.mxu0 %v4434
    %5086 = vmatpush1.bf16.msra.mxu0 %v4433
    %5087 = vmatprep.mubr.bf16.mxu0 %v3340
    %5088 = vmatmul.mubr.bf16.gmra.mrb[0].mxu0 %v3339
    %v5089 = vpop.f32.mrb[0].mxu0
    %v5090 = vadd.f32 0.0, %v5089
    %v5091 = vpop.f32.mrb[0].mxu0
    %v5092 = vadd.f32 0.0, %v5091
    %v5093 = vpop.f32.mrb[0].mxu0
    %v5094 = vadd.f32 0.0, %v5093
    %v5095 = vpop.f32.mrb[0].mxu0
    %v5096 = vadd.f32 0.0, %v5095
    %5097 = vdwg.mxu0
    %5098 = vmatprep.subr.bf16.mxu0 %v4438
    %5099 = vmatpush1.bf16.msra.mxu0 %v4437
    %5100 = vmatprep.subr.bf16.mxu0 %v4442
    %5101 = vmatpush1.bf16.msra.mxu0 %v4441
    %5102 = vmatprep.subr.bf16.mxu0 %v4446
    %5103 = vmatpush1.bf16.msra.mxu0 %v4445
    %5104 = vmatprep.subr.bf16.mxu0 %v4450
    %5105 = vmatpush1.bf16.msra.mxu0 %v4449
    %5106 = vmatprep.subr.bf16.mxu0 %v4454
    %5107 = vmatpush1.bf16.msra.mxu0 %v4453
    %5108 = vmatprep.subr.bf16.mxu0 %v4458
    %5109 = vmatpush1.bf16.msra.mxu0 %v4457
    %5110 = vmatprep.subr.bf16.mxu0 %v4462
    %5111 = vmatpush1.bf16.msra.mxu0 %v4461
    %5112 = vmatprep.subr.bf16.mxu0 %v4466
    %5113 = vmatpush1.bf16.msra.mxu0 %v4465
    %5114 = vmatprep.subr.bf16.mxu0 %v4470
    %5115 = vmatpush1.bf16.msra.mxu0 %v4469
    %5116 = vmatprep.subr.bf16.mxu0 %v4474
    %5117 = vmatpush1.bf16.msra.mxu0 %v4473
    %5118 = vmatprep.subr.bf16.mxu0 %v4478
    %5119 = vmatpush1.bf16.msra.mxu0 %v4477
    %5120 = vmatprep.subr.bf16.mxu0 %v4482
    %5121 = vmatpush1.bf16.msra.mxu0 %v4481
    %5122 = vmatprep.subr.bf16.mxu0 %v4486
    %5123 = vmatpush1.bf16.msra.mxu0 %v4485
    %5124 = vmatprep.subr.bf16.mxu0 %v4490
    %5125 = vmatpush1.bf16.msra.mxu0 %v4489
    %5126 = vmatprep.subr.bf16.mxu0 %v4494
    %5127 = vmatpush1.bf16.msra.mxu0 %v4493
    %5128 = vmatprep.subr.bf16.mxu0 %v4498
    %5129 = vmatpush1.bf16.msra.mxu0 %v4497
    %5130 = vmatprep.mubr.bf16.mxu0 %v3342
    %5131 = vmatmul.mubr.bf16.gmra.mrb[0].mxu0 %v3341
    %v5132 = vpop.f32.mrb[0].mxu0
    %v5133 = vadd.f32 %v5090, %v5132
    %v5134 = vpop.f32.mrb[0].mxu0
    %v5135 = vadd.f32 %v5092, %v5134
    %v5136 = vpop.f32.mrb[0].mxu0
    %v5137 = vadd.f32 %v5094, %v5136
    %v5138 = vpop.f32.mrb[0].mxu0
    %v5139 = vadd.f32 %v5096, %v5138
    %5140 = vdwg.mxu0
    %5141 = vmatprep.subr.bf16.mxu0 %v4502
    %5142 = vmatpush1.bf16.msra.mxu0 %v4501
    %5143 = vmatprep.subr.bf16.mxu0 %v4506
    %5144 = vmatpush1.bf16.msra.mxu0 %v4505
    %5145 = vmatprep.subr.bf16.mxu0 %v4510
    %5146 = vmatpush1.bf16.msra.mxu0 %v4509
    %5147 = vmatprep.subr.bf16.mxu0 %v4514
    %5148 = vmatpush1.bf16.msra.mxu0 %v4513
    %5149 = vmatprep.subr.bf16.mxu0 %v4518
    %5150 = vmatpush1.bf16.msra.mxu0 %v4517
    %5151 = vmatprep.subr.bf16.mxu0 %v4522
    %5152 = vmatpush1.bf16.msra.mxu0 %v4521
    %5153 = vmatprep.subr.bf16.mxu0 %v4526
    %5154 = vmatpush1.bf16.msra.mxu0 %v4525
    %5155 = vmatprep.subr.bf16.mxu0 %v4530
    %5156 = vmatpush1.bf16.msra.mxu0 %v4529
    %5157 = vmatprep.subr.bf16.mxu0 %v4534
    %5158 = vmatpush1.bf16.msra.mxu0 %v4533
    %5159 = vmatprep.subr.bf16.mxu0 %v4538
    %5160 = vmatpush1.bf16.msra.mxu0 %v4537
    %5161 = vmatprep.subr.bf16.mxu0 %v4542
    %5162 = vmatpush1.bf16.msra.mxu0 %v4541
    %5163 = vmatprep.subr.bf16.mxu0 %v4546
    %5164 = vmatpush1.bf16.msra.mxu0 %v4545
    %5165 = vmatprep.subr.bf16.mxu0 %v4550
    %5166 = vmatpush1.bf16.msra.mxu0 %v4549
    %5167 = vmatprep.subr.bf16.mxu0 %v4554
    %5168 = vmatpush1.bf16.msra.mxu0 %v4553
    %5169 = vmatprep.subr.bf16.mxu0 %v4558
    %5170 = vmatpush1.bf16.msra.mxu0 %v4557
    %5171 = vmatprep.subr.bf16.mxu0 %v4562
    %5172 = vmatpush1.bf16.msra.mxu0 %v4561
    %5173 = vmatprep.mubr.bf16.mxu0 %v3344
    %5174 = vmatmul.mubr.bf16.gmra.mrb[0].mxu0 %v3343
    %v5175 = vpop.f32.mrb[0].mxu0
    %v5176 = vadd.f32 %v5133, %v5175
    %v5177 = vpop.f32.mrb[0].mxu0
    %v5178 = vadd.f32 %v5135, %v5177
    %v5179 = vpop.f32.mrb[0].mxu0
    %v5180 = vadd.f32 %v5137, %v5179
    %v5181 = vpop.f32.mrb[0].mxu0
    %v5182 = vadd.f32 %v5139, %v5181
    %5183 = vdwg.mxu0
    %5184 = vmatprep.subr.bf16.mxu0 %v4566
    %5185 = vmatpush1.bf16.msra.mxu0 %v4565
    %5186 = vmatprep.subr.bf16.mxu0 %v4570
    %5187 = vmatpush1.bf16.msra.mxu0 %v4569
    %5188 = vmatprep.subr.bf16.mxu0 %v4574
    %5189 = vmatpush1.bf16.msra.mxu0 %v4573
    %5190 = vmatprep.subr.bf16.mxu0 %v4578
    %5191 = vmatpush1.bf16.msra.mxu0 %v4577
    %5192 = vmatprep.subr.bf16.mxu0 %v4582
    %5193 = vmatpush1.bf16.msra.mxu0 %v4581
    %5194 = vmatprep.subr.bf16.mxu0 %v4586
    %5195 = vmatpush1.bf16.msra.mxu0 %v4585
    %5196 = vmatprep.subr.bf16.mxu0 %v4590
    %5197 = vmatpush1.bf16.msra.mxu0 %v4589
    %5198 = vmatprep.subr.bf16.mxu0 %v4594
    %5199 = vmatpush1.bf16.msra.mxu0 %v4593
    %5200 = vmatprep.subr.bf16.mxu0 %v4598
    %5201 = vmatpush1.bf16.msra.mxu0 %v4597
    %5202 = vmatprep.subr.bf16.mxu0 %v4602
    %5203 = vmatpush1.bf16.msra.mxu0 %v4601
    %5204 = vmatprep.subr.bf16.mxu0 %v4606
    %5205 = vmatpush1.bf16.msra.mxu0 %v4605
    %5206 = vmatprep.subr.bf16.mxu0 %v4610
    %5207 = vmatpush1.bf16.msra.mxu0 %v4609
    %5208 = vmatprep.subr.bf16.mxu0 %v4614
    %5209 = vmatpush1.bf16.msra.mxu0 %v4613
    %5210 = vmatprep.subr.bf16.mxu0 %v4618
    %5211 = vmatpush1.bf16.msra.mxu0 %v4617
    %5212 = vmatprep.subr.bf16.mxu0 %v4622
    %5213 = vmatpush1.bf16.msra.mxu0 %v4621
    %5214 = vmatprep.subr.bf16.mxu0 %v4626
    %5215 = vmatpush1.bf16.msra.mxu0 %v4625
    %5216 = vmatprep.mubr.bf16.mxu0 %v3346
    %5217 = vmatmul.mubr.bf16.gmra.mrb[0].mxu0 %v3345
    %v5218 = vpop.f32.mrb[0].mxu0
    %v5219 = vadd.f32 %v5176, %v5218
    %v5220 = vpop.f32.mrb[0].mxu0
    %v5221 = vadd.f32 %v5178, %v5220
    %v5222 = vpop.f32.mrb[0].mxu0
    %v5223 = vadd.f32 %v5180, %v5222
    %v5224 = vpop.f32.mrb[0].mxu0
    %v5225 = vadd.f32 %v5182, %v5224
    %5226 = vdwg.mxu0
    %v5227 = vpack.c.bf16 %v5051, %v5047
    %v5228 = vpack.c.bf16 %v5053, %v5049
    %v5229 = vpack.c.bf16 %v5223, %v5219
    %v5230 = vpack.c.bf16 %v5225, %v5221
    %v5231 = vld [vmem:[#allocation7] sm:$0xf]
    %v5234 = vunpack.c.l.s4 1966171168
    %v5235 = vunpack.c.0.s8 %v5234
    %v5236 = vlaneseq
    %v5237 = vshrl.u32 %v5236, 7
    %v5238 = vsub.s32 %v5235, %v5237
    %v5239 = vrot.slane %v5231, %v5238
    %v5240 = vcombine.high %v5239, %v5239
    %v5242 = vunpack.c.l.s4 1966171168
    %v5243 = vunpack.c.0.s8 %v5242
    %v5244 = vlaneseq
    %v5245 = vshrl.u32 %v5244, 7
    %v5246 = vsub.s32 %v5243, %v5245
    %v5247 = vrot.slane %v5239, %v5246
    %v5249 = vunpack.c.l.s4 1966171168
    %v5250 = vunpack.c.0.s8 %v5249
    %v5251 = vlaneseq
    %v5252 = vshrl.u32 %v5251, 7
    %v5253 = vsub.s32 %v5250, %v5252
    %v5254 = vrot.slane %v5240, %v5253
    %v5255 = vcombine.high %v5247, %v5247
    %v5256 = vcombine.high %v5254, %v5254
    %v5258 = vpack.i.b16 %v5247, %v5247
    %v5260 = vlaneseq
    %v5261 = vshrl.u32 %v5260, 7
    %v5262 = vsub.s32 0, %v5261
    %v5263 = vrot.slane %v5258, %v5262
    %v5265 = vpack.i.b16 %v5254, %v5254
    %v5267 = vlaneseq
    %v5268 = vshrl.u32 %v5267, 7
    %v5269 = vsub.s32 0, %v5268
    %v5270 = vrot.slane %v5265, %v5269
    %v5272 = vpack.i.b16 %v5255, %v5255
    %v5274 = vlaneseq
    %v5275 = vshrl.u32 %v5274, 7
    %v5276 = vsub.s32 0, %v5275
    %v5277 = vrot.slane %v5272, %v5276
    %v5279 = vpack.i.b16 %v5256, %v5256
    %v5281 = vlaneseq
    %v5282 = vshrl.u32 %v5281, 7
    %v5283 = vsub.s32 0, %v5282
    %v5284 = vrot.slane %v5279, %v5283
    %v5285 = vadd.bf16 %v5227, %v5263
    %v5286 = vadd.bf16 %v5228, %v5270
    %v5287 = vadd.bf16 %v5229, %v5277
    %v5288 = vadd.bf16 %v5230, %v5284
    %vm5289 = vcmp.gt.bf16.partialorder %v5285, 0
    %vm5290 = vcmp.gt.bf16.partialorder %v5286, 0
    %vm5291 = vcmp.gt.bf16.partialorder %v5287, 0
    %vm5292 = vcmp.gt.bf16.partialorder %v5288, 0
    %v5293 = vmul.bf16 %v5285, 1045249613
    %v5294 = vmul.bf16 %v5286, 1045249613
    %v5295 = vmul.bf16 %v5287, 1045249613
    %v5296 = vmul.bf16 %v5288, 1045249613
    %v5297 = vsel %vm5289, %v5285, %v5293
    %v5298 = vsel %vm5290, %v5286, %v5294
    %v5299 = vsel %vm5291, %v5287, %v5295
    %v5300 = vsel %vm5292, %v5288, %v5296
    %v5301 = vld [vmem:[#allocation9] sm:$0xff]
    %v5302 = vld [vmem:[#allocation9 + $0x8] sm:$0xff]
    %v5303 = vld [vmem:[#allocation9 + $0x10] sm:$0xff]
    %v5304 = vld [vmem:[#allocation9 + $0x18] sm:$0xff]
    %v5305 = vld [vmem:[#allocation9 + $0x20] sm:$0xff]
    %v5306 = vld [vmem:[#allocation9 + $0x28] sm:$0xff]
    %v5307 = vld [vmem:[#allocation9 + $0x30] sm:$0xff]
    %v5308 = vld [vmem:[#allocation9 + $0x38] sm:$0xff]
    %v5309 = vld [vmem:[#allocation9 + $0x40] sm:$0xff]
    %v5310 = vld [vmem:[#allocation9 + $0x48] sm:$0xff]
    %v5311 = vld [vmem:[#allocation9 + $0x50] sm:$0xff]
    %v5312 = vld [vmem:[#allocation9 + $0x58] sm:$0xff]
    %v5313 = vld [vmem:[#allocation9 + $0x60] sm:$0xff]
    %v5314 = vld [vmem:[#allocation9 + $0x68] sm:$0xff]
    %v5315 = vld [vmem:[#allocation9 + $0x70] sm:$0xff]
    %v5316 = vld [vmem:[#allocation9 + $0x78] sm:$0xff]
    %v5317 = vld [vmem:[#allocation9 + $0x80] sm:$0xff]
    %v5318 = vld [vmem:[#allocation9 + $0x88] sm:$0xff]
    %v5319 = vld [vmem:[#allocation9 + $0x90] sm:$0xff]
    %v5320 = vld [vmem:[#allocation9 + $0x98] sm:$0xff]
    %v5321 = vld [vmem:[#allocation9 + $0xa0] sm:$0xff]
    %v5322 = vld [vmem:[#allocation9 + $0xa8] sm:$0xff]
    %v5323 = vld [vmem:[#allocation9 + $0xb0] sm:$0xff]
    %v5324 = vld [vmem:[#allocation9 + $0xb8] sm:$0xff]
    %v5325 = vld [vmem:[#allocation9 + $0xc0] sm:$0xff]
    %v5326 = vld [vmem:[#allocation9 + $0xc8] sm:$0xff]
    %v5327 = vld [vmem:[#allocation9 + $0xd0] sm:$0xff]
    %v5328 = vld [vmem:[#allocation9 + $0xd8] sm:$0xff]
    %v5329 = vld [vmem:[#allocation9 + $0xe0] sm:$0xff]
    %v5330 = vld [vmem:[#allocation9 + $0xe8] sm:$0xff]
    %v5331 = vld [vmem:[#allocation9 + $0xf0] sm:$0xff]
    %v5332 = vld [vmem:[#allocation9 + $0xf8] sm:$0xff]
    %v5333 = vld [vmem:[#allocation9 + $0x100] sm:$0xff]
    %v5334 = vld [vmem:[#allocation9 + $0x108] sm:$0xff]
    %v5335 = vld [vmem:[#allocation9 + $0x110] sm:$0xff]
    %v5336 = vld [vmem:[#allocation9 + $0x118] sm:$0xff]
    %v5337 = vld [vmem:[#allocation9 + $0x120] sm:$0xff]
    %v5338 = vld [vmem:[#allocation9 + $0x128] sm:$0xff]
    %v5339 = vld [vmem:[#allocation9 + $0x130] sm:$0xff]
    %v5340 = vld [vmem:[#allocation9 + $0x138] sm:$0xff]
    %v5341 = vld [vmem:[#allocation9 + $0x140] sm:$0xff]
    %v5342 = vld [vmem:[#allocation9 + $0x148] sm:$0xff]
    %v5343 = vld [vmem:[#allocation9 + $0x150] sm:$0xff]
    %v5344 = vld [vmem:[#allocation9 + $0x158] sm:$0xff]
    %v5345 = vld [vmem:[#allocation9 + $0x160] sm:$0xff]
    %v5346 = vld [vmem:[#allocation9 + $0x168] sm:$0xff]
    %v5347 = vld [vmem:[#allocation9 + $0x170] sm:$0xff]
    %v5348 = vld [vmem:[#allocation9 + $0x178] sm:$0xff]
    %v5349 = vld [vmem:[#allocation9 + $0x180] sm:$0xff]
    %v5350 = vld [vmem:[#allocation9 + $0x188] sm:$0xff]
    %v5351 = vld [vmem:[#allocation9 + $0x190] sm:$0xff]
    %v5352 = vld [vmem:[#allocation9 + $0x198] sm:$0xff]
    %v5353 = vld [vmem:[#allocation9 + $0x1a0] sm:$0xff]
    %v5354 = vld [vmem:[#allocation9 + $0x1a8] sm:$0xff]
    %v5355 = vld [vmem:[#allocation9 + $0x1b0] sm:$0xff]
    %v5356 = vld [vmem:[#allocation9 + $0x1b8] sm:$0xff]
    %v5357 = vld [vmem:[#allocation9 + $0x1c0] sm:$0xff]
    %v5358 = vld [vmem:[#allocation9 + $0x1c8] sm:$0xff]
    %v5359 = vld [vmem:[#allocation9 + $0x1d0] sm:$0xff]
    %v5360 = vld [vmem:[#allocation9 + $0x1d8] sm:$0xff]
    %v5361 = vld [vmem:[#allocation9 + $0x1e0] sm:$0xff]
    %v5362 = vld [vmem:[#allocation9 + $0x1e8] sm:$0xff]
    %v5363 = vld [vmem:[#allocation9 + $0x1f0] sm:$0xff]
    %v5364 = vld [vmem:[#allocation9 + $0x1f8] sm:$0xff]
    %v5429 = vunpack.c.l.b16 %v5301
    %v5430 = vunpack.c.h.b16 %v5301
    %v5431 = vunpack.c.l.b16 %v5302
    %v5432 = vunpack.c.h.b16 %v5302
    %v5433 = vunpack.c.l.b16 %v5303
    %v5434 = vunpack.c.h.b16 %v5303
    %v5435 = vunpack.c.l.b16 %v5304
    %v5436 = vunpack.c.h.b16 %v5304
    %v5437 = vunpack.c.l.b16 %v5305
    %v5438 = vunpack.c.h.b16 %v5305
    %v5439 = vunpack.c.l.b16 %v5306
    %v5440 = vunpack.c.h.b16 %v5306
    %v5441 = vunpack.c.l.b16 %v5307
    %v5442 = vunpack.c.h.b16 %v5307
    %v5443 = vunpack.c.l.b16 %v5308
    %v5444 = vunpack.c.h.b16 %v5308
    %v5445 = vunpack.c.l.b16 %v5309
    %v5446 = vunpack.c.h.b16 %v5309
    %v5447 = vunpack.c.l.b16 %v5310
    %v5448 = vunpack.c.h.b16 %v5310
    %v5449 = vunpack.c.l.b16 %v5311
    %v5450 = vunpack.c.h.b16 %v5311
    %v5451 = vunpack.c.l.b16 %v5312
    %v5452 = vunpack.c.h.b16 %v5312
    %v5453 = vunpack.c.l.b16 %v5313
    %v5454 = vunpack.c.h.b16 %v5313
    %v5455 = vunpack.c.l.b16 %v5314
    %v5456 = vunpack.c.h.b16 %v5314
    %v5457 = vunpack.c.l.b16 %v5315
    %v5458 = vunpack.c.h.b16 %v5315
    %v5459 = vunpack.c.l.b16 %v5316
    %v5460 = vunpack.c.h.b16 %v5316
    %v5461 = vunpack.c.l.b16 %v5317
    %v5462 = vunpack.c.h.b16 %v5317
    %v5463 = vunpack.c.l.b16 %v5318
    %v5464 = vunpack.c.h.b16 %v5318
    %v5465 = vunpack.c.l.b16 %v5319
    %v5466 = vunpack.c.h.b16 %v5319
    %v5467 = vunpack.c.l.b16 %v5320
    %v5468 = vunpack.c.h.b16 %v5320
    %v5469 = vunpack.c.l.b16 %v5321
    %v5470 = vunpack.c.h.b16 %v5321
    %v5471 = vunpack.c.l.b16 %v5322
    %v5472 = vunpack.c.h.b16 %v5322
    %v5473 = vunpack.c.l.b16 %v5323
    %v5474 = vunpack.c.h.b16 %v5323
    %v5475 = vunpack.c.l.b16 %v5324
    %v5476 = vunpack.c.h.b16 %v5324
    %v5477 = vunpack.c.l.b16 %v5325
    %v5478 = vunpack.c.h.b16 %v5325
    %v5479 = vunpack.c.l.b16 %v5326
    %v5480 = vunpack.c.h.b16 %v5326
    %v5481 = vunpack.c.l.b16 %v5327
    %v5482 = vunpack.c.h.b16 %v5327
    %v5483 = vunpack.c.l.b16 %v5328
    %v5484 = vunpack.c.h.b16 %v5328
    %v5485 = vunpack.c.l.b16 %v5329
    %v5486 = vunpack.c.h.b16 %v5329
    %v5487 = vunpack.c.l.b16 %v5330
    %v5488 = vunpack.c.h.b16 %v5330
    %v5489 = vunpack.c.l.b16 %v5331
    %v5490 = vunpack.c.h.b16 %v5331
    %v5491 = vunpack.c.l.b16 %v5332
    %v5492 = vunpack.c.h.b16 %v5332
    %v5493 = vunpack.c.l.b16 %v5333
    %v5494 = vunpack.c.h.b16 %v5333
    %v5495 = vunpack.c.l.b16 %v5334
    %v5496 = vunpack.c.h.b16 %v5334
    %v5497 = vunpack.c.l.b16 %v5335
    %v5498 = vunpack.c.h.b16 %v5335
    %v5499 = vunpack.c.l.b16 %v5336
    %v5500 = vunpack.c.h.b16 %v5336
    %v5501 = vunpack.c.l.b16 %v5337
    %v5502 = vunpack.c.h.b16 %v5337
    %v5503 = vunpack.c.l.b16 %v5338
    %v5504 = vunpack.c.h.b16 %v5338
    %v5505 = vunpack.c.l.b16 %v5339
    %v5506 = vunpack.c.h.b16 %v5339
    %v5507 = vunpack.c.l.b16 %v5340
    %v5508 = vunpack.c.h.b16 %v5340
    %v5509 = vunpack.c.l.b16 %v5341
    %v5510 = vunpack.c.h.b16 %v5341
    %v5511 = vunpack.c.l.b16 %v5342
    %v5512 = vunpack.c.h.b16 %v5342
    %v5513 = vunpack.c.l.b16 %v5343
    %v5514 = vunpack.c.h.b16 %v5343
    %v5515 = vunpack.c.l.b16 %v5344
    %v5516 = vunpack.c.h.b16 %v5344
    %v5517 = vunpack.c.l.b16 %v5345
    %v5518 = vunpack.c.h.b16 %v5345
    %v5519 = vunpack.c.l.b16 %v5346
    %v5520 = vunpack.c.h.b16 %v5346
    %v5521 = vunpack.c.l.b16 %v5347
    %v5522 = vunpack.c.h.b16 %v5347
    %v5523 = vunpack.c.l.b16 %v5348
    %v5524 = vunpack.c.h.b16 %v5348
    %v5525 = vunpack.c.l.b16 %v5349
    %v5526 = vunpack.c.h.b16 %v5349
    %v5527 = vunpack.c.l.b16 %v5350
    %v5528 = vunpack.c.h.b16 %v5350
    %v5529 = vunpack.c.l.b16 %v5351
    %v5530 = vunpack.c.h.b16 %v5351
    %v5531 = vunpack.c.l.b16 %v5352
    %v5532 = vunpack.c.h.b16 %v5352
    %v5533 = vunpack.c.l.b16 %v5353
    %v5534 = vunpack.c.h.b16 %v5353
    %v5535 = vunpack.c.l.b16 %v5354
    %v5536 = vunpack.c.h.b16 %v5354
    %v5537 = vunpack.c.l.b16 %v5355
    %v5538 = vunpack.c.h.b16 %v5355
    %v5539 = vunpack.c.l.b16 %v5356
    %v5540 = vunpack.c.h.b16 %v5356
    %v5541 = vunpack.c.l.b16 %v5357
    %v5542 = vunpack.c.h.b16 %v5357
    %v5543 = vunpack.c.l.b16 %v5358
    %v5544 = vunpack.c.h.b16 %v5358
    %v5545 = vunpack.c.l.b16 %v5359
    %v5546 = vunpack.c.h.b16 %v5359
    %v5547 = vunpack.c.l.b16 %v5360
    %v5548 = vunpack.c.h.b16 %v5360
    %v5549 = vunpack.c.l.b16 %v5361
    %v5550 = vunpack.c.h.b16 %v5361
    %v5551 = vunpack.c.l.b16 %v5362
    %v5552 = vunpack.c.h.b16 %v5362
    %v5553 = vunpack.c.l.b16 %v5363
    %v5554 = vunpack.c.h.b16 %v5363
    %v5555 = vunpack.c.l.b16 %v5364
    %v5556 = vunpack.c.h.b16 %v5364
    %v5557 = vpack.c.b16 %v5431, %v5429
    %v5558 = vpack.c.b16 %v5432, %v5430
    %v5559 = vpack.c.b16 %v5435, %v5433
    %v5560 = vpack.c.b16 %v5436, %v5434
    %v5561 = vpack.c.b16 %v5439, %v5437
    %v5562 = vpack.c.b16 %v5440, %v5438
    %v5563 = vpack.c.b16 %v5443, %v5441
    %v5564 = vpack.c.b16 %v5444, %v5442
    %v5565 = vpack.c.b16 %v5447, %v5445
    %v5566 = vpack.c.b16 %v5448, %v5446
    %v5567 = vpack.c.b16 %v5451, %v5449
    %v5568 = vpack.c.b16 %v5452, %v5450
    %v5569 = vpack.c.b16 %v5455, %v5453
    %v5570 = vpack.c.b16 %v5456, %v5454
    %v5571 = vpack.c.b16 %v5459, %v5457
    %v5572 = vpack.c.b16 %v5460, %v5458
    %v5573 = vpack.c.b16 %v5463, %v5461
    %v5574 = vpack.c.b16 %v5464, %v5462
    %v5575 = vpack.c.b16 %v5467, %v5465
    %v5576 = vpack.c.b16 %v5468, %v5466
    %v5577 = vpack.c.b16 %v5471, %v5469
    %v5578 = vpack.c.b16 %v5472, %v5470
    %v5579 = vpack.c.b16 %v5475, %v5473
    %v5580 = vpack.c.b16 %v5476, %v5474
    %v5581 = vpack.c.b16 %v5479, %v5477
    %v5582 = vpack.c.b16 %v5480, %v5478
    %v5583 = vpack.c.b16 %v5483, %v5481
    %v5584 = vpack.c.b16 %v5484, %v5482
    %v5585 = vpack.c.b16 %v5487, %v5485
    %v5586 = vpack.c.b16 %v5488, %v5486
    %v5587 = vpack.c.b16 %v5491, %v5489
    %v5588 = vpack.c.b16 %v5492, %v5490
    %v5589 = vpack.c.b16 %v5495, %v5493
    %v5590 = vpack.c.b16 %v5496, %v5494
    %v5591 = vpack.c.b16 %v5499, %v5497
    %v5592 = vpack.c.b16 %v5500, %v5498
    %v5593 = vpack.c.b16 %v5503, %v5501
    %v5594 = vpack.c.b16 %v5504, %v5502
    %v5595 = vpack.c.b16 %v5507, %v5505
    %v5596 = vpack.c.b16 %v5508, %v5506
    %v5597 = vpack.c.b16 %v5511, %v5509
    %v5598 = vpack.c.b16 %v5512, %v5510
    %v5599 = vpack.c.b16 %v5515, %v5513
    %v5600 = vpack.c.b16 %v5516, %v5514
    %v5601 = vpack.c.b16 %v5519, %v5517
    %v5602 = vpack.c.b16 %v5520, %v5518
    %v5603 = vpack.c.b16 %v5523, %v5521
    %v5604 = vpack.c.b16 %v5524, %v5522
    %v5605 = vpack.c.b16 %v5527, %v5525
    %v5606 = vpack.c.b16 %v5528, %v5526
    %v5607 = vpack.c.b16 %v5531, %v5529
    %v5608 = vpack.c.b16 %v5532, %v5530
    %v5609 = vpack.c.b16 %v5535, %v5533
    %v5610 = vpack.c.b16 %v5536, %v5534
    %v5611 = vpack.c.b16 %v5539, %v5537
    %v5612 = vpack.c.b16 %v5540, %v5538
    %v5613 = vpack.c.b16 %v5543, %v5541
    %v5614 = vpack.c.b16 %v5544, %v5542
    %v5615 = vpack.c.b16 %v5547, %v5545
    %v5616 = vpack.c.b16 %v5548, %v5546
    %v5617 = vpack.c.b16 %v5551, %v5549
    %v5618 = vpack.c.b16 %v5552, %v5550
    %v5619 = vpack.c.b16 %v5555, %v5553
    %v5620 = vpack.c.b16 %v5556, %v5554
    %5685 = vmatprep.subr.bf16.mxu0 %v5558
    %5686 = vmatpush1.bf16.msra.mxu0 %v5557
    %5687 = vmatprep.subr.bf16.mxu0 %v5560
    %5688 = vmatpush1.bf16.msra.mxu0 %v5559
    %5689 = vmatprep.subr.bf16.mxu0 %v5562
    %5690 = vmatpush1.bf16.msra.mxu0 %v5561
    %5691 = vmatprep.subr.bf16.mxu0 %v5564
    %5692 = vmatpush1.bf16.msra.mxu0 %v5563
    %5693 = vmatprep.subr.bf16.mxu0 %v5566
    %5694 = vmatpush1.bf16.msra.mxu0 %v5565
    %5695 = vmatprep.subr.bf16.mxu0 %v5568
    %5696 = vmatpush1.bf16.msra.mxu0 %v5567
    %5697 = vmatprep.subr.bf16.mxu0 %v5570
    %5698 = vmatpush1.bf16.msra.mxu0 %v5569
    %5699 = vmatprep.subr.bf16.mxu0 %v5572
    %5700 = vmatpush1.bf16.msra.mxu0 %v5571
    %5701 = vmatprep.subr.bf16.mxu0 %v5574
    %5702 = vmatpush1.bf16.msra.mxu0 %v5573
    %5703 = vmatprep.subr.bf16.mxu0 %v5576
    %5704 = vmatpush1.bf16.msra.mxu0 %v5575
    %5705 = vmatprep.subr.bf16.mxu0 %v5578
    %5706 = vmatpush1.bf16.msra.mxu0 %v5577
    %5707 = vmatprep.subr.bf16.mxu0 %v5580
    %5708 = vmatpush1.bf16.msra.mxu0 %v5579
    %5709 = vmatprep.subr.bf16.mxu0 %v5582
    %5710 = vmatpush1.bf16.msra.mxu0 %v5581
    %5711 = vmatprep.subr.bf16.mxu0 %v5584
    %5712 = vmatpush1.bf16.msra.mxu0 %v5583
    %5713 = vmatprep.subr.bf16.mxu0 %v5586
    %5714 = vmatpush1.bf16.msra.mxu0 %v5585
    %5715 = vmatprep.subr.bf16.mxu0 %v5588
    %5716 = vmatpush1.bf16.msra.mxu0 %v5587
    %5717 = vmatprep.mubr.bf16.mxu0 %v5298
    %5718 = vmatmul.mubr.bf16.gmra.mrb[0].mxu0 %v5297
    %v5719 = vpop.f32.mrb[0].mxu0
    %v5720 = vadd.f32 0.0, %v5719
    %v5721 = vpop.f32.mrb[0].mxu0
    %v5722 = vadd.f32 0.0, %v5721
    %v5723 = vpop.f32.mrb[0].mxu0
    %v5724 = vadd.f32 0.0, %v5723
    %v5725 = vpop.f32.mrb[0].mxu0
    %v5726 = vadd.f32 0.0, %v5725
    %5727 = vdwg.mxu0
    %5728 = vmatprep.subr.bf16.mxu0 %v5590
    %5729 = vmatpush1.bf16.msra.mxu0 %v5589
    %5730 = vmatprep.subr.bf16.mxu0 %v5592
    %5731 = vmatpush1.bf16.msra.mxu0 %v5591
    %5732 = vmatprep.subr.bf16.mxu0 %v5594
    %5733 = vmatpush1.bf16.msra.mxu0 %v5593
    %5734 = vmatprep.subr.bf16.mxu0 %v5596
    %5735 = vmatpush1.bf16.msra.mxu0 %v5595
    %5736 = vmatprep.subr.bf16.mxu0 %v5598
    %5737 = vmatpush1.bf16.msra.mxu0 %v5597
    %5738 = vmatprep.subr.bf16.mxu0 %v5600
    %5739 = vmatpush1.bf16.msra.mxu0 %v5599
    %5740 = vmatprep.subr.bf16.mxu0 %v5602
    %5741 = vmatpush1.bf16.msra.mxu0 %v5601
    %5742 = vmatprep.subr.bf16.mxu0 %v5604
    %5743 = vmatpush1.bf16.msra.mxu0 %v5603
    %5744 = vmatprep.subr.bf16.mxu0 %v5606
    %5745 = vmatpush1.bf16.msra.mxu0 %v5605
    %5746 = vmatprep.subr.bf16.mxu0 %v5608
    %5747 = vmatpush1.bf16.msra.mxu0 %v5607
    %5748 = vmatprep.subr.bf16.mxu0 %v5610
    %5749 = vmatpush1.bf16.msra.mxu0 %v5609
    %5750 = vmatprep.subr.bf16.mxu0 %v5612
    %5751 = vmatpush1.bf16.msra.mxu0 %v5611
    %5752 = vmatprep.subr.bf16.mxu0 %v5614
    %5753 = vmatpush1.bf16.msra.mxu0 %v5613
    %5754 = vmatprep.subr.bf16.mxu0 %v5616
    %5755 = vmatpush1.bf16.msra.mxu0 %v5615
    %5756 = vmatprep.subr.bf16.mxu0 %v5618
    %5757 = vmatpush1.bf16.msra.mxu0 %v5617
    %5758 = vmatprep.subr.bf16.mxu0 %v5620
    %5759 = vmatpush1.bf16.msra.mxu0 %v5619
    %5760 = vmatprep.mubr.bf16.mxu0 %v5300
    %5761 = vmatmul.mubr.bf16.gmra.mrb[0].mxu0 %v5299
    %v5762 = vpop.f32.mrb[0].mxu0
    %v5763 = vadd.f32 %v5720, %v5762
    %v5764 = vpop.f32.mrb[0].mxu0
    %v5765 = vadd.f32 %v5722, %v5764
    %v5766 = vpop.f32.mrb[0].mxu0
    %v5767 = vadd.f32 %v5724, %v5766
    %v5768 = vpop.f32.mrb[0].mxu0
    %v5769 = vadd.f32 %v5726, %v5768
    %5770 = vdwg.mxu0
    %v5771 = vpack.c.bf16 %v5767, %v5763
    %v5772 = vpack.c.bf16 %v5769, %v5765
    %v5773 = vld [vmem:[#allocation10] sm:$0x3]
    %v5776 = vunpack.c.l.s4 1966171168
    %v5777 = vunpack.c.0.s8 %v5776
    %v5778 = vlaneseq
    %v5779 = vshrl.u32 %v5778, 7
    %v5780 = vsub.s32 %v5777, %v5779
    %v5781 = vrot.slane %v5773, %v5780
    %v5782 = vcombine.high %v5781, %v5781
    %v5784 = vunpack.c.l.s4 1966171168
    %v5785 = vunpack.c.0.s8 %v5784
    %v5786 = vlaneseq
    %v5787 = vshrl.u32 %v5786, 7
    %v5788 = vsub.s32 %v5785, %v5787
    %v5789 = vrot.slane %v5781, %v5788
    %v5791 = vunpack.c.l.s4 1966171168
    %v5792 = vunpack.c.0.s8 %v5791
    %v5793 = vlaneseq
    %v5794 = vshrl.u32 %v5793, 7
    %v5795 = vsub.s32 %v5792, %v5794
    %v5796 = vrot.slane %v5782, %v5795
    %v5798 = vpack.i.b16 %v5789, %v5789
    %v5800 = vlaneseq
    %v5801 = vshrl.u32 %v5800, 7
    %v5802 = vsub.s32 0, %v5801
    %v5803 = vrot.slane %v5798, %v5802
    %v5805 = vpack.i.b16 %v5796, %v5796
    %v5807 = vlaneseq
    %v5808 = vshrl.u32 %v5807, 7
    %v5809 = vsub.s32 0, %v5808
    %v5810 = vrot.slane %v5805, %v5809
    %v5811 = vadd.bf16 %v5771, %v5803
    %v5812 = vadd.bf16 %v5772, %v5810
    %vm5813 = vcmp.gt.bf16.partialorder %v5811, 0
    %vm5814 = vcmp.gt.bf16.partialorder %v5812, 0
    %v5815 = vmul.bf16 %v5811, 1045249613
    %v5816 = vmul.bf16 %v5812, 1045249613
    %v5817 = vsel %vm5813, %v5811, %v5815
    %v5818 = vsel %vm5814, %v5812, %v5816
    %v5819 = vld [vmem:[#allocation12] sm:$0xf]
    %v5820 = vld [vmem:[#allocation12 + $0x4] sm:$0xf]
    %v5821 = vld [vmem:[#allocation12 + $0x8] sm:$0xf]
    %v5822 = vld [vmem:[#allocation12 + $0xc] sm:$0xf]
    %v5823 = vld [vmem:[#allocation12 + $0x10] sm:$0xf]
    %v5824 = vld [vmem:[#allocation12 + $0x14] sm:$0xf]
    %v5825 = vld [vmem:[#allocation12 + $0x18] sm:$0xf]
    %v5826 = vld [vmem:[#allocation12 + $0x1c] sm:$0xf]
    %v5827 = vld [vmem:[#allocation12 + $0x20] sm:$0xf]
    %v5828 = vld [vmem:[#allocation12 + $0x24] sm:$0xf]
    %v5829 = vld [vmem:[#allocation12 + $0x28] sm:$0xf]
    %v5830 = vld [vmem:[#allocation12 + $0x2c] sm:$0xf]
    %v5831 = vld [vmem:[#allocation12 + $0x30] sm:$0xf]
    %v5832 = vld [vmem:[#allocation12 + $0x34] sm:$0xf]
    %v5833 = vld [vmem:[#allocation12 + $0x38] sm:$0xf]
    %v5834 = vld [vmem:[#allocation12 + $0x3c] sm:$0xf]
    %v5835 = vld [vmem:[#allocation12 + $0x40] sm:$0xf]
    %v5836 = vld [vmem:[#allocation12 + $0x44] sm:$0xf]
    %v5837 = vld [vmem:[#allocation12 + $0x48] sm:$0xf]
    %v5838 = vld [vmem:[#allocation12 + $0x4c] sm:$0xf]
    %v5839 = vld [vmem:[#allocation12 + $0x50] sm:$0xf]
    %v5840 = vld [vmem:[#allocation12 + $0x54] sm:$0xf]
    %v5841 = vld [vmem:[#allocation12 + $0x58] sm:$0xf]
    %v5842 = vld [vmem:[#allocation12 + $0x5c] sm:$0xf]
    %v5843 = vld [vmem:[#allocation12 + $0x60] sm:$0xf]
    %v5844 = vld [vmem:[#allocation12 + $0x64] sm:$0xf]
    %v5845 = vld [vmem:[#allocation12 + $0x68] sm:$0xf]
    %v5846 = vld [vmem:[#allocation12 + $0x6c] sm:$0xf]
    %v5847 = vld [vmem:[#allocation12 + $0x70] sm:$0xf]
    %v5848 = vld [vmem:[#allocation12 + $0x74] sm:$0xf]
    %v5849 = vld [vmem:[#allocation12 + $0x78] sm:$0xf]
    %v5850 = vld [vmem:[#allocation12 + $0x7c] sm:$0xf]
    %v5851 = vld [vmem:[#allocation13] sm:$0x1]
    %v5853 = vlaneseq
    %v5854 = vshrl.u32 %v5853, 7
    %v5855 = vsub.s32 0, %v5854
    %v5856 = vrot.slane %v5851, %v5855
    %v5890 = vunpack.c.l.b16 %v5819
    %v5891 = vunpack.c.l.b16 %v5820
    %v5892 = vunpack.c.l.b16 %v5821
    %v5893 = vunpack.c.l.b16 %v5822
    %v5894 = vunpack.c.l.b16 %v5823
    %v5895 = vunpack.c.l.b16 %v5824
    %v5896 = vunpack.c.l.b16 %v5825
    %v5897 = vunpack.c.l.b16 %v5826
    %v5898 = vunpack.c.l.b16 %v5827
    %v5899 = vunpack.c.l.b16 %v5828
    %v5900 = vunpack.c.l.b16 %v5829
    %v5901 = vunpack.c.l.b16 %v5830
    %v5902 = vunpack.c.l.b16 %v5831
    %v5903 = vunpack.c.l.b16 %v5832
    %v5904 = vunpack.c.l.b16 %v5833
    %v5905 = vunpack.c.l.b16 %v5834
    %v5906 = vunpack.c.l.b16 %v5835
    %v5907 = vunpack.c.l.b16 %v5836
    %v5908 = vunpack.c.l.b16 %v5837
    %v5909 = vunpack.c.l.b16 %v5838
    %v5910 = vunpack.c.l.b16 %v5839
    %v5911 = vunpack.c.l.b16 %v5840
    %v5912 = vunpack.c.l.b16 %v5841
    %v5913 = vunpack.c.l.b16 %v5842
    %v5914 = vunpack.c.l.b16 %v5843
    %v5915 = vunpack.c.l.b16 %v5844
    %v5916 = vunpack.c.l.b16 %v5845
    %v5917 = vunpack.c.l.b16 %v5846
    %v5918 = vunpack.c.l.b16 %v5847
    %v5919 = vunpack.c.l.b16 %v5848
    %v5920 = vunpack.c.l.b16 %v5849
    %v5921 = vunpack.c.l.b16 %v5850
    %v5922 = vpack.c.b16 %v5891, %v5890
    %v5923 = vpack.c.b16 %v5893, %v5892
    %v5924 = vpack.c.b16 %v5895, %v5894
    %v5925 = vpack.c.b16 %v5897, %v5896
    %v5926 = vpack.c.b16 %v5899, %v5898
    %v5927 = vpack.c.b16 %v5901, %v5900
    %v5928 = vpack.c.b16 %v5903, %v5902
    %v5929 = vpack.c.b16 %v5905, %v5904
    %v5930 = vpack.c.b16 %v5907, %v5906
    %v5931 = vpack.c.b16 %v5909, %v5908
    %v5932 = vpack.c.b16 %v5911, %v5910
    %v5933 = vpack.c.b16 %v5913, %v5912
    %v5934 = vpack.c.b16 %v5915, %v5914
    %v5935 = vpack.c.b16 %v5917, %v5916
    %v5936 = vpack.c.b16 %v5919, %v5918
    %v5937 = vpack.c.b16 %v5921, %v5920
    %5954 = vmatprep.subr.bf16.mxu0 0
    %5955 = vmatpush1.bf16.msra.mxu0 %v5922
    %5956 = vmatprep.subr.bf16.mxu0 0
    %5957 = vmatpush1.bf16.msra.mxu0 %v5923
    %5958 = vmatprep.subr.bf16.mxu0 0
    %5959 = vmatpush1.bf16.msra.mxu0 %v5924
    %5960 = vmatprep.subr.bf16.mxu0 0
    %5961 = vmatpush1.bf16.msra.mxu0 %v5925
    %5962 = vmatprep.subr.bf16.mxu0 0
    %5963 = vmatpush1.bf16.msra.mxu0 %v5926
    %5964 = vmatprep.subr.bf16.mxu0 0
    %5965 = vmatpush1.bf16.msra.mxu0 %v5927
    %5966 = vmatprep.subr.bf16.mxu0 0
    %5967 = vmatpush1.bf16.msra.mxu0 %v5928
    %5968 = vmatprep.subr.bf16.mxu0 0
    %5969 = vmatpush1.bf16.msra.mxu0 %v5929
    %5970 = vmatprep.subr.bf16.mxu0 0
    %5971 = vmatpush1.bf16.msra.mxu0 %v5930
    %5972 = vmatprep.subr.bf16.mxu0 0
    %5973 = vmatpush1.bf16.msra.mxu0 %v5931
    %5974 = vmatprep.subr.bf16.mxu0 0
    %5975 = vmatpush1.bf16.msra.mxu0 %v5932
    %5976 = vmatprep.subr.bf16.mxu0 0
    %5977 = vmatpush1.bf16.msra.mxu0 %v5933
    %5978 = vmatprep.subr.bf16.mxu0 0
    %5979 = vmatpush1.bf16.msra.mxu0 %v5934
    %5980 = vmatprep.subr.bf16.mxu0 0
    %5981 = vmatpush1.bf16.msra.mxu0 %v5935
    %5982 = vmatprep.subr.bf16.mxu0 0
    %5983 = vmatpush1.bf16.msra.mxu0 %v5936
    %5984 = vmatprep.subr.bf16.mxu0 0
    %5985 = vmatpush1.bf16.msra.mxu0 %v5937
    %5986 = vmatprep.mubr.bf16.mxu0 %v5818
    %5987 = vmatmul.mubr.bf16.gmra.mrb[0].mxu0 %v5817
    %v5988 = vpop.f32.mrb[0].mxu0
    %v5989 = vadd.f32 %v5856, %v5988
    %v5990 = vpop.f32.mrb[0].mxu0
    %v5991 = vpop.f32.mrb[0].mxu0
    %v5992 = vadd.f32 %v5856, %v5991
    %v5993 = vpop.f32.mrb[0].mxu0
    %5994 = vdwg.mxu0
    %v5995 = vxor.u32 %v5989, 2147483648
    %v5996 = vxor.u32 %v5992, 2147483648
    %v5997 = vmul.f32 %v5995, 1.442695
    %v5998 = vpow.pop %v5997
    %v5999 = vmul.f32 %v5996, 1.442695
    %v6000 = vpow.pop %v5999
    %v6001 = vadd.f32 %v5998, 1.0
    %v6002 = vadd.f32 %v6000, 1.0
    %v6003 = vrcp.pop %v6001
    %v6004 = vmul.f32 1.0, %v6003
    %v6005 = vrcp.pop %v6002
    %v6006 = vmul.f32 1.0, %v6005
    %6007 = vst [vmem:[%s9] sm:$0xff] %v6004
    %6008 = vst [vmem:[%s9 + $0x8] sm:$0xff] %v6006
    // Predicated region
    $region70: #{discriminator_forward.1} parent=1 // pred_check
      _
    $region71: #{discriminator_forward.1} parent=1 // pred_check_branch
      %6010 = sbr.rel (0) target = $region73
    $region72: #{discriminator_forward.1} parent=1 // pred_region
      _
    $region73: #{discriminator_forward.1} parent=1 // pred_fallthru
      _
    // Predicated region
    $region74: #{discriminator_forward.1} parent=1 // pred_check
      _
    $region75: #{discriminator_forward.1} parent=1 // pred_check_branch
      %6012 = sbr.rel (0) target = $region77
    $region76: #{discriminator_forward.1} parent=1 // pred_region
      _
    $region77: #{discriminator_forward.1} parent=1 // pred_fallthru
      _
    %6013 = vsyncpa [#allocation3], 1
    %6014 = vsyncpa [#allocation5], 1
    %6015 = vsyncpa [#allocation8], 1
    %6016 = vsyncpa [#allocation11], 1
    %6017 = vsyncpa [#allocation14], 1

</llo_original>
